<compile_context>
chip_gen: v6e
topology: v6e:2x2x1
jax: 0.10.0
libtpu: 0.0.40
codegen_flags: <defaults>
</compile_context>

<pallas_src>
import functools

import jax
import jax.numpy as jnp
from jax.experimental import pallas as pl
from jax.experimental.pallas import tpu as pltpu

NS = 0.2      # LeakyReLU negative slope
EPS = 1e-5    # InstanceNorm eps (PyTorch default)


def _round_up(v, m):
    return (v + m - 1) // m * m


def _pick_tile(dim, cands):
    for c in cands:
        if dim % c == 0:
            return c
    return cands[-1]


# --------------------------- fused matmul + bias + LeakyReLU ---------------------------

def _matmul_bias_kernel(x_ref, w_ref, b_ref, o_ref, acc_ref, *, act, ns):
    @pl.when(pl.program_id(2) == 0)
    def _():
        acc_ref[...] = jnp.zeros_like(acc_ref)

    acc_ref[...] += jnp.dot(x_ref[...], w_ref[...],
                            preferred_element_type=jnp.float32)

    @pl.when(pl.program_id(2) == pl.num_programs(2) - 1)
    def _():
        y = acc_ref[...] + b_ref[...]
        if act:
            y = jnp.where(y >= 0, y, ns * y)
        o_ref[...] = y.astype(o_ref.dtype)


def matmul_bias(x, w, b, *, act=False, ns=NS):
    """(M,K)@(K,N)+(N,), optional fused LeakyReLU.

    Tiled over (M, N, K) with a float32 VMEM accumulator; operands are cast to
    bf16 for the MXU (f32 accumulation, f32 epilogue).  K / N are zero-padded
    to 128-multiples so blocks are (8,128)-aligned and output stores lane-dense;
    K / N tiles are exact divisors of the padded extents (no wasted zero tiles).
    """
    M, K = x.shape
    K2, N = w.shape
    assert K == K2

    Mp8 = _round_up(M, 8)
    if Mp8 <= 256:
        tm, Mp = Mp8, Mp8
    else:
        tm = _pick_tile(Mp8, (256, 128))
        Mp = Mp8 if Mp8 % tm == 0 else _round_up(Mp8, tm)
    Np = _round_up(N, 128)
    tn = _pick_tile(Np, (256, 128))
    Kp = _round_up(K, 128)
    tk = _pick_tile(Kp, (512, 384, 256, 128))

    xp = x if (Mp, Kp) == (M, K) else jnp.pad(x, ((0, Mp - M), (0, Kp - K)))
    wp = w if (Kp, Np) == (K, N) else jnp.pad(w, ((0, Kp - K), (0, Np - N)))
    bp = b if Np == N else jnp.pad(b, (0, Np - N))

    xp = xp.astype(jnp.bfloat16)       # MXU-native operands, f32 accumulation
    wp = wp.astype(jnp.bfloat16)
    bp = bp.reshape(1, Np).astype(jnp.float32)

    grid = (Mp // tm, Np // tn, Kp // tk)
    out = pl.pallas_call(
        functools.partial(_matmul_bias_kernel, act=act, ns=ns),
        out_shape=jax.ShapeDtypeStruct((Mp, Np), jnp.float32),
        grid=grid,
        in_specs=[
            pl.BlockSpec((tm, tk), lambda i, j, k: (i, k)),
            pl.BlockSpec((tk, tn), lambda i, j, k: (k, j)),
            pl.BlockSpec((1, tn), lambda i, j, k: (0, j)),
        ],
        out_specs=pl.BlockSpec((tm, tn), lambda i, j, k: (i, j)),
        scratch_shapes=[pltpu.VMEM((tm, tn), jnp.float32)],
        compiler_params=pltpu.CompilerParams(
            dimension_semantics=("parallel", "parallel", "arbitrary")),
        cost_estimate=pl.CostEstimate(
            flops=2 * Mp * Np * Kp,
            transcendentals=0,
            bytes_accessed=Mp * Kp * 2 + Kp * Np * 2 + Mp * Np * 4),
    )(xp, wp, bp)
    if (Mp, Np) != (M, N):
        out = out[:M, :N]
    return out


# --------------------------- standalone LeakyReLU (small uses only) ---------------------------

def _leaky_kernel(x_ref, o_ref, *, ns):
    x = x_ref[...]
    o_ref[...] = jnp.where(x >= 0, x, ns * x)


def leaky_relu(x, ns=NS):
    shp = x.shape
    x2 = x.reshape(-1, shp[-1])
    M, N = x2.shape
    tm = min(256, _round_up(M, 8))
    Mp = _round_up(M, tm)
    if Mp != M:
        x2 = jnp.pad(x2, ((0, Mp - M), (0, 0)))
    y = pl.pallas_call(
        functools.partial(_leaky_kernel, ns=ns),
        out_shape=jax.ShapeDtypeStruct((Mp, N), jnp.float32),
        grid=(Mp // tm,),
        in_specs=[pl.BlockSpec((tm, N), lambda i: (i, 0))],
        out_specs=pl.BlockSpec((tm, N), lambda i: (i, 0)),
        compiler_params=pltpu.CompilerParams(dimension_semantics=("parallel",)),
    )(x2)
    return y[:M].reshape(shp)


# --------------------------- InstanceNorm (optionally fused residual add) ---------------------------

def _in_kernel(x_ref, o_ref, *, eps):
    x = x_ref[...]                                  # (T, tc): normalize over time
    m = jnp.mean(x, axis=0, keepdims=True)
    v = jnp.mean(jnp.square(x - m), axis=0, keepdims=True)   # biased (torch default)
    o_ref[...] = (x - m) * jax.lax.rsqrt(v + eps)


def _in_add_kernel(x_ref, s_ref, o_ref, *, eps):
    x = x_ref[...]
    m = jnp.mean(x, axis=0, keepdims=True)
    v = jnp.mean(jnp.square(x - m), axis=0, keepdims=True)
    o_ref[...] = (x - m) * jax.lax.rsqrt(v + eps) + s_ref[...]


def instance_norm(x, skip=None, eps=EPS):
    """InstanceNorm1d over time of a (B, T, C) tensor, with optional fused skip-add."""
    B, T, C = x.shape
    tc = 128 if C % 128 == 0 else C
    spec = pl.BlockSpec((None, T, tc), lambda b, c: (b, 0, c))
    if skip is None:
        kern, in_specs, args = functools.partial(_in_kernel, eps=eps), [spec], (x,)
    else:
        kern, in_specs, args = functools.partial(_in_add_kernel, eps=eps), [spec, spec], (x, skip)
    return pl.pallas_call(
        kern,
        out_shape=jax.ShapeDtypeStruct((B, T, C), jnp.float32),
        grid=(B, C // tc),
        in_specs=in_specs,
        out_specs=spec,
        compiler_params=pltpu.CompilerParams(
            dimension_semantics=("parallel", "parallel")),
    )(*args)


# --------------------------- GRU (hoisted input projection + in-kernel time loop) ---------------------------

def _gru_rec_kernel(rev_ref, gi_ref, whh_ref, bhh_ref, y_ref, h_ref, *, T, Hp):
    # grid axis 0 = GRU instance / direction, marked "parallel" so e.g. the two
    # directions of the bi-GRU can run on the two v7x TensorCores.
    d = pl.program_id(0)
    rev = rev_ref[d]                   # 0: forward in time, 1: backward
    h_ref[...] = jnp.zeros_like(h_ref)
    whh = whh_ref[...]                 # (Hp, 3Hp)
    bhh = bhh_ref[...]                 # (1, 3Hp)

    def step(i, carry):
        t = i + rev * (T - 1 - 2 * i)  # fwd: i ; bwd: T-1-i (no x[::-1] copy)
        gi = gi_ref[t]                 # (Bp, 3Hp)  precomputed x@Wih + bih
        h = h_ref[...]                 # (Bp, Hp)
        gh = jnp.dot(h, whh, preferred_element_type=jnp.float32) + bhh
        r = jax.nn.sigmoid(gi[:, :Hp] + gh[:, :Hp])
        z = jax.nn.sigmoid(gi[:, Hp:2 * Hp] + gh[:, Hp:2 * Hp])
        n = jnp.tanh(gi[:, 2 * Hp:] + r * gh[:, 2 * Hp:])
        h_new = (1.0 - z) * n + z * h
        h_ref[...] = h_new
        y_ref[t] = h_new
        return carry

    jax.lax.fori_loop(0, T, step, 0)


def _pad_gate_cols(w, H, Hp):
    """(R, 3H) -> (R, 3Hp) with gate g occupying columns [g*Hp, g*Hp+H)."""
    if H == Hp:
        return w
    R = w.shape[0]
    out = jnp.zeros((R, 3 * Hp), w.dtype)
    for g in range(3):
        out = out.at[:, g * Hp:g * Hp + H].set(w[:, g * H:(g + 1) * H])
    return out


def _pad_gru_dir(gp, Hp):
    H = gp["whh"].shape[0]
    wih = _pad_gate_cols(gp["wih"], H, Hp)                       # (C, 3Hp)
    whh = _pad_gate_cols(gp["whh"], H, Hp)                       # (H, 3Hp)
    if H != Hp:
        whh = jnp.concatenate([whh, jnp.zeros((Hp - H, 3 * Hp), whh.dtype)], axis=0)
    bih = _pad_gate_cols(gp["bih"][None, :], H, Hp)[0]
    bhh = _pad_gate_cols(gp["bhh"][None, :], H, Hp)[0]
    return wih, whh, bih, bhh


def gru_forward(x_btc, dirs, reverse):
    """Run len(dirs) GRUs (same hidden size) over time of a (B, T, C) sequence.

    reverse[i] in {0,1} selects forward / backward time order per GRU.
    Returns (B, T, len(dirs)*H), features concatenated per dir — with
    reverse=(0,1) this matches torch.nn.GRU(bidirectional=True) output order.
    Padded hidden units (H->Hp) and batch rows (B->Bp) provably stay 0.
    """
    B, T, C = x_btc.shape
    H = dirs[0]["whh"].shape[0]
    Hp = _round_up(H, 128)             # lane-dense hidden
    Bp = _round_up(B, 8)               # sublane-dense batch
    D = len(dirs)

    padded = [_pad_gru_dir(gp, Hp) for gp in dirs]
    wih_cat = jnp.concatenate([p[0] for p in padded], axis=1)    # (C, D*3Hp)
    bih_cat = jnp.concatenate([p[2] for p in padded], axis=0)    # (D*3Hp,)
    whh_all = jnp.stack([p[1] for p in padded], axis=0)          # (D, Hp, 3Hp)
    bhh_all = jnp.stack([p[3].reshape(1, 3 * Hp) for p in padded], axis=0)

    # Hoisted input projection: ONE MXU matmul covering all dirs & timesteps.
    gi = matmul_bias(x_btc.reshape(B * T, C), wih_cat, bih_cat, act=False)
    gi = jnp.transpose(gi.reshape(B, T, D, 3 * Hp), (2, 1, 0, 3))  # (D, T, B, 3Hp)
    if Bp != B:
        gi = jnp.pad(gi, ((0, 0), (0, 0), (0, Bp - B), (0, 0)))
    rev = jnp.asarray(reverse, jnp.int32)

    y = pl.pallas_call(
        functools.partial(_gru_rec_kernel, T=T, Hp=Hp),
        out_shape=jax.ShapeDtypeStruct((D, T, Bp, Hp), jnp.float32),
        grid_spec=pltpu.PrefetchScalarGridSpec(
            num_scalar_prefetch=1,
            grid=(D,),
            in_specs=[
                pl.BlockSpec((None, T, Bp, 3 * Hp), lambda d, rev: (d, 0, 0, 0)),
                pl.BlockSpec((None, Hp, 3 * Hp), lambda d, rev: (d, 0, 0)),
                pl.BlockSpec((None, 1, 3 * Hp), lambda d, rev: (d, 0, 0)),
            ],
            out_specs=pl.BlockSpec((None, T, Bp, Hp), lambda d, rev: (d, 0, 0, 0)),
            scratch_shapes=[pltpu.VMEM((Bp, Hp), jnp.float32)]),
        compiler_params=pltpu.CompilerParams(
            dimension_semantics=("parallel",),
            vmem_limit_bytes=64 * 1024 * 1024),
    )(rev, gi, whh_all, bhh_all)

    y = y[:, :, :B, :H]                                          # (D, T, B, H)
    return jnp.transpose(y, (2, 1, 0, 3)).reshape(B, T, D * H)


# --------------------------- conv / linear glue (all in (B, T, C) layout) ---------------------------

def reflect_pad_time(x, k):
    # pad_layer(): reflect pad so conv output length == ceil(T / stride)
    pad = (k // 2, k // 2 - 1) if k % 2 == 0 else (k // 2, k // 2)
    if pad == (0, 0):
        return x
    return jnp.pad(x, ((0, 0), pad, (0, 0)), mode="reflect")


def conv1d_tc(x, w, b, *, stride=1, act=True, ns=NS):
    # x: (B, Tp, Cin) already padded; w: (Cout, Cin, k) PyTorch layout.
    # TODO(synk): fold the k-tap gather into the matmul reduction axis instead of
    # materializing the im2col patches in HBM.
    B, Tp, Cin = x.shape
    Cout, Cin2, k = w.shape
    T_out = (Tp - k) // stride + 1
    cols = [x[:, j::stride, :][:, :T_out, :] for j in range(k)]   # k x (B, T_out, Cin)
    patches = jnp.stack(cols, axis=-1).reshape(B * T_out, Cin * k)
    w_mat = w.reshape(Cout, Cin * k).T                            # (Cin*k, Cout)
    y = matmul_bias(patches, w_mat, b, act=act, ns=ns)
    return y.reshape(B, T_out, Cout)


def pad_conv(x, w, b, *, stride=1, act=True, ns=NS):
    return conv1d_tc(reflect_pad_time(x, w.shape[-1]), w, b, stride=stride, act=act, ns=ns)


def avg_pool_down2(x):
    # F.avg_pool1d(F.pad(x, (0, T%2), 'reflect'), 2) in (B, T, C) layout
    if x.shape[1] % 2 == 1:
        x = jnp.pad(x, ((0, 0), (0, 1), (0, 0)), mode="reflect")
    return 0.5 * (x[:, 0::2] + x[:, 1::2])


def linear_tc(x, w, b, *, act=False, ns=NS):
    B, T, C = x.shape
    y = matmul_bias(x.reshape(B * T, C), w, b, act=act, ns=ns)
    return y.reshape(B, T, -1)


# --------------------------- forward ---------------------------

def variational_encoder_forward(p, x_nct, ns=NS):
    x = jnp.transpose(x_nct, (0, 2, 1))             # (B, C, T) -> internal (B, T, C)

    # conv1s bank (k=1..7): LeakyReLU fused into each conv matmul; the raw x
    # branch gets its LeakyReLU separately (elementwise, so == leaky(concat)).
    outs = [pad_conv(x, p[f"conv1_{k}_w"], p[f"conv1_{k}_b"], act=True, ns=ns)
            for k in range(1, 8)]
    outs.append(leaky_relu(x, ns))
    out = jnp.concatenate(outs, axis=-1)

    # conv_block([conv2], [ins_norm1, drop1], res=False); dropout = identity
    out = pad_conv(out, p["conv2_w"], p["conv2_b"], act=True, ns=ns)
    out = instance_norm(out)

    def conv_block(inp, w1, b1, w2, b2):
        o = pad_conv(inp, w1, b1, stride=1, act=True, ns=ns)
        o = pad_conv(o, w2, b2, stride=2, act=True, ns=ns)
        return instance_norm(o, skip=avg_pool_down2(inp))        # fused residual

    out = conv_block(out, p["conv3_w"], p["conv3_b"], p["conv4_w"], p["conv4_b"])
    out = conv_block(out, p["conv5_w"], p["conv5_b"], p["conv6_w"], p["conv6_b"])
    out = conv_block(out, p["conv7_w"], p["conv7_b"], p["conv8_w"], p["conv8_b"])

    def dense_block(inp, w1, b1, w2, b2):
        o = linear_tc(inp, w1, b1, act=True, ns=ns)
        o = linear_tc(o, w2, b2, act=True, ns=ns)
        return instance_norm(o, skip=inp)                        # fused residual

    out = dense_block(out, p["dense1_w"], p["dense1_b"], p["dense2_w"], p["dense2_b"])
    out = dense_block(out, p["dense3_w"], p["dense3_b"], p["dense4_w"], p["dense4_b"])

    out_rnn = gru_forward(out, [p["rnn_fwd"], p["rnn_bwd"]], (0, 1))  # bi-GRU
    out = jnp.concatenate([out, out_rnn], axis=-1)
    out = linear_tc(out, p["linear_w"], p["linear_b"], act=False)

    # mean / log_var heads take the PRE-activation linear output; fuse both
    # H=1 GRUs into a single recurrence call (both forward in time).
    mv = gru_forward(out, [p["mean_gru"], p["logvar_gru"]], (0, 0))   # (B, T, 2)
    mean, log_var = mv[..., 0:1], mv[..., 1:2]
    out = leaky_relu(out, ns)                                    # one_hot=False path
    # TODO(synk): gumbel_softmax path (one_hot=True) not implemented.

    to_nct = lambda a: jnp.transpose(a, (0, 2, 1))               # back to PyTorch NCL
    return to_nct(out), to_nct(mean), to_nct(log_var)


# --------------------------- deterministic parameter init ---------------------------

def init_params(key, cfg):
    c_in, c_h1, c_h2, c_h3, emb = (cfg["c_in"], cfg["c_h1"], cfg["c_h2"],
                                   cfg["c_h3"], cfg["emb_size"])
    keys = iter(jax.random.split(key, 64))

    def nrm(shape, fan_in):
        return jax.random.normal(next(keys), shape, jnp.float32) / jnp.sqrt(float(fan_in))

    p = {}
    for k in range(1, 8):
        p[f"conv1_{k}_w"] = nrm((c_h1, c_in, k), c_in * k)       # PyTorch (Cout, Cin, k)
        p[f"conv1_{k}_b"] = nrm((c_h1,), c_in * k)
    cat_ch = 7 * c_h1 + c_in
    p["conv2_w"] = nrm((c_h2, cat_ch, 1), cat_ch)
    p["conv2_b"] = nrm((c_h2,), cat_ch)
    for name in ["conv3", "conv4", "conv5", "conv6", "conv7", "conv8"]:
        p[f"{name}_w"] = nrm((c_h2, c_h2, 5), c_h2 * 5)
        p[f"{name}_b"] = nrm((c_h2,), c_h2 * 5)
    for name in ["dense1", "dense2", "dense3", "dense4"]:
        p[f"{name}_w"] = nrm((c_h2, c_h2), c_h2)                 # stored as (in, out)
        p[f"{name}_b"] = nrm((c_h2,), c_h2)

    def gru_params(c, h):
        return {"wih": nrm((c, 3 * h), c),   # (in, 3H)  (transposed torch weight_ih)
                "whh": nrm((h, 3 * h), h),   # (H, 3H)
                "bih": nrm((3 * h,), h),
                "bhh": nrm((3 * h,), h)}

    p["rnn_fwd"] = gru_params(c_h2, c_h3)
    p["rnn_bwd"] = gru_params(c_h2, c_h3)
    lin_in = c_h2 + 2 * c_h3
    p["linear_w"] = nrm((lin_in, emb), lin_in)
    p["linear_b"] = nrm((emb,), lin_in)
    # PyTorch declares input_size=c_h2 for mean/log_var, but the actual input is
    # the `linear` output (emb channels); emb == c_h2 in the default config.
    p["mean_gru"] = gru_params(emb, 1)
    p["logvar_gru"] = gru_params(emb, 1)
    return p


# --------------------------- main ---------------------------

if __name__ == "__main__":
    # Small config (structure identical to the PyTorch defaults 513/128/512/128/512).
    cfg = dict(c_in=12, c_h1=8, c_h2=32, c_h3=8, emb_size=32)
    B, T = 2, 32

    key = jax.random.PRNGKey(0)
    k_x, k_p = jax.random.split(key)
    x = jax.random.normal(k_x, (B, cfg["c_in"], T), jnp.float32)   # (B, C, T) = NCT
    params = init_params(k_p, cfg)

    fwd = jax.jit(variational_encoder_forward)
    out, mean, log_var = fwd(params, x)
    jax.block_until_ready((out, mean, log_var))

    T_ds = T // 8   # three stride-2 stages: 32 -> 16 -> 8 -> 4
    assert out.shape == (B, cfg["emb_size"], T_ds), out.shape
    assert mean.shape == (B, 1, T_ds), mean.shape
    assert log_var.shape == (B, 1, T_ds), log_var.shape
    print("KERNEL_OK")
</pallas_src>

<mosaic_0001>
module attributes {stable_mosaic.version = 11 : i64} {
  func.func @_matmul_bias_kernel(%arg0: i32, %arg1: i32, %arg2: i32, %arg3: memref<64x128xbf16, #tpu.memory_space<vmem>>, %arg4: memref<128x128xbf16, #tpu.memory_space<vmem>>, %arg5: memref<1x128xf32, #tpu.memory_space<vmem>>, %arg6: memref<64x128xf32, #tpu.memory_space<vmem>>, %arg7: memref<64x128xf32, #tpu.memory_space<vmem>>) attributes {dimension_semantics = [#tpu.dimension_semantics<parallel>, #tpu.dimension_semantics<parallel>, #tpu.dimension_semantics<arbitrary>], iteration_bounds = array<i64: 1, 1, 1>, scalar_prefetch = 0 : i64, scratch_operands = 1 : i64, tpu.core_type = #tpu.core_type<tc>, window_params = [{transform_indices = @transform_0, window_bounds = array<i64: 64, 128>}, {transform_indices = @transform_1, window_bounds = array<i64: 128, 128>}, {transform_indices = @transform_2, window_bounds = array<i64: 1, 128>}, {transform_indices = @transform_3, window_bounds = array<i64: 64, 128>}]} {
    %c0_i32 = arith.constant 0 : i32
    %0 = arith.cmpi eq, %arg2, %c0_i32 : i32
    %1 = arith.extui %0 : i1 to i32
    %c0_i32_0 = arith.constant 0 : i32
    %2 = arith.cmpi ne, %1, %c0_i32_0 : i32
    scf.if %2 {
      %cst_10 = arith.constant 0.000000e+00 : f32
      %12 = vector.broadcast %cst_10 : f32 to vector<64x128xf32>
      %c0_11 = arith.constant 0 : index
      %c0_12 = arith.constant 0 : index
      %13 = vector.load %arg7[%c0_11, %c0_12] : memref<64x128xf32, #tpu.memory_space<vmem>>, vector<64x128xf32>
      tpu.vector_store %arg7[%c0_11, %c0_12], %12 {strides = array<i32>} : memref<64x128xf32, #tpu.memory_space<vmem>>, vector<64x128xf32>,
    } else {
    }
    %c0 = arith.constant 0 : index
    %c0_1 = arith.constant 0 : index
    %3 = vector.load %arg7[%c0, %c0_1] : memref<64x128xf32, #tpu.memory_space<vmem>>, vector<64x128xf32>
    %c0_2 = arith.constant 0 : index
    %c0_3 = arith.constant 0 : index
    %4 = vector.load %arg3[%c0_2, %c0_3] : memref<64x128xbf16, #tpu.memory_space<vmem>>, vector<64x128xbf16>
    %c0_4 = arith.constant 0 : index
    %c0_5 = arith.constant 0 : index
    %5 = vector.load %arg4[%c0_4, %c0_5] : memref<128x128xbf16, #tpu.memory_space<vmem>>, vector<128x128xbf16>
    %cst = arith.constant dense<0.000000e+00> : vector<64x128xf32>
    %6 = tpu.matmul %4, %5, %cst {dimension_numbers = #tpu.dot_dimension_numbers<[1], [0], [0], [1], [0, 0, 1, 1], [], []>} : vector<64x128xbf16>, vector<128x128xbf16>, vector<64x128xf32> -> vector<64x128xf32>
    %7 = arith.addf %3, %6 : vector<64x128xf32>
    %c0_6 = arith.constant 0 : index
    %c0_7 = arith.constant 0 : index
    %8 = vector.load %arg7[%c0_6, %c0_7] : memref<64x128xf32, #tpu.memory_space<vmem>>, vector<64x128xf32>
    tpu.vector_store %arg7[%c0_6, %c0_7], %7 {strides = array<i32>} : memref<64x128xf32, #tpu.memory_space<vmem>>, vector<64x128xf32>,
    %c0_i32_8 = arith.constant 0 : i32
    %9 = arith.cmpi eq, %arg2, %c0_i32_8 : i32
    %10 = arith.extui %9 : i1 to i32
    %c0_i32_9 = arith.constant 0 : i32
    %11 = arith.cmpi ne, %10, %c0_i32_9 : i32
    scf.if %11 {
      %c0_10 = arith.constant 0 : index
      %c0_11 = arith.constant 0 : index
      %12 = vector.load %arg7[%c0_10, %c0_11] : memref<64x128xf32, #tpu.memory_space<vmem>>, vector<64x128xf32>
      %c0_12 = arith.constant 0 : index
      %c0_13 = arith.constant 0 : index
      %13 = vector.load %arg5[%c0_12, %c0_13] : memref<1x128xf32, #tpu.memory_space<vmem>>, vector<1x128xf32>
      %14 = vector.broadcast %13 : vector<1x128xf32> to vector<64x128xf32>
      %15 = arith.addf %12, %14 : vector<64x128xf32>
      %cst_14 = arith.constant 0.000000e+00 : f32
      %16 = vector.broadcast %cst_14 : f32 to vector<64x128xf32>
      %17 = arith.cmpf oge, %15, %16 : vector<64x128xf32>
      %cst_15 = arith.constant 2.000000e-01 : f32
      %18 = vector.broadcast %cst_15 : f32 to vector<64x128xf32>
      %19 = arith.mulf %18, %15 : vector<64x128xf32>
      %20 = arith.select %17, %15, %19 : vector<64x128xi1>, vector<64x128xf32>
      %c0_16 = arith.constant 0 : index
      %c0_17 = arith.constant 0 : index
      %21 = vector.load %arg6[%c0_16, %c0_17] : memref<64x128xf32, #tpu.memory_space<vmem>>, vector<64x128xf32>
      tpu.vector_store %arg6[%c0_16, %c0_17], %20 {strides = array<i32>} : memref<64x128xf32, #tpu.memory_space<vmem>>, vector<64x128xf32>,
    } else {
    }
    return
  }
  func.func @transform_0(%arg0: i32, %arg1: i32, %arg2: i32) -> (i32, i32) {
    %c0_i32 = arith.constant 0 : i32
    return %arg0, %arg2 : i32, i32
  }
  func.func @transform_1(%arg0: i32, %arg1: i32, %arg2: i32) -> (i32, i32) {
    %c0_i32 = arith.constant 0 : i32
    return %arg2, %arg1 : i32, i32
  }
  func.func @transform_2(%arg0: i32, %arg1: i32, %arg2: i32) -> (i32, i32) {
    %c0_i32 = arith.constant 0 : i32
    %c0_i32_0 = arith.constant 0 : i32
    return %c0_i32, %arg1 : i32, i32
  }
  func.func @transform_3(%arg0: i32, %arg1: i32, %arg2: i32) -> (i32, i32) {
    %c0_i32 = arith.constant 0 : i32
    return %arg0, %arg1 : i32, i32
  }
}

module attributes {stable_mosaic.version = 11 : i64} {
  func.func @_leaky_kernel(%arg0: i32, %arg1: memref<64x12xf32, #tpu.memory_space<vmem>>, %arg2: memref<64x12xf32, #tpu.memory_space<vmem>>) attributes {dimension_semantics = [#tpu.dimension_semantics<parallel>], iteration_bounds = array<i64: 1>, scalar_prefetch = 0 : i64, scratch_operands = 0 : i64, tpu.core_type = #tpu.core_type<tc>, window_params = [{transform_indices = @transform_0, window_bounds = array<i64: 64, 12>}, {transform_indices = @transform_1, window_bounds = array<i64: 64, 12>}]} {
    %c0 = arith.constant 0 : index
    %c0_0 = arith.constant 0 : index
    %0 = vector.load %arg1[%c0, %c0_0] : memref<64x12xf32, #tpu.memory_space<vmem>>, vector<64x12xf32>
    %cst = arith.constant 0.000000e+00 : f32
    %1 = vector.broadcast %cst : f32 to vector<64x12xf32>
    %2 = arith.cmpf oge, %0, %1 : vector<64x12xf32>
    %cst_1 = arith.constant 2.000000e-01 : f32
    %3 = vector.broadcast %cst_1 : f32 to vector<64x12xf32>
    %4 = arith.mulf %3, %0 : vector<64x12xf32>
    %5 = arith.select %2, %0, %4 : vector<64x12xi1>, vector<64x12xf32>
    %c0_2 = arith.constant 0 : index
    %c0_3 = arith.constant 0 : index
    %6 = vector.load %arg2[%c0_2, %c0_3] : memref<64x12xf32, #tpu.memory_space<vmem>>, vector<64x12xf32>
    tpu.vector_store %arg2[%c0_2, %c0_3], %5 {strides = array<i32>} : memref<64x12xf32, #tpu.memory_space<vmem>>, vector<64x12xf32>,
    return
  }
  func.func @transform_0(%arg0: i32) -> (i32, i32) {
    %c0_i32 = arith.constant 0 : i32
    %c0_i32_0 = arith.constant 0 : i32
    return %arg0, %c0_i32 : i32, i32
  }
  func.func @transform_1(%arg0: i32) -> (i32, i32) {
    %c0_i32 = arith.constant 0 : i32
    %c0_i32_0 = arith.constant 0 : i32
    return %arg0, %c0_i32 : i32, i32
  }
}

module attributes {stable_mosaic.version = 11 : i64} {
  func.func @_in_kernel(%arg0: i32, %arg1: i32, %arg2: memref<1x32x32xf32, #tpu.memory_space<vmem>>, %arg3: memref<1x32x32xf32, #tpu.memory_space<vmem>>) attributes {dimension_semantics = [#tpu.dimension_semantics<parallel>, #tpu.dimension_semantics<parallel>], iteration_bounds = array<i64: 2, 1>, scalar_prefetch = 0 : i64, scratch_operands = 0 : i64, tpu.core_type = #tpu.core_type<tc>, window_params = [{transform_indices = @transform_0, window_bounds = array<i64: 1, 32, 32>}, {transform_indices = @transform_1, window_bounds = array<i64: 1, 32, 32>}]} {
    %c0 = arith.constant 0 : index
    %c0_0 = arith.constant 0 : index
    %c0_1 = arith.constant 0 : index
    %0 = vector.load %arg2[%c0, %c0_0, %c0_1] : memref<1x32x32xf32, #tpu.memory_space<vmem>>, vector<1x32x32xf32>
    %1 = vector.shape_cast %0 : vector<1x32x32xf32> to vector<32x32xf32>
    %cst = arith.constant dense<0.000000e+00> : vector<32xf32>
    %2 = vector.multi_reduction <add>, %1, %cst [0] : vector<32x32xf32> to vector<32xf32>
    %3 = vector.shape_cast %2 : vector<32xf32> to vector<1x32xf32>
    %cst_2 = arith.constant 3.200000e+01 : f32
    %4 = vector.broadcast %cst_2 : f32 to vector<1x32xf32>
    %5 = arith.divf %3, %4 : vector<1x32xf32>
    %6 = vector.broadcast %5 : vector<1x32xf32> to vector<32x32xf32>
    %7 = arith.subf %1, %6 : vector<32x32xf32>
    %8 = arith.mulf %7, %7 : vector<32x32xf32>
    %cst_3 = arith.constant dense<0.000000e+00> : vector<32xf32>
    %9 = vector.multi_reduction <add>, %8, %cst_3 [0] : vector<32x32xf32> to vector<32xf32>
    %10 = vector.shape_cast %9 : vector<32xf32> to vector<1x32xf32>
    %cst_4 = arith.constant 3.200000e+01 : f32
    %11 = vector.broadcast %cst_4 : f32 to vector<1x32xf32>
    %12 = arith.divf %10, %11 : vector<1x32xf32>
    %13 = vector.broadcast %5 : vector<1x32xf32> to vector<32x32xf32>
    %14 = arith.subf %1, %13 : vector<32x32xf32>
    %cst_5 = arith.constant 9.99999974E-6 : f32
    %15 = vector.broadcast %cst_5 : f32 to vector<1x32xf32>
    %16 = arith.addf %12, %15 : vector<1x32xf32>
    %17 = math.rsqrt %16 : vector<1x32xf32>
    %18 = vector.broadcast %17 : vector<1x32xf32> to vector<32x32xf32>
    %19 = arith.mulf %14, %18 : vector<32x32xf32>
    %c0_6 = arith.constant 0 : index
    %c0_7 = arith.constant 0 : index
    %c0_8 = arith.constant 0 : index
    %20 = vector.load %arg3[%c0_6, %c0_7, %c0_8] : memref<1x32x32xf32, #tpu.memory_space<vmem>>, vector<1x32x32xf32>
    %21 = vector.shape_cast %20 : vector<1x32x32xf32> to vector<32x32xf32>
    %22 = vector.shape_cast %19 : vector<32x32xf32> to vector<1x32x32xf32>
    tpu.vector_store %arg3[%c0_6, %c0_7, %c0_8], %22 {strides = array<i32>} : memref<1x32x32xf32, #tpu.memory_space<vmem>>, vector<1x32x32xf32>,
    return
  }
  func.func @transform_0(%arg0: i32, %arg1: i32) -> (i32, i32, i32) {
    %c0_i32 = arith.constant 0 : i32
    %c0_i32_0 = arith.constant 0 : i32
    return %arg0, %c0_i32, %arg1 : i32, i32, i32
  }
  func.func @transform_1(%arg0: i32, %arg1: i32) -> (i32, i32, i32) {
    %c0_i32 = arith.constant 0 : i32
    %c0_i32_0 = arith.constant 0 : i32
    return %arg0, %c0_i32, %arg1 : i32, i32, i32
  }
}

module attributes {stable_mosaic.version = 11 : i64} {
  func.func @_matmul_bias_kernel(%arg0: i32, %arg1: i32, %arg2: i32, %arg3: memref<64x256xbf16, #tpu.memory_space<vmem>>, %arg4: memref<256x128xbf16, #tpu.memory_space<vmem>>, %arg5: memref<1x128xf32, #tpu.memory_space<vmem>>, %arg6: memref<64x128xf32, #tpu.memory_space<vmem>>, %arg7: memref<64x128xf32, #tpu.memory_space<vmem>>) attributes {dimension_semantics = [#tpu.dimension_semantics<parallel>, #tpu.dimension_semantics<parallel>, #tpu.dimension_semantics<arbitrary>], iteration_bounds = array<i64: 1, 1, 1>, scalar_prefetch = 0 : i64, scratch_operands = 1 : i64, tpu.core_type = #tpu.core_type<tc>, window_params = [{transform_indices = @transform_0, window_bounds = array<i64: 64, 256>}, {transform_indices = @transform_1, window_bounds = array<i64: 256, 128>}, {transform_indices = @transform_2, window_bounds = array<i64: 1, 128>}, {transform_indices = @transform_3, window_bounds = array<i64: 64, 128>}]} {
    %c0_i32 = arith.constant 0 : i32
    %0 = arith.cmpi eq, %arg2, %c0_i32 : i32
    %1 = arith.extui %0 : i1 to i32
    %c0_i32_0 = arith.constant 0 : i32
    %2 = arith.cmpi ne, %1, %c0_i32_0 : i32
    scf.if %2 {
      %cst_10 = arith.constant 0.000000e+00 : f32
      %12 = vector.broadcast %cst_10 : f32 to vector<64x128xf32>
      %c0_11 = arith.constant 0 : index
      %c0_12 = arith.constant 0 : index
      %13 = vector.load %arg7[%c0_11, %c0_12] : memref<64x128xf32, #tpu.memory_space<vmem>>, vector<64x128xf32>
      tpu.vector_store %arg7[%c0_11, %c0_12], %12 {strides = array<i32>} : memref<64x128xf32, #tpu.memory_space<vmem>>, vector<64x128xf32>,
    } else {
    }
    %c0 = arith.constant 0 : index
    %c0_1 = arith.constant 0 : index
    %3 = vector.load %arg7[%c0, %c0_1] : memref<64x128xf32, #tpu.memory_space<vmem>>, vector<64x128xf32>
    %c0_2 = arith.constant 0 : index
    %c0_3 = arith.constant 0 : index
    %4 = vector.load %arg3[%c0_2, %c0_3] : memref<64x256xbf16, #tpu.memory_space<vmem>>, vector<64x256xbf16>
    %c0_4 = arith.constant 0 : index
    %c0_5 = arith.constant 0 : index
    %5 = vector.load %arg4[%c0_4, %c0_5] : memref<256x128xbf16, #tpu.memory_space<vmem>>, vector<256x128xbf16>
    %cst = arith.constant dense<0.000000e+00> : vector<64x128xf32>
    %6 = tpu.matmul %4, %5, %cst {dimension_numbers = #tpu.dot_dimension_numbers<[1], [0], [0], [1], [0, 0, 1, 1], [], []>} : vector<64x256xbf16>, vector<256x128xbf16>, vector<64x128xf32> -> vector<64x128xf32>
    %7 = arith.addf %3, %6 : vector<64x128xf32>
    %c0_6 = arith.constant 0 : index
    %c0_7 = arith.constant 0 : index
    %8 = vector.load %arg7[%c0_6, %c0_7] : memref<64x128xf32, #tpu.memory_space<vmem>>, vector<64x128xf32>
    tpu.vector_store %arg7[%c0_6, %c0_7], %7 {strides = array<i32>} : memref<64x128xf32, #tpu.memory_space<vmem>>, vector<64x128xf32>,
    %c0_i32_8 = arith.constant 0 : i32
    %9 = arith.cmpi eq, %arg2, %c0_i32_8 : i32
    %10 = arith.extui %9 : i1 to i32
    %c0_i32_9 = arith.constant 0 : i32
    %11 = arith.cmpi ne, %10, %c0_i32_9 : i32
    scf.if %11 {
      %c0_10 = arith.constant 0 : index
      %c0_11 = arith.constant 0 : index
      %12 = vector.load %arg7[%c0_10, %c0_11] : memref<64x128xf32, #tpu.memory_space<vmem>>, vector<64x128xf32>
      %c0_12 = arith.constant 0 : index
      %c0_13 = arith.constant 0 : index
      %13 = vector.load %arg5[%c0_12, %c0_13] : memref<1x128xf32, #tpu.memory_space<vmem>>, vector<1x128xf32>
      %14 = vector.broadcast %13 : vector<1x128xf32> to vector<64x128xf32>
      %15 = arith.addf %12, %14 : vector<64x128xf32>
      %cst_14 = arith.constant 0.000000e+00 : f32
      %16 = vector.broadcast %cst_14 : f32 to vector<64x128xf32>
      %17 = arith.cmpf oge, %15, %16 : vector<64x128xf32>
      %cst_15 = arith.constant 2.000000e-01 : f32
      %18 = vector.broadcast %cst_15 : f32 to vector<64x128xf32>
      %19 = arith.mulf %18, %15 : vector<64x128xf32>
      %20 = arith.select %17, %15, %19 : vector<64x128xi1>, vector<64x128xf32>
      %c0_16 = arith.constant 0 : index
      %c0_17 = arith.constant 0 : index
      %21 = vector.load %arg6[%c0_16, %c0_17] : memref<64x128xf32, #tpu.memory_space<vmem>>, vector<64x128xf32>
      tpu.vector_store %arg6[%c0_16, %c0_17], %20 {strides = array<i32>} : memref<64x128xf32, #tpu.memory_space<vmem>>, vector<64x128xf32>,
    } else {
    }
    return
  }
  func.func @transform_0(%arg0: i32, %arg1: i32, %arg2: i32) -> (i32, i32) {
    %c0_i32 = arith.constant 0 : i32
    return %arg0, %arg2 : i32, i32
  }
  func.func @transform_1(%arg0: i32, %arg1: i32, %arg2: i32) -> (i32, i32) {
    %c0_i32 = arith.constant 0 : i32
    return %arg2, %arg1 : i32, i32
  }
  func.func @transform_2(%arg0: i32, %arg1: i32, %arg2: i32) -> (i32, i32) {
    %c0_i32 = arith.constant 0 : i32
    %c0_i32_0 = arith.constant 0 : i32
    return %c0_i32, %arg1 : i32, i32
  }
  func.func @transform_3(%arg0: i32, %arg1: i32, %arg2: i32) -> (i32, i32) {
    %c0_i32 = arith.constant 0 : i32
    return %arg0, %arg1 : i32, i32
  }
}

module attributes {stable_mosaic.version = 11 : i64} {
  func.func @_matmul_bias_kernel(%arg0: i32, %arg1: i32, %arg2: i32, %arg3: memref<32x256xbf16, #tpu.memory_space<vmem>>, %arg4: memref<256x128xbf16, #tpu.memory_space<vmem>>, %arg5: memref<1x128xf32, #tpu.memory_space<vmem>>, %arg6: memref<32x128xf32, #tpu.memory_space<vmem>>, %arg7: memref<32x128xf32, #tpu.memory_space<vmem>>) attributes {dimension_semantics = [#tpu.dimension_semantics<parallel>, #tpu.dimension_semantics<parallel>, #tpu.dimension_semantics<arbitrary>], iteration_bounds = array<i64: 1, 1, 1>, scalar_prefetch = 0 : i64, scratch_operands = 1 : i64, tpu.core_type = #tpu.core_type<tc>, window_params = [{transform_indices = @transform_0, window_bounds = array<i64: 32, 256>}, {transform_indices = @transform_1, window_bounds = array<i64: 256, 128>}, {transform_indices = @transform_2, window_bounds = array<i64: 1, 128>}, {transform_indices = @transform_3, window_bounds = array<i64: 32, 128>}]} {
    %c0_i32 = arith.constant 0 : i32
    %0 = arith.cmpi eq, %arg2, %c0_i32 : i32
    %1 = arith.extui %0 : i1 to i32
    %c0_i32_0 = arith.constant 0 : i32
    %2 = arith.cmpi ne, %1, %c0_i32_0 : i32
    scf.if %2 {
      %cst_10 = arith.constant 0.000000e+00 : f32
      %12 = vector.broadcast %cst_10 : f32 to vector<32x128xf32>
      %c0_11 = arith.constant 0 : index
      %c0_12 = arith.constant 0 : index
      %13 = vector.load %arg7[%c0_11, %c0_12] : memref<32x128xf32, #tpu.memory_space<vmem>>, vector<32x128xf32>
      tpu.vector_store %arg7[%c0_11, %c0_12], %12 {strides = array<i32>} : memref<32x128xf32, #tpu.memory_space<vmem>>, vector<32x128xf32>,
    } else {
    }
    %c0 = arith.constant 0 : index
    %c0_1 = arith.constant 0 : index
    %3 = vector.load %arg7[%c0, %c0_1] : memref<32x128xf32, #tpu.memory_space<vmem>>, vector<32x128xf32>
    %c0_2 = arith.constant 0 : index
    %c0_3 = arith.constant 0 : index
    %4 = vector.load %arg3[%c0_2, %c0_3] : memref<32x256xbf16, #tpu.memory_space<vmem>>, vector<32x256xbf16>
    %c0_4 = arith.constant 0 : index
    %c0_5 = arith.constant 0 : index
    %5 = vector.load %arg4[%c0_4, %c0_5] : memref<256x128xbf16, #tpu.memory_space<vmem>>, vector<256x128xbf16>
    %cst = arith.constant dense<0.000000e+00> : vector<32x128xf32>
    %6 = tpu.matmul %4, %5, %cst {dimension_numbers = #tpu.dot_dimension_numbers<[1], [0], [0], [1], [0, 0, 1, 1], [], []>} : vector<32x256xbf16>, vector<256x128xbf16>, vector<32x128xf32> -> vector<32x128xf32>
    %7 = arith.addf %3, %6 : vector<32x128xf32>
    %c0_6 = arith.constant 0 : index
    %c0_7 = arith.constant 0 : index
    %8 = vector.load %arg7[%c0_6, %c0_7] : memref<32x128xf32, #tpu.memory_space<vmem>>, vector<32x128xf32>
    tpu.vector_store %arg7[%c0_6, %c0_7], %7 {strides = array<i32>} : memref<32x128xf32, #tpu.memory_space<vmem>>, vector<32x128xf32>,
    %c0_i32_8 = arith.constant 0 : i32
    %9 = arith.cmpi eq, %arg2, %c0_i32_8 : i32
    %10 = arith.extui %9 : i1 to i32
    %c0_i32_9 = arith.constant 0 : i32
    %11 = arith.cmpi ne, %10, %c0_i32_9 : i32
    scf.if %11 {
      %c0_10 = arith.constant 0 : index
      %c0_11 = arith.constant 0 : index
      %12 = vector.load %arg7[%c0_10, %c0_11] : memref<32x128xf32, #tpu.memory_space<vmem>>, vector<32x128xf32>
      %c0_12 = arith.constant 0 : index
      %c0_13 = arith.constant 0 : index
      %13 = vector.load %arg5[%c0_12, %c0_13] : memref<1x128xf32, #tpu.memory_space<vmem>>, vector<1x128xf32>
      %14 = vector.broadcast %13 : vector<1x128xf32> to vector<32x128xf32>
      %15 = arith.addf %12, %14 : vector<32x128xf32>
      %cst_14 = arith.constant 0.000000e+00 : f32
      %16 = vector.broadcast %cst_14 : f32 to vector<32x128xf32>
      %17 = arith.cmpf oge, %15, %16 : vector<32x128xf32>
      %cst_15 = arith.constant 2.000000e-01 : f32
      %18 = vector.broadcast %cst_15 : f32 to vector<32x128xf32>
      %19 = arith.mulf %18, %15 : vector<32x128xf32>
      %20 = arith.select %17, %15, %19 : vector<32x128xi1>, vector<32x128xf32>
      %c0_16 = arith.constant 0 : index
      %c0_17 = arith.constant 0 : index
      %21 = vector.load %arg6[%c0_16, %c0_17] : memref<32x128xf32, #tpu.memory_space<vmem>>, vector<32x128xf32>
      tpu.vector_store %arg6[%c0_16, %c0_17], %20 {strides = array<i32>} : memref<32x128xf32, #tpu.memory_space<vmem>>, vector<32x128xf32>,
    } else {
    }
    return
  }
  func.func @transform_0(%arg0: i32, %arg1: i32, %arg2: i32) -> (i32, i32) {
    %c0_i32 = arith.constant 0 : i32
    return %arg0, %arg2 : i32, i32
  }
  func.func @transform_1(%arg0: i32, %arg1: i32, %arg2: i32) -> (i32, i32) {
    %c0_i32 = arith.constant 0 : i32
    return %arg2, %arg1 : i32, i32
  }
  func.func @transform_2(%arg0: i32, %arg1: i32, %arg2: i32) -> (i32, i32) {
    %c0_i32 = arith.constant 0 : i32
    %c0_i32_0 = arith.constant 0 : i32
    return %c0_i32, %arg1 : i32, i32
  }
  func.func @transform_3(%arg0: i32, %arg1: i32, %arg2: i32) -> (i32, i32) {
    %c0_i32 = arith.constant 0 : i32
    return %arg0, %arg1 : i32, i32
  }
}

module attributes {stable_mosaic.version = 11 : i64} {
  func.func @_in_add_kernel(%arg0: i32, %arg1: i32, %arg2: memref<1x16x32xf32, #tpu.memory_space<vmem>>, %arg3: memref<1x16x32xf32, #tpu.memory_space<vmem>>, %arg4: memref<1x16x32xf32, #tpu.memory_space<vmem>>) attributes {dimension_semantics = [#tpu.dimension_semantics<parallel>, #tpu.dimension_semantics<parallel>], iteration_bounds = array<i64: 2, 1>, scalar_prefetch = 0 : i64, scratch_operands = 0 : i64, tpu.core_type = #tpu.core_type<tc>, window_params = [{transform_indices = @transform_0, window_bounds = array<i64: 1, 16, 32>}, {transform_indices = @transform_1, window_bounds = array<i64: 1, 16, 32>}, {transform_indices = @transform_2, window_bounds = array<i64: 1, 16, 32>}]} {
    %c0 = arith.constant 0 : index
    %c0_0 = arith.constant 0 : index
    %c0_1 = arith.constant 0 : index
    %0 = vector.load %arg2[%c0, %c0_0, %c0_1] : memref<1x16x32xf32, #tpu.memory_space<vmem>>, vector<1x16x32xf32>
    %1 = vector.shape_cast %0 : vector<1x16x32xf32> to vector<16x32xf32>
    %cst = arith.constant dense<0.000000e+00> : vector<32xf32>
    %2 = vector.multi_reduction <add>, %1, %cst [0] : vector<16x32xf32> to vector<32xf32>
    %3 = vector.shape_cast %2 : vector<32xf32> to vector<1x32xf32>
    %cst_2 = arith.constant 1.600000e+01 : f32
    %4 = vector.broadcast %cst_2 : f32 to vector<1x32xf32>
    %5 = arith.divf %3, %4 : vector<1x32xf32>
    %6 = vector.broadcast %5 : vector<1x32xf32> to vector<16x32xf32>
    %7 = arith.subf %1, %6 : vector<16x32xf32>
    %8 = arith.mulf %7, %7 : vector<16x32xf32>
    %cst_3 = arith.constant dense<0.000000e+00> : vector<32xf32>
    %9 = vector.multi_reduction <add>, %8, %cst_3 [0] : vector<16x32xf32> to vector<32xf32>
    %10 = vector.shape_cast %9 : vector<32xf32> to vector<1x32xf32>
    %cst_4 = arith.constant 1.600000e+01 : f32
    %11 = vector.broadcast %cst_4 : f32 to vector<1x32xf32>
    %12 = arith.divf %10, %11 : vector<1x32xf32>
    %13 = vector.broadcast %5 : vector<1x32xf32> to vector<16x32xf32>
    %14 = arith.subf %1, %13 : vector<16x32xf32>
    %cst_5 = arith.constant 9.99999974E-6 : f32
    %15 = vector.broadcast %cst_5 : f32 to vector<1x32xf32>
    %16 = arith.addf %12, %15 : vector<1x32xf32>
    %17 = math.rsqrt %16 : vector<1x32xf32>
    %18 = vector.broadcast %17 : vector<1x32xf32> to vector<16x32xf32>
    %19 = arith.mulf %14, %18 : vector<16x32xf32>
    %c0_6 = arith.constant 0 : index
    %c0_7 = arith.constant 0 : index
    %c0_8 = arith.constant 0 : index
    %20 = vector.load %arg3[%c0_6, %c0_7, %c0_8] : memref<1x16x32xf32, #tpu.memory_space<vmem>>, vector<1x16x32xf32>
    %21 = vector.shape_cast %20 : vector<1x16x32xf32> to vector<16x32xf32>
    %22 = arith.addf %19, %21 : vector<16x32xf32>
    %c0_9 = arith.constant 0 : index
    %c0_10 = arith.constant 0 : index
    %c0_11 = arith.constant 0 : index
    %23 = vector.load %arg4[%c0_9, %c0_10, %c0_11] : memref<1x16x32xf32, #tpu.memory_space<vmem>>, vector<1x16x32xf32>
    %24 = vector.shape_cast %23 : vector<1x16x32xf32> to vector<16x32xf32>
    %25 = vector.shape_cast %22 : vector<16x32xf32> to vector<1x16x32xf32>
    tpu.vector_store %arg4[%c0_9, %c0_10, %c0_11], %25 {strides = array<i32>} : memref<1x16x32xf32, #tpu.memory_space<vmem>>, vector<1x16x32xf32>,
    return
  }
  func.func @transform_0(%arg0: i32, %arg1: i32) -> (i32, i32, i32) {
    %c0_i32 = arith.constant 0 : i32
    %c0_i32_0 = arith.constant 0 : i32
    return %arg0, %c0_i32, %arg1 : i32, i32, i32
  }
  func.func @transform_1(%arg0: i32, %arg1: i32) -> (i32, i32, i32) {
    %c0_i32 = arith.constant 0 : i32
    %c0_i32_0 = arith.constant 0 : i32
    return %arg0, %c0_i32, %arg1 : i32, i32, i32
  }
  func.func @transform_2(%arg0: i32, %arg1: i32) -> (i32, i32, i32) {
    %c0_i32 = arith.constant 0 : i32
    %c0_i32_0 = arith.constant 0 : i32
    return %arg0, %c0_i32, %arg1 : i32, i32, i32
  }
}

module attributes {stable_mosaic.version = 11 : i64} {
  func.func @_matmul_bias_kernel(%arg0: i32, %arg1: i32, %arg2: i32, %arg3: memref<16x256xbf16, #tpu.memory_space<vmem>>, %arg4: memref<256x128xbf16, #tpu.memory_space<vmem>>, %arg5: memref<1x128xf32, #tpu.memory_space<vmem>>, %arg6: memref<16x128xf32, #tpu.memory_space<vmem>>, %arg7: memref<16x128xf32, #tpu.memory_space<vmem>>) attributes {dimension_semantics = [#tpu.dimension_semantics<parallel>, #tpu.dimension_semantics<parallel>, #tpu.dimension_semantics<arbitrary>], iteration_bounds = array<i64: 1, 1, 1>, scalar_prefetch = 0 : i64, scratch_operands = 1 : i64, tpu.core_type = #tpu.core_type<tc>, window_params = [{transform_indices = @transform_0, window_bounds = array<i64: 16, 256>}, {transform_indices = @transform_1, window_bounds = array<i64: 256, 128>}, {transform_indices = @transform_2, window_bounds = array<i64: 1, 128>}, {transform_indices = @transform_3, window_bounds = array<i64: 16, 128>}]} {
    %c0_i32 = arith.constant 0 : i32
    %0 = arith.cmpi eq, %arg2, %c0_i32 : i32
    %1 = arith.extui %0 : i1 to i32
    %c0_i32_0 = arith.constant 0 : i32
    %2 = arith.cmpi ne, %1, %c0_i32_0 : i32
    scf.if %2 {
      %cst_10 = arith.constant 0.000000e+00 : f32
      %12 = vector.broadcast %cst_10 : f32 to vector<16x128xf32>
      %c0_11 = arith.constant 0 : index
      %c0_12 = arith.constant 0 : index
      %13 = vector.load %arg7[%c0_11, %c0_12] : memref<16x128xf32, #tpu.memory_space<vmem>>, vector<16x128xf32>
      tpu.vector_store %arg7[%c0_11, %c0_12], %12 {strides = array<i32>} : memref<16x128xf32, #tpu.memory_space<vmem>>, vector<16x128xf32>,
    } else {
    }
    %c0 = arith.constant 0 : index
    %c0_1 = arith.constant 0 : index
    %3 = vector.load %arg7[%c0, %c0_1] : memref<16x128xf32, #tpu.memory_space<vmem>>, vector<16x128xf32>
    %c0_2 = arith.constant 0 : index
    %c0_3 = arith.constant 0 : index
    %4 = vector.load %arg3[%c0_2, %c0_3] : memref<16x256xbf16, #tpu.memory_space<vmem>>, vector<16x256xbf16>
    %c0_4 = arith.constant 0 : index
    %c0_5 = arith.constant 0 : index
    %5 = vector.load %arg4[%c0_4, %c0_5] : memref<256x128xbf16, #tpu.memory_space<vmem>>, vector<256x128xbf16>
    %cst = arith.constant dense<0.000000e+00> : vector<16x128xf32>
    %6 = tpu.matmul %4, %5, %cst {dimension_numbers = #tpu.dot_dimension_numbers<[1], [0], [0], [1], [0, 0, 1, 1], [], []>} : vector<16x256xbf16>, vector<256x128xbf16>, vector<16x128xf32> -> vector<16x128xf32>
    %7 = arith.addf %3, %6 : vector<16x128xf32>
    %c0_6 = arith.constant 0 : index
    %c0_7 = arith.constant 0 : index
    %8 = vector.load %arg7[%c0_6, %c0_7] : memref<16x128xf32, #tpu.memory_space<vmem>>, vector<16x128xf32>
    tpu.vector_store %arg7[%c0_6, %c0_7], %7 {strides = array<i32>} : memref<16x128xf32, #tpu.memory_space<vmem>>, vector<16x128xf32>,
    %c0_i32_8 = arith.constant 0 : i32
    %9 = arith.cmpi eq, %arg2, %c0_i32_8 : i32
    %10 = arith.extui %9 : i1 to i32
    %c0_i32_9 = arith.constant 0 : i32
    %11 = arith.cmpi ne, %10, %c0_i32_9 : i32
    scf.if %11 {
      %c0_10 = arith.constant 0 : index
      %c0_11 = arith.constant 0 : index
      %12 = vector.load %arg7[%c0_10, %c0_11] : memref<16x128xf32, #tpu.memory_space<vmem>>, vector<16x128xf32>
      %c0_12 = arith.constant 0 : index
      %c0_13 = arith.constant 0 : index
      %13 = vector.load %arg5[%c0_12, %c0_13] : memref<1x128xf32, #tpu.memory_space<vmem>>, vector<1x128xf32>
      %14 = vector.broadcast %13 : vector<1x128xf32> to vector<16x128xf32>
      %15 = arith.addf %12, %14 : vector<16x128xf32>
      %cst_14 = arith.constant 0.000000e+00 : f32
      %16 = vector.broadcast %cst_14 : f32 to vector<16x128xf32>
      %17 = arith.cmpf oge, %15, %16 : vector<16x128xf32>
      %cst_15 = arith.constant 2.000000e-01 : f32
      %18 = vector.broadcast %cst_15 : f32 to vector<16x128xf32>
      %19 = arith.mulf %18, %15 : vector<16x128xf32>
      %20 = arith.select %17, %15, %19 : vector<16x128xi1>, vector<16x128xf32>
      %c0_16 = arith.constant 0 : index
      %c0_17 = arith.constant 0 : index
      %21 = vector.load %arg6[%c0_16, %c0_17] : memref<16x128xf32, #tpu.memory_space<vmem>>, vector<16x128xf32>
      tpu.vector_store %arg6[%c0_16, %c0_17], %20 {strides = array<i32>} : memref<16x128xf32, #tpu.memory_space<vmem>>, vector<16x128xf32>,
    } else {
    }
    return
  }
  func.func @transform_0(%arg0: i32, %arg1: i32, %arg2: i32) -> (i32, i32) {
    %c0_i32 = arith.constant 0 : i32
    return %arg0, %arg2 : i32, i32
  }
  func.func @transform_1(%arg0: i32, %arg1: i32, %arg2: i32) -> (i32, i32) {
    %c0_i32 = arith.constant 0 : i32
    return %arg2, %arg1 : i32, i32
  }
  func.func @transform_2(%arg0: i32, %arg1: i32, %arg2: i32) -> (i32, i32) {
    %c0_i32 = arith.constant 0 : i32
    %c0_i32_0 = arith.constant 0 : i32
    return %c0_i32, %arg1 : i32, i32
  }
  func.func @transform_3(%arg0: i32, %arg1: i32, %arg2: i32) -> (i32, i32) {
    %c0_i32 = arith.constant 0 : i32
    return %arg0, %arg1 : i32, i32
  }
}

module attributes {stable_mosaic.version = 11 : i64} {
  func.func @_in_add_kernel(%arg0: i32, %arg1: i32, %arg2: memref<1x8x32xf32, #tpu.memory_space<vmem>>, %arg3: memref<1x8x32xf32, #tpu.memory_space<vmem>>, %arg4: memref<1x8x32xf32, #tpu.memory_space<vmem>>) attributes {dimension_semantics = [#tpu.dimension_semantics<parallel>, #tpu.dimension_semantics<parallel>], iteration_bounds = array<i64: 2, 1>, scalar_prefetch = 0 : i64, scratch_operands = 0 : i64, tpu.core_type = #tpu.core_type<tc>, window_params = [{transform_indices = @transform_0, window_bounds = array<i64: 1, 8, 32>}, {transform_indices = @transform_1, window_bounds = array<i64: 1, 8, 32>}, {transform_indices = @transform_2, window_bounds = array<i64: 1, 8, 32>}]} {
    %c0 = arith.constant 0 : index
    %c0_0 = arith.constant 0 : index
    %c0_1 = arith.constant 0 : index
    %0 = vector.load %arg2[%c0, %c0_0, %c0_1] : memref<1x8x32xf32, #tpu.memory_space<vmem>>, vector<1x8x32xf32>
    %1 = vector.shape_cast %0 : vector<1x8x32xf32> to vector<8x32xf32>
    %cst = arith.constant dense<0.000000e+00> : vector<32xf32>
    %2 = vector.multi_reduction <add>, %1, %cst [0] : vector<8x32xf32> to vector<32xf32>
    %3 = vector.shape_cast %2 : vector<32xf32> to vector<1x32xf32>
    %cst_2 = arith.constant 8.000000e+00 : f32
    %4 = vector.broadcast %cst_2 : f32 to vector<1x32xf32>
    %5 = arith.divf %3, %4 : vector<1x32xf32>
    %6 = vector.broadcast %5 : vector<1x32xf32> to vector<8x32xf32>
    %7 = arith.subf %1, %6 : vector<8x32xf32>
    %8 = arith.mulf %7, %7 : vector<8x32xf32>
    %cst_3 = arith.constant dense<0.000000e+00> : vector<32xf32>
    %9 = vector.multi_reduction <add>, %8, %cst_3 [0] : vector<8x32xf32> to vector<32xf32>
    %10 = vector.shape_cast %9 : vector<32xf32> to vector<1x32xf32>
    %cst_4 = arith.constant 8.000000e+00 : f32
    %11 = vector.broadcast %cst_4 : f32 to vector<1x32xf32>
    %12 = arith.divf %10, %11 : vector<1x32xf32>
    %13 = vector.broadcast %5 : vector<1x32xf32> to vector<8x32xf32>
    %14 = arith.subf %1, %13 : vector<8x32xf32>
    %cst_5 = arith.constant 9.99999974E-6 : f32
    %15 = vector.broadcast %cst_5 : f32 to vector<1x32xf32>
    %16 = arith.addf %12, %15 : vector<1x32xf32>
    %17 = math.rsqrt %16 : vector<1x32xf32>
    %18 = vector.broadcast %17 : vector<1x32xf32> to vector<8x32xf32>
    %19 = arith.mulf %14, %18 : vector<8x32xf32>
    %c0_6 = arith.constant 0 : index
    %c0_7 = arith.constant 0 : index
    %c0_8 = arith.constant 0 : index
    %20 = vector.load %arg3[%c0_6, %c0_7, %c0_8] : memref<1x8x32xf32, #tpu.memory_space<vmem>>, vector<1x8x32xf32>
    %21 = vector.shape_cast %20 : vector<1x8x32xf32> to vector<8x32xf32>
    %22 = arith.addf %19, %21 : vector<8x32xf32>
    %c0_9 = arith.constant 0 : index
    %c0_10 = arith.constant 0 : index
    %c0_11 = arith.constant 0 : index
    %23 = vector.load %arg4[%c0_9, %c0_10, %c0_11] : memref<1x8x32xf32, #tpu.memory_space<vmem>>, vector<1x8x32xf32>
    %24 = vector.shape_cast %23 : vector<1x8x32xf32> to vector<8x32xf32>
    %25 = vector.shape_cast %22 : vector<8x32xf32> to vector<1x8x32xf32>
    tpu.vector_store %arg4[%c0_9, %c0_10, %c0_11], %25 {strides = array<i32>} : memref<1x8x32xf32, #tpu.memory_space<vmem>>, vector<1x8x32xf32>,
    return
  }
  func.func @transform_0(%arg0: i32, %arg1: i32) -> (i32, i32, i32) {
    %c0_i32 = arith.constant 0 : i32
    %c0_i32_0 = arith.constant 0 : i32
    return %arg0, %c0_i32, %arg1 : i32, i32, i32
  }
  func.func @transform_1(%arg0: i32, %arg1: i32) -> (i32, i32, i32) {
    %c0_i32 = arith.constant 0 : i32
    %c0_i32_0 = arith.constant 0 : i32
    return %arg0, %c0_i32, %arg1 : i32, i32, i32
  }
  func.func @transform_2(%arg0: i32, %arg1: i32) -> (i32, i32, i32) {
    %c0_i32 = arith.constant 0 : i32
    %c0_i32_0 = arith.constant 0 : i32
    return %arg0, %c0_i32, %arg1 : i32, i32, i32
  }
}

module attributes {stable_mosaic.version = 11 : i64} {
  func.func @_in_add_kernel(%arg0: i32, %arg1: i32, %arg2: memref<1x4x32xf32, #tpu.memory_space<vmem>>, %arg3: memref<1x4x32xf32, #tpu.memory_space<vmem>>, %arg4: memref<1x4x32xf32, #tpu.memory_space<vmem>>) attributes {dimension_semantics = [#tpu.dimension_semantics<parallel>, #tpu.dimension_semantics<parallel>], iteration_bounds = array<i64: 2, 1>, scalar_prefetch = 0 : i64, scratch_operands = 0 : i64, tpu.core_type = #tpu.core_type<tc>, window_params = [{transform_indices = @transform_0, window_bounds = array<i64: 1, 4, 32>}, {transform_indices = @transform_1, window_bounds = array<i64: 1, 4, 32>}, {transform_indices = @transform_2, window_bounds = array<i64: 1, 4, 32>}]} {
    %c0 = arith.constant 0 : index
    %c0_0 = arith.constant 0 : index
    %c0_1 = arith.constant 0 : index
    %0 = vector.load %arg2[%c0, %c0_0, %c0_1] : memref<1x4x32xf32, #tpu.memory_space<vmem>>, vector<1x4x32xf32>
    %1 = vector.shape_cast %0 : vector<1x4x32xf32> to vector<4x32xf32>
    %cst = arith.constant dense<0.000000e+00> : vector<32xf32>
    %2 = vector.multi_reduction <add>, %1, %cst [0] : vector<4x32xf32> to vector<32xf32>
    %3 = vector.shape_cast %2 : vector<32xf32> to vector<1x32xf32>
    %cst_2 = arith.constant 4.000000e+00 : f32
    %4 = vector.broadcast %cst_2 : f32 to vector<1x32xf32>
    %5 = arith.divf %3, %4 : vector<1x32xf32>
    %6 = vector.broadcast %5 : vector<1x32xf32> to vector<4x32xf32>
    %7 = arith.subf %1, %6 : vector<4x32xf32>
    %8 = arith.mulf %7, %7 : vector<4x32xf32>
    %cst_3 = arith.constant dense<0.000000e+00> : vector<32xf32>
    %9 = vector.multi_reduction <add>, %8, %cst_3 [0] : vector<4x32xf32> to vector<32xf32>
    %10 = vector.shape_cast %9 : vector<32xf32> to vector<1x32xf32>
    %cst_4 = arith.constant 4.000000e+00 : f32
    %11 = vector.broadcast %cst_4 : f32 to vector<1x32xf32>
    %12 = arith.divf %10, %11 : vector<1x32xf32>
    %13 = vector.broadcast %5 : vector<1x32xf32> to vector<4x32xf32>
    %14 = arith.subf %1, %13 : vector<4x32xf32>
    %cst_5 = arith.constant 9.99999974E-6 : f32
    %15 = vector.broadcast %cst_5 : f32 to vector<1x32xf32>
    %16 = arith.addf %12, %15 : vector<1x32xf32>
    %17 = math.rsqrt %16 : vector<1x32xf32>
    %18 = vector.broadcast %17 : vector<1x32xf32> to vector<4x32xf32>
    %19 = arith.mulf %14, %18 : vector<4x32xf32>
    %c0_6 = arith.constant 0 : index
    %c0_7 = arith.constant 0 : index
    %c0_8 = arith.constant 0 : index
    %20 = vector.load %arg3[%c0_6, %c0_7, %c0_8] : memref<1x4x32xf32, #tpu.memory_space<vmem>>, vector<1x4x32xf32>
    %21 = vector.shape_cast %20 : vector<1x4x32xf32> to vector<4x32xf32>
    %22 = arith.addf %19, %21 : vector<4x32xf32>
    %c0_9 = arith.constant 0 : index
    %c0_10 = arith.constant 0 : index
    %c0_11 = arith.constant 0 : index
    %23 = vector.load %arg4[%c0_9, %c0_10, %c0_11] : memref<1x4x32xf32, #tpu.memory_space<vmem>>, vector<1x4x32xf32>
    %24 = vector.shape_cast %23 : vector<1x4x32xf32> to vector<4x32xf32>
    %25 = vector.shape_cast %22 : vector<4x32xf32> to vector<1x4x32xf32>
    tpu.vector_store %arg4[%c0_9, %c0_10, %c0_11], %25 {strides = array<i32>} : memref<1x4x32xf32, #tpu.memory_space<vmem>>, vector<1x4x32xf32>,
    return
  }
  func.func @transform_0(%arg0: i32, %arg1: i32) -> (i32, i32, i32) {
    %c0_i32 = arith.constant 0 : i32
    %c0_i32_0 = arith.constant 0 : i32
    return %arg0, %c0_i32, %arg1 : i32, i32, i32
  }
  func.func @transform_1(%arg0: i32, %arg1: i32) -> (i32, i32, i32) {
    %c0_i32 = arith.constant 0 : i32
    %c0_i32_0 = arith.constant 0 : i32
    return %arg0, %c0_i32, %arg1 : i32, i32, i32
  }
  func.func @transform_2(%arg0: i32, %arg1: i32) -> (i32, i32, i32) {
    %c0_i32 = arith.constant 0 : i32
    %c0_i32_0 = arith.constant 0 : i32
    return %arg0, %c0_i32, %arg1 : i32, i32, i32
  }
}

module attributes {stable_mosaic.version = 11 : i64} {
  func.func @_matmul_bias_kernel(%arg0: i32, %arg1: i32, %arg2: i32, %arg3: memref<8x256xbf16, #tpu.memory_space<vmem>>, %arg4: memref<256x128xbf16, #tpu.memory_space<vmem>>, %arg5: memref<1x128xf32, #tpu.memory_space<vmem>>, %arg6: memref<8x128xf32, #tpu.memory_space<vmem>>, %arg7: memref<8x128xf32, #tpu.memory_space<vmem>>) attributes {dimension_semantics = [#tpu.dimension_semantics<parallel>, #tpu.dimension_semantics<parallel>, #tpu.dimension_semantics<arbitrary>], iteration_bounds = array<i64: 1, 1, 1>, scalar_prefetch = 0 : i64, scratch_operands = 1 : i64, tpu.core_type = #tpu.core_type<tc>, window_params = [{transform_indices = @transform_0, window_bounds = array<i64: 8, 256>}, {transform_indices = @transform_1, window_bounds = array<i64: 256, 128>}, {transform_indices = @transform_2, window_bounds = array<i64: 1, 128>}, {transform_indices = @transform_3, window_bounds = array<i64: 8, 128>}]} {
    %c0_i32 = arith.constant 0 : i32
    %0 = arith.cmpi eq, %arg2, %c0_i32 : i32
    %1 = arith.extui %0 : i1 to i32
    %c0_i32_0 = arith.constant 0 : i32
    %2 = arith.cmpi ne, %1, %c0_i32_0 : i32
    scf.if %2 {
      %cst_10 = arith.constant 0.000000e+00 : f32
      %12 = vector.broadcast %cst_10 : f32 to vector<8x128xf32>
      %c0_11 = arith.constant 0 : index
      %c0_12 = arith.constant 0 : index
      %13 = vector.load %arg7[%c0_11, %c0_12] : memref<8x128xf32, #tpu.memory_space<vmem>>, vector<8x128xf32>
      tpu.vector_store %arg7[%c0_11, %c0_12], %12 {strides = array<i32>} : memref<8x128xf32, #tpu.memory_space<vmem>>, vector<8x128xf32>,
    } else {
    }
    %c0 = arith.constant 0 : index
    %c0_1 = arith.constant 0 : index
    %3 = vector.load %arg7[%c0, %c0_1] : memref<8x128xf32, #tpu.memory_space<vmem>>, vector<8x128xf32>
    %c0_2 = arith.constant 0 : index
    %c0_3 = arith.constant 0 : index
    %4 = vector.load %arg3[%c0_2, %c0_3] : memref<8x256xbf16, #tpu.memory_space<vmem>>, vector<8x256xbf16>
    %c0_4 = arith.constant 0 : index
    %c0_5 = arith.constant 0 : index
    %5 = vector.load %arg4[%c0_4, %c0_5] : memref<256x128xbf16, #tpu.memory_space<vmem>>, vector<256x128xbf16>
    %cst = arith.constant dense<0.000000e+00> : vector<8x128xf32>
    %6 = tpu.matmul %4, %5, %cst {dimension_numbers = #tpu.dot_dimension_numbers<[1], [0], [0], [1], [0, 0, 1, 1], [], []>} : vector<8x256xbf16>, vector<256x128xbf16>, vector<8x128xf32> -> vector<8x128xf32>
    %7 = arith.addf %3, %6 : vector<8x128xf32>
    %c0_6 = arith.constant 0 : index
    %c0_7 = arith.constant 0 : index
    %8 = vector.load %arg7[%c0_6, %c0_7] : memref<8x128xf32, #tpu.memory_space<vmem>>, vector<8x128xf32>
    tpu.vector_store %arg7[%c0_6, %c0_7], %7 {strides = array<i32>} : memref<8x128xf32, #tpu.memory_space<vmem>>, vector<8x128xf32>,
    %c0_i32_8 = arith.constant 0 : i32
    %9 = arith.cmpi eq, %arg2, %c0_i32_8 : i32
    %10 = arith.extui %9 : i1 to i32
    %c0_i32_9 = arith.constant 0 : i32
    %11 = arith.cmpi ne, %10, %c0_i32_9 : i32
    scf.if %11 {
      %c0_10 = arith.constant 0 : index
      %c0_11 = arith.constant 0 : index
      %12 = vector.load %arg7[%c0_10, %c0_11] : memref<8x128xf32, #tpu.memory_space<vmem>>, vector<8x128xf32>
      %c0_12 = arith.constant 0 : index
      %c0_13 = arith.constant 0 : index
      %13 = vector.load %arg5[%c0_12, %c0_13] : memref<1x128xf32, #tpu.memory_space<vmem>>, vector<1x128xf32>
      %14 = vector.broadcast %13 : vector<1x128xf32> to vector<8x128xf32>
      %15 = arith.addf %12, %14 : vector<8x128xf32>
      %cst_14 = arith.constant 0.000000e+00 : f32
      %16 = vector.broadcast %cst_14 : f32 to vector<8x128xf32>
      %17 = arith.cmpf oge, %15, %16 : vector<8x128xf32>
      %cst_15 = arith.constant 2.000000e-01 : f32
      %18 = vector.broadcast %cst_15 : f32 to vector<8x128xf32>
      %19 = arith.mulf %18, %15 : vector<8x128xf32>
      %20 = arith.select %17, %15, %19 : vector<8x128xi1>, vector<8x128xf32>
      %c0_16 = arith.constant 0 : index
      %c0_17 = arith.constant 0 : index
      %21 = vector.load %arg6[%c0_16, %c0_17] : memref<8x128xf32, #tpu.memory_space<vmem>>, vector<8x128xf32>
      tpu.vector_store %arg6[%c0_16, %c0_17], %20 {strides = array<i32>} : memref<8x128xf32, #tpu.memory_space<vmem>>, vector<8x128xf32>,
    } else {
    }
    return
  }
  func.func @transform_0(%arg0: i32, %arg1: i32, %arg2: i32) -> (i32, i32) {
    %c0_i32 = arith.constant 0 : i32
    return %arg0, %arg2 : i32, i32
  }
  func.func @transform_1(%arg0: i32, %arg1: i32, %arg2: i32) -> (i32, i32) {
    %c0_i32 = arith.constant 0 : i32
    return %arg2, %arg1 : i32, i32
  }
  func.func @transform_2(%arg0: i32, %arg1: i32, %arg2: i32) -> (i32, i32) {
    %c0_i32 = arith.constant 0 : i32
    %c0_i32_0 = arith.constant 0 : i32
    return %c0_i32, %arg1 : i32, i32
  }
  func.func @transform_3(%arg0: i32, %arg1: i32, %arg2: i32) -> (i32, i32) {
    %c0_i32 = arith.constant 0 : i32
    return %arg0, %arg1 : i32, i32
  }
}

module attributes {stable_mosaic.version = 11 : i64} {
  func.func @_matmul_bias_kernel(%arg0: i32, %arg1: i32, %arg2: i32, %arg3: memref<8x128xbf16, #tpu.memory_space<vmem>>, %arg4: memref<128x128xbf16, #tpu.memory_space<vmem>>, %arg5: memref<1x128xf32, #tpu.memory_space<vmem>>, %arg6: memref<8x128xf32, #tpu.memory_space<vmem>>, %arg7: memref<8x128xf32, #tpu.memory_space<vmem>>) attributes {dimension_semantics = [#tpu.dimension_semantics<parallel>, #tpu.dimension_semantics<parallel>, #tpu.dimension_semantics<arbitrary>], iteration_bounds = array<i64: 1, 1, 1>, scalar_prefetch = 0 : i64, scratch_operands = 1 : i64, tpu.core_type = #tpu.core_type<tc>, window_params = [{transform_indices = @transform_0, window_bounds = array<i64: 8, 128>}, {transform_indices = @transform_1, window_bounds = array<i64: 128, 128>}, {transform_indices = @transform_2, window_bounds = array<i64: 1, 128>}, {transform_indices = @transform_3, window_bounds = array<i64: 8, 128>}]} {
    %c0_i32 = arith.constant 0 : i32
    %0 = arith.cmpi eq, %arg2, %c0_i32 : i32
    %1 = arith.extui %0 : i1 to i32
    %c0_i32_0 = arith.constant 0 : i32
    %2 = arith.cmpi ne, %1, %c0_i32_0 : i32
    scf.if %2 {
      %cst_10 = arith.constant 0.000000e+00 : f32
      %12 = vector.broadcast %cst_10 : f32 to vector<8x128xf32>
      %c0_11 = arith.constant 0 : index
      %c0_12 = arith.constant 0 : index
      %13 = vector.load %arg7[%c0_11, %c0_12] : memref<8x128xf32, #tpu.memory_space<vmem>>, vector<8x128xf32>
      tpu.vector_store %arg7[%c0_11, %c0_12], %12 {strides = array<i32>} : memref<8x128xf32, #tpu.memory_space<vmem>>, vector<8x128xf32>,
    } else {
    }
    %c0 = arith.constant 0 : index
    %c0_1 = arith.constant 0 : index
    %3 = vector.load %arg7[%c0, %c0_1] : memref<8x128xf32, #tpu.memory_space<vmem>>, vector<8x128xf32>
    %c0_2 = arith.constant 0 : index
    %c0_3 = arith.constant 0 : index
    %4 = vector.load %arg3[%c0_2, %c0_3] : memref<8x128xbf16, #tpu.memory_space<vmem>>, vector<8x128xbf16>
    %c0_4 = arith.constant 0 : index
    %c0_5 = arith.constant 0 : index
    %5 = vector.load %arg4[%c0_4, %c0_5] : memref<128x128xbf16, #tpu.memory_space<vmem>>, vector<128x128xbf16>
    %cst = arith.constant dense<0.000000e+00> : vector<8x128xf32>
    %6 = tpu.matmul %4, %5, %cst {dimension_numbers = #tpu.dot_dimension_numbers<[1], [0], [0], [1], [0, 0, 1, 1], [], []>} : vector<8x128xbf16>, vector<128x128xbf16>, vector<8x128xf32> -> vector<8x128xf32>
    %7 = arith.addf %3, %6 : vector<8x128xf32>
    %c0_6 = arith.constant 0 : index
    %c0_7 = arith.constant 0 : index
    %8 = vector.load %arg7[%c0_6, %c0_7] : memref<8x128xf32, #tpu.memory_space<vmem>>, vector<8x128xf32>
    tpu.vector_store %arg7[%c0_6, %c0_7], %7 {strides = array<i32>} : memref<8x128xf32, #tpu.memory_space<vmem>>, vector<8x128xf32>,
    %c0_i32_8 = arith.constant 0 : i32
    %9 = arith.cmpi eq, %arg2, %c0_i32_8 : i32
    %10 = arith.extui %9 : i1 to i32
    %c0_i32_9 = arith.constant 0 : i32
    %11 = arith.cmpi ne, %10, %c0_i32_9 : i32
    scf.if %11 {
      %c0_10 = arith.constant 0 : index
      %c0_11 = arith.constant 0 : index
      %12 = vector.load %arg7[%c0_10, %c0_11] : memref<8x128xf32, #tpu.memory_space<vmem>>, vector<8x128xf32>
      %c0_12 = arith.constant 0 : index
      %c0_13 = arith.constant 0 : index
      %13 = vector.load %arg5[%c0_12, %c0_13] : memref<1x128xf32, #tpu.memory_space<vmem>>, vector<1x128xf32>
      %14 = vector.broadcast %13 : vector<1x128xf32> to vector<8x128xf32>
      %15 = arith.addf %12, %14 : vector<8x128xf32>
      %cst_14 = arith.constant 0.000000e+00 : f32
      %16 = vector.broadcast %cst_14 : f32 to vector<8x128xf32>
      %17 = arith.cmpf oge, %15, %16 : vector<8x128xf32>
      %cst_15 = arith.constant 2.000000e-01 : f32
      %18 = vector.broadcast %cst_15 : f32 to vector<8x128xf32>
      %19 = arith.mulf %18, %15 : vector<8x128xf32>
      %20 = arith.select %17, %15, %19 : vector<8x128xi1>, vector<8x128xf32>
      %c0_16 = arith.constant 0 : index
      %c0_17 = arith.constant 0 : index
      %21 = vector.load %arg6[%c0_16, %c0_17] : memref<8x128xf32, #tpu.memory_space<vmem>>, vector<8x128xf32>
      tpu.vector_store %arg6[%c0_16, %c0_17], %20 {strides = array<i32>} : memref<8x128xf32, #tpu.memory_space<vmem>>, vector<8x128xf32>,
    } else {
    }
    return
  }
  func.func @transform_0(%arg0: i32, %arg1: i32, %arg2: i32) -> (i32, i32) {
    %c0_i32 = arith.constant 0 : i32
    return %arg0, %arg2 : i32, i32
  }
  func.func @transform_1(%arg0: i32, %arg1: i32, %arg2: i32) -> (i32, i32) {
    %c0_i32 = arith.constant 0 : i32
    return %arg2, %arg1 : i32, i32
  }
  func.func @transform_2(%arg0: i32, %arg1: i32, %arg2: i32) -> (i32, i32) {
    %c0_i32 = arith.constant 0 : i32
    %c0_i32_0 = arith.constant 0 : i32
    return %c0_i32, %arg1 : i32, i32
  }
  func.func @transform_3(%arg0: i32, %arg1: i32, %arg2: i32) -> (i32, i32) {
    %c0_i32 = arith.constant 0 : i32
    return %arg0, %arg1 : i32, i32
  }
}

module attributes {stable_mosaic.version = 11 : i64} {
  func.func @_matmul_bias_kernel(%arg0: i32, %arg1: i32, %arg2: i32, %arg3: memref<8x128xbf16, #tpu.memory_space<vmem>>, %arg4: memref<128x256xbf16, #tpu.memory_space<vmem>>, %arg5: memref<1x256xf32, #tpu.memory_space<vmem>>, %arg6: memref<8x256xf32, #tpu.memory_space<vmem>>, %arg7: memref<8x256xf32, #tpu.memory_space<vmem>>) attributes {dimension_semantics = [#tpu.dimension_semantics<parallel>, #tpu.dimension_semantics<parallel>, #tpu.dimension_semantics<arbitrary>], iteration_bounds = array<i64: 1, 3, 1>, scalar_prefetch = 0 : i64, scratch_operands = 1 : i64, tpu.core_type = #tpu.core_type<tc>, window_params = [{transform_indices = @transform_0, window_bounds = array<i64: 8, 128>}, {transform_indices = @transform_1, window_bounds = array<i64: 128, 256>}, {transform_indices = @transform_2, window_bounds = array<i64: 1, 256>}, {transform_indices = @transform_3, window_bounds = array<i64: 8, 256>}]} {
    %c0_i32 = arith.constant 0 : i32
    %0 = arith.cmpi eq, %arg2, %c0_i32 : i32
    %1 = arith.extui %0 : i1 to i32
    %c0_i32_0 = arith.constant 0 : i32
    %2 = arith.cmpi ne, %1, %c0_i32_0 : i32
    scf.if %2 {
      %cst_10 = arith.constant 0.000000e+00 : f32
      %12 = vector.broadcast %cst_10 : f32 to vector<8x256xf32>
      %c0_11 = arith.constant 0 : index
      %c0_12 = arith.constant 0 : index
      %13 = vector.load %arg7[%c0_11, %c0_12] : memref<8x256xf32, #tpu.memory_space<vmem>>, vector<8x256xf32>
      tpu.vector_store %arg7[%c0_11, %c0_12], %12 {strides = array<i32>} : memref<8x256xf32, #tpu.memory_space<vmem>>, vector<8x256xf32>,
    } else {
    }
    %c0 = arith.constant 0 : index
    %c0_1 = arith.constant 0 : index
    %3 = vector.load %arg7[%c0, %c0_1] : memref<8x256xf32, #tpu.memory_space<vmem>>, vector<8x256xf32>
    %c0_2 = arith.constant 0 : index
    %c0_3 = arith.constant 0 : index
    %4 = vector.load %arg3[%c0_2, %c0_3] : memref<8x128xbf16, #tpu.memory_space<vmem>>, vector<8x128xbf16>
    %c0_4 = arith.constant 0 : index
    %c0_5 = arith.constant 0 : index
    %5 = vector.load %arg4[%c0_4, %c0_5] : memref<128x256xbf16, #tpu.memory_space<vmem>>, vector<128x256xbf16>
    %cst = arith.constant dense<0.000000e+00> : vector<8x256xf32>
    %6 = tpu.matmul %4, %5, %cst {dimension_numbers = #tpu.dot_dimension_numbers<[1], [0], [0], [1], [0, 0, 1, 1], [], []>} : vector<8x128xbf16>, vector<128x256xbf16>, vector<8x256xf32> -> vector<8x256xf32>
    %7 = arith.addf %3, %6 : vector<8x256xf32>
    %c0_6 = arith.constant 0 : index
    %c0_7 = arith.constant 0 : index
    %8 = vector.load %arg7[%c0_6, %c0_7] : memref<8x256xf32, #tpu.memory_space<vmem>>, vector<8x256xf32>
    tpu.vector_store %arg7[%c0_6, %c0_7], %7 {strides = array<i32>} : memref<8x256xf32, #tpu.memory_space<vmem>>, vector<8x256xf32>,
    %c0_i32_8 = arith.constant 0 : i32
    %9 = arith.cmpi eq, %arg2, %c0_i32_8 : i32
    %10 = arith.extui %9 : i1 to i32
    %c0_i32_9 = arith.constant 0 : i32
    %11 = arith.cmpi ne, %10, %c0_i32_9 : i32
    scf.if %11 {
      %c0_10 = arith.constant 0 : index
      %c0_11 = arith.constant 0 : index
      %12 = vector.load %arg7[%c0_10, %c0_11] : memref<8x256xf32, #tpu.memory_space<vmem>>, vector<8x256xf32>
      %c0_12 = arith.constant 0 : index
      %c0_13 = arith.constant 0 : index
      %13 = vector.load %arg5[%c0_12, %c0_13] : memref<1x256xf32, #tpu.memory_space<vmem>>, vector<1x256xf32>
      %14 = vector.broadcast %13 : vector<1x256xf32> to vector<8x256xf32>
      %15 = arith.addf %12, %14 : vector<8x256xf32>
      %c0_14 = arith.constant 0 : index
      %c0_15 = arith.constant 0 : index
      %16 = vector.load %arg6[%c0_14, %c0_15] : memref<8x256xf32, #tpu.memory_space<vmem>>, vector<8x256xf32>
      tpu.vector_store %arg6[%c0_14, %c0_15], %15 {strides = array<i32>} : memref<8x256xf32, #tpu.memory_space<vmem>>, vector<8x256xf32>,
    } else {
    }
    return
  }
  func.func @transform_0(%arg0: i32, %arg1: i32, %arg2: i32) -> (i32, i32) {
    %c0_i32 = arith.constant 0 : i32
    return %arg0, %arg2 : i32, i32
  }
  func.func @transform_1(%arg0: i32, %arg1: i32, %arg2: i32) -> (i32, i32) {
    %c0_i32 = arith.constant 0 : i32
    return %arg2, %arg1 : i32, i32
  }
  func.func @transform_2(%arg0: i32, %arg1: i32, %arg2: i32) -> (i32, i32) {
    %c0_i32 = arith.constant 0 : i32
    %c0_i32_0 = arith.constant 0 : i32
    return %c0_i32, %arg1 : i32, i32
  }
  func.func @transform_3(%arg0: i32, %arg1: i32, %arg2: i32) -> (i32, i32) {
    %c0_i32 = arith.constant 0 : i32
    return %arg0, %arg1 : i32, i32
  }
}

module attributes {stable_mosaic.version = 11 : i64} {
  func.func @_gru_rec_kernel(%arg0: i32, %arg1: memref<2xi32, #tpu.memory_space<smem>>, %arg2: memref<1x4x8x384xf32, #tpu.memory_space<vmem>>, %arg3: memref<1x128x384xf32, #tpu.memory_space<vmem>>, %arg4: memref<1x1x384xf32, #tpu.memory_space<vmem>>, %arg5: memref<1x4x8x128xf32, #tpu.memory_space<vmem>>, %arg6: memref<8x128xf32, #tpu.memory_space<vmem>>) attributes {dimension_semantics = [#tpu.dimension_semantics<parallel>], iteration_bounds = array<i64: 2>, scalar_prefetch = 1 : i64, scratch_operands = 1 : i64, tpu.core_type = #tpu.core_type<tc>, window_params = [{transform_indices = @transform_0, window_bounds = array<i64: 1, 4, 8, 384>}, {transform_indices = @transform_1, window_bounds = array<i64: 1, 128, 384>}, {transform_indices = @transform_2, window_bounds = array<i64: 1, 1, 384>}, {transform_indices = @transform_3, window_bounds = array<i64: 1, 4, 8, 128>}]} {
    %0 = arith.index_cast %arg0 : i32 to index
    %1 = memref.load %arg1[%0] : memref<2xi32, #tpu.memory_space<smem>>
    %cst = arith.constant 0.000000e+00 : f32
    %2 = vector.broadcast %cst : f32 to vector<8x128xf32>
    %c0 = arith.constant 0 : index
    %c0_0 = arith.constant 0 : index
    %3 = vector.load %arg6[%c0, %c0_0] : memref<8x128xf32, #tpu.memory_space<vmem>>, vector<8x128xf32>
    tpu.vector_store %arg6[%c0, %c0_0], %2 {strides = array<i32>} : memref<8x128xf32, #tpu.memory_space<vmem>>, vector<8x128xf32>,
    %c0_1 = arith.constant 0 : index
    %c0_2 = arith.constant 0 : index
    %c0_3 = arith.constant 0 : index
    %4 = vector.load %arg3[%c0_1, %c0_2, %c0_3] : memref<1x128x384xf32, #tpu.memory_space<vmem>>, vector<1x128x384xf32>
    %5 = vector.shape_cast %4 : vector<1x128x384xf32> to vector<128x384xf32>
    %c0_4 = arith.constant 0 : index
    %c0_5 = arith.constant 0 : index
    %c0_6 = arith.constant 0 : index
    %6 = vector.load %arg4[%c0_4, %c0_5, %c0_6] : memref<1x1x384xf32, #tpu.memory_space<vmem>>, vector<1x1x384xf32>
    %7 = vector.shape_cast %6 : vector<1x1x384xf32> to vector<1x384xf32>
    %c0_i32 = arith.constant 0 : i32
    %c4_i32 = arith.constant 4 : i32
    %8 = arith.addi %c0_i32, %c4_i32 : i32
    %c1_i32 = arith.constant 1 : i32
    scf.for %arg7 = %c0_i32 to %8 step %c1_i32  : i32 {
      %c2_i32 = arith.constant 2 : i32
      %9 = arith.muli %c2_i32, %arg7 : i32
      %c3_i32 = arith.constant 3 : i32
      %10 = arith.subi %c3_i32, %9 : i32
      %11 = arith.muli %1, %10 : i32
      %12 = arith.addi %arg7, %11 : i32
      %c0_8 = arith.constant 0 : index
      %13 = arith.index_cast %12 : i32 to index
      %c0_9 = arith.constant 0 : index
      %c0_10 = arith.constant 0 : index
      %14 = vector.load %arg2[%c0_8, %13, %c0_9, %c0_10] : memref<1x4x8x384xf32, #tpu.memory_space<vmem>>, vector<1x1x8x384xf32>
      %15 = vector.shape_cast %14 : vector<1x1x8x384xf32> to vector<8x384xf32>
      %c0_11 = arith.constant 0 : index
      %c0_12 = arith.constant 0 : index
      %16 = vector.load %arg6[%c0_11, %c0_12] : memref<8x128xf32, #tpu.memory_space<vmem>>, vector<8x128xf32>
      %cst_13 = arith.constant dense<0.000000e+00> : vector<8x384xf32>
      %17 = tpu.matmul %16, %5, %cst_13 {dimension_numbers = #tpu.dot_dimension_numbers<[1], [0], [0], [1], [0, 0, 1, 1], [], []>} : vector<8x128xf32>, vector<128x384xf32>, vector<8x384xf32> -> vector<8x384xf32>
      %18 = vector.broadcast %7 : vector<1x384xf32> to vector<8x384xf32>
      %19 = arith.addf %17, %18 : vector<8x384xf32>
      %20 = vector.extract_strided_slice %15 {offsets = [0, 0], sizes = [8, 128], strides = [1, 1]} : vector<8x384xf32> to vector<8x128xf32>
      %21 = vector.extract_strided_slice %19 {offsets = [0, 0], sizes = [8, 128], strides = [1, 1]} : vector<8x384xf32> to vector<8x128xf32>
      %22 = arith.addf %20, %21 : vector<8x128xf32>
      %23 = arith.negf %22 : vector<8x128xf32>
      %24 = math.exp %23 : vector<8x128xf32>
      %cst_14 = arith.constant 1.000000e+00 : f32
      %25 = vector.broadcast %cst_14 : f32 to vector<8x128xf32>
      %26 = arith.addf %25, %24 : vector<8x128xf32>
      %27 = arith.divf %25, %26 : vector<8x128xf32>
      %28 = vector.extract_strided_slice %15 {offsets = [0, 128], sizes = [8, 128], strides = [1, 1]} : vector<8x384xf32> to vector<8x128xf32>
      %29 = vector.extract_strided_slice %19 {offsets = [0, 128], sizes = [8, 128], strides = [1, 1]} : vector<8x384xf32> to vector<8x128xf32>
      %30 = arith.addf %28, %29 : vector<8x128xf32>
      %31 = arith.negf %30 : vector<8x128xf32>
      %32 = math.exp %31 : vector<8x128xf32>
      %cst_15 = arith.constant 1.000000e+00 : f32
      %33 = vector.broadcast %cst_15 : f32 to vector<8x128xf32>
      %34 = arith.addf %33, %32 : vector<8x128xf32>
      %35 = arith.divf %33, %34 : vector<8x128xf32>
      %36 = vector.extract_strided_slice %15 {offsets = [0, 256], sizes = [8, 128], strides = [1, 1]} : vector<8x384xf32> to vector<8x128xf32>
      %37 = vector.extract_strided_slice %19 {offsets = [0, 256], sizes = [8, 128], strides = [1, 1]} : vector<8x384xf32> to vector<8x128xf32>
      %38 = arith.mulf %27, %37 : vector<8x128xf32>
      %39 = arith.addf %36, %38 : vector<8x128xf32>
      %40 = math.tanh %39 : vector<8x128xf32>
      %cst_16 = arith.constant 1.000000e+00 : f32
      %41 = vector.broadcast %cst_16 : f32 to vector<8x128xf32>
      %42 = arith.subf %41, %35 : vector<8x128xf32>
      %43 = arith.mulf %42, %40 : vector<8x128xf32>
      %44 = arith.mulf %35, %16 : vector<8x128xf32>
      %45 = arith.addf %43, %44 : vector<8x128xf32>
      %c0_17 = arith.constant 0 : index
      %c0_18 = arith.constant 0 : index
      %46 = vector.load %arg6[%c0_17, %c0_18] : memref<8x128xf32, #tpu.memory_space<vmem>>, vector<8x128xf32>
      tpu.vector_store %arg6[%c0_17, %c0_18], %45 {strides = array<i32>} : memref<8x128xf32, #tpu.memory_space<vmem>>, vector<8x128xf32>,
      %c0_19 = arith.constant 0 : index
      %47 = arith.index_cast %12 : i32 to index
      %c0_20 = arith.constant 0 : index
      %c0_21 = arith.constant 0 : index
      %48 = vector.load %arg5[%c0_19, %47, %c0_20, %c0_21] : memref<1x4x8x128xf32, #tpu.memory_space<vmem>>, vector<1x1x8x128xf32>
      %49 = vector.shape_cast %48 : vector<1x1x8x128xf32> to vector<8x128xf32>
      %50 = vector.shape_cast %45 : vector<8x128xf32> to vector<1x1x8x128xf32>
      tpu.vector_store %arg5[%c0_19, %47, %c0_20, %c0_21], %50 {strides = array<i32>} : memref<1x4x8x128xf32, #tpu.memory_space<vmem>>, vector<1x1x8x128xf32>,
    }
    %c4_i32_7 = arith.constant 4 : i32
    return
  }
  func.func @transform_0(%arg0: i32, %arg1: memref<2xi32, #tpu.memory_space<smem>>) -> (i32, i32, i32, i32) {
    %c0_i32 = arith.constant 0 : i32
    %c0_i32_0 = arith.constant 0 : i32
    %c0_i32_1 = arith.constant 0 : i32
    %c0_i32_2 = arith.constant 0 : i32
    return %arg0, %c0_i32, %c0_i32_0, %c0_i32_1 : i32, i32, i32, i32
  }
  func.func @transform_1(%arg0: i32, %arg1: memref<2xi32, #tpu.memory_space<smem>>) -> (i32, i32, i32) {
    %c0_i32 = arith.constant 0 : i32
    %c0_i32_0 = arith.constant 0 : i32
    %c0_i32_1 = arith.constant 0 : i32
    return %arg0, %c0_i32, %c0_i32_0 : i32, i32, i32
  }
  func.func @transform_2(%arg0: i32, %arg1: memref<2xi32, #tpu.memory_space<smem>>) -> (i32, i32, i32) {
    %c0_i32 = arith.constant 0 : i32
    %c0_i32_0 = arith.constant 0 : i32
    %c0_i32_1 = arith.constant 0 : i32
    return %arg0, %c0_i32, %c0_i32_0 : i32, i32, i32
  }
  func.func @transform_3(%arg0: i32, %arg1: memref<2xi32, #tpu.memory_space<smem>>) -> (i32, i32, i32, i32) {
    %c0_i32 = arith.constant 0 : i32
    %c0_i32_0 = arith.constant 0 : i32
    %c0_i32_1 = arith.constant 0 : i32
    %c0_i32_2 = arith.constant 0 : i32
    return %arg0, %c0_i32, %c0_i32_0, %c0_i32_1 : i32, i32, i32, i32
  }
}

module attributes {stable_mosaic.version = 11 : i64} {
  func.func @_matmul_bias_kernel(%arg0: i32, %arg1: i32, %arg2: i32, %arg3: memref<8x128xbf16, #tpu.memory_space<vmem>>, %arg4: memref<128x128xbf16, #tpu.memory_space<vmem>>, %arg5: memref<1x128xf32, #tpu.memory_space<vmem>>, %arg6: memref<8x128xf32, #tpu.memory_space<vmem>>, %arg7: memref<8x128xf32, #tpu.memory_space<vmem>>) attributes {dimension_semantics = [#tpu.dimension_semantics<parallel>, #tpu.dimension_semantics<parallel>, #tpu.dimension_semantics<arbitrary>], iteration_bounds = array<i64: 1, 1, 1>, scalar_prefetch = 0 : i64, scratch_operands = 1 : i64, tpu.core_type = #tpu.core_type<tc>, window_params = [{transform_indices = @transform_0, window_bounds = array<i64: 8, 128>}, {transform_indices = @transform_1, window_bounds = array<i64: 128, 128>}, {transform_indices = @transform_2, window_bounds = array<i64: 1, 128>}, {transform_indices = @transform_3, window_bounds = array<i64: 8, 128>}]} {
    %c0_i32 = arith.constant 0 : i32
    %0 = arith.cmpi eq, %arg2, %c0_i32 : i32
    %1 = arith.extui %0 : i1 to i32
    %c0_i32_0 = arith.constant 0 : i32
    %2 = arith.cmpi ne, %1, %c0_i32_0 : i32
    scf.if %2 {
      %cst_10 = arith.constant 0.000000e+00 : f32
      %12 = vector.broadcast %cst_10 : f32 to vector<8x128xf32>
      %c0_11 = arith.constant 0 : index
      %c0_12 = arith.constant 0 : index
      %13 = vector.load %arg7[%c0_11, %c0_12] : memref<8x128xf32, #tpu.memory_space<vmem>>, vector<8x128xf32>
      tpu.vector_store %arg7[%c0_11, %c0_12], %12 {strides = array<i32>} : memref<8x128xf32, #tpu.memory_space<vmem>>, vector<8x128xf32>,
    } else {
    }
    %c0 = arith.constant 0 : index
    %c0_1 = arith.constant 0 : index
    %3 = vector.load %arg7[%c0, %c0_1] : memref<8x128xf32, #tpu.memory_space<vmem>>, vector<8x128xf32>
    %c0_2 = arith.constant 0 : index
    %c0_3 = arith.constant 0 : index
    %4 = vector.load %arg3[%c0_2, %c0_3] : memref<8x128xbf16, #tpu.memory_space<vmem>>, vector<8x128xbf16>
    %c0_4 = arith.constant 0 : index
    %c0_5 = arith.constant 0 : index
    %5 = vector.load %arg4[%c0_4, %c0_5] : memref<128x128xbf16, #tpu.memory_space<vmem>>, vector<128x128xbf16>
    %cst = arith.constant dense<0.000000e+00> : vector<8x128xf32>
    %6 = tpu.matmul %4, %5, %cst {dimension_numbers = #tpu.dot_dimension_numbers<[1], [0], [0], [1], [0, 0, 1, 1], [], []>} : vector<8x128xbf16>, vector<128x128xbf16>, vector<8x128xf32> -> vector<8x128xf32>
    %7 = arith.addf %3, %6 : vector<8x128xf32>
    %c0_6 = arith.constant 0 : index
    %c0_7 = arith.constant 0 : index
    %8 = vector.load %arg7[%c0_6, %c0_7] : memref<8x128xf32, #tpu.memory_space<vmem>>, vector<8x128xf32>
    tpu.vector_store %arg7[%c0_6, %c0_7], %7 {strides = array<i32>} : memref<8x128xf32, #tpu.memory_space<vmem>>, vector<8x128xf32>,
    %c0_i32_8 = arith.constant 0 : i32
    %9 = arith.cmpi eq, %arg2, %c0_i32_8 : i32
    %10 = arith.extui %9 : i1 to i32
    %c0_i32_9 = arith.constant 0 : i32
    %11 = arith.cmpi ne, %10, %c0_i32_9 : i32
    scf.if %11 {
      %c0_10 = arith.constant 0 : index
      %c0_11 = arith.constant 0 : index
      %12 = vector.load %arg7[%c0_10, %c0_11] : memref<8x128xf32, #tpu.memory_space<vmem>>, vector<8x128xf32>
      %c0_12 = arith.constant 0 : index
      %c0_13 = arith.constant 0 : index
      %13 = vector.load %arg5[%c0_12, %c0_13] : memref<1x128xf32, #tpu.memory_space<vmem>>, vector<1x128xf32>
      %14 = vector.broadcast %13 : vector<1x128xf32> to vector<8x128xf32>
      %15 = arith.addf %12, %14 : vector<8x128xf32>
      %c0_14 = arith.constant 0 : index
      %c0_15 = arith.constant 0 : index
      %16 = vector.load %arg6[%c0_14, %c0_15] : memref<8x128xf32, #tpu.memory_space<vmem>>, vector<8x128xf32>
      tpu.vector_store %arg6[%c0_14, %c0_15], %15 {strides = array<i32>} : memref<8x128xf32, #tpu.memory_space<vmem>>, vector<8x128xf32>,
    } else {
    }
    return
  }
  func.func @transform_0(%arg0: i32, %arg1: i32, %arg2: i32) -> (i32, i32) {
    %c0_i32 = arith.constant 0 : i32
    return %arg0, %arg2 : i32, i32
  }
  func.func @transform_1(%arg0: i32, %arg1: i32, %arg2: i32) -> (i32, i32) {
    %c0_i32 = arith.constant 0 : i32
    return %arg2, %arg1 : i32, i32
  }
  func.func @transform_2(%arg0: i32, %arg1: i32, %arg2: i32) -> (i32, i32) {
    %c0_i32 = arith.constant 0 : i32
    %c0_i32_0 = arith.constant 0 : i32
    return %c0_i32, %arg1 : i32, i32
  }
  func.func @transform_3(%arg0: i32, %arg1: i32, %arg2: i32) -> (i32, i32) {
    %c0_i32 = arith.constant 0 : i32
    return %arg0, %arg1 : i32, i32
  }
}

module attributes {stable_mosaic.version = 11 : i64} {
  func.func @_leaky_kernel(%arg0: i32, %arg1: memref<8x32xf32, #tpu.memory_space<vmem>>, %arg2: memref<8x32xf32, #tpu.memory_space<vmem>>) attributes {dimension_semantics = [#tpu.dimension_semantics<parallel>], iteration_bounds = array<i64: 1>, scalar_prefetch = 0 : i64, scratch_operands = 0 : i64, tpu.core_type = #tpu.core_type<tc>, window_params = [{transform_indices = @transform_0, window_bounds = array<i64: 8, 32>}, {transform_indices = @transform_1, window_bounds = array<i64: 8, 32>}]} {
    %c0 = arith.constant 0 : index
    %c0_0 = arith.constant 0 : index
    %0 = vector.load %arg1[%c0, %c0_0] : memref<8x32xf32, #tpu.memory_space<vmem>>, vector<8x32xf32>
    %cst = arith.constant 0.000000e+00 : f32
    %1 = vector.broadcast %cst : f32 to vector<8x32xf32>
    %2 = arith.cmpf oge, %0, %1 : vector<8x32xf32>
    %cst_1 = arith.constant 2.000000e-01 : f32
    %3 = vector.broadcast %cst_1 : f32 to vector<8x32xf32>
    %4 = arith.mulf %3, %0 : vector<8x32xf32>
    %5 = arith.select %2, %0, %4 : vector<8x32xi1>, vector<8x32xf32>
    %c0_2 = arith.constant 0 : index
    %c0_3 = arith.constant 0 : index
    %6 = vector.load %arg2[%c0_2, %c0_3] : memref<8x32xf32, #tpu.memory_space<vmem>>, vector<8x32xf32>
    tpu.vector_store %arg2[%c0_2, %c0_3], %5 {strides = array<i32>} : memref<8x32xf32, #tpu.memory_space<vmem>>, vector<8x32xf32>,
    return
  }
  func.func @transform_0(%arg0: i32) -> (i32, i32) {
    %c0_i32 = arith.constant 0 : i32
    %c0_i32_0 = arith.constant 0 : i32
    return %arg0, %c0_i32 : i32, i32
  }
  func.func @transform_1(%arg0: i32) -> (i32, i32) {
    %c0_i32 = arith.constant 0 : i32
    %c0_i32_0 = arith.constant 0 : i32
    return %arg0, %c0_i32 : i32, i32
  }
}

</mosaic_0001>

<llo_original>
// kernel: variational_encoder_forward.35
$region0: #{variational_encoder_forward.35}
  #allocation0 [shape = 'u32[]', space=smem, size = 0x4, offset = 0x4, fixed_abs, tag = 'smem constant byte address 0x4 - core index']
  #allocation1 [shape = 'u32[144,128]{1,0:T(1,128)}', space=vmem, size = 0x12000, scoped, tag = 'internal scratch']
  #allocation2 [shape = 'f32[64,128]{1,0:T(8,128)}', space=vmem, size = 0x8000, scoped, tag = 'scratch operand']
  %s0 = inlined_call_operand.vmem [shape: bf16[64,128], index: 0, kind: input, shape index: {}]
  %s1 = inlined_call_operand.vmem [shape: bf16[128,128], index: 1, kind: input, shape index: {}]
  %s2 = inlined_call_operand.vmem [shape: f32[1,128], index: 2, kind: input, shape index: {}]
  %s3 = inlined_call_operand.vmem [shape: f32[64,128], index: 3, kind: output, shape index: {}]
  %s4 = sld [smem:[#allocation0]]
  $region30: #{variational_encoder_forward.35} parent=0
    _
  %s6 = ssub.s32 1, %s4
  %s7 = scalar_select 0, %s6, %s4
  // Predicated region
  $region2: #{variational_encoder_forward.35} parent=0 // pred_check
    _
  $region3: #{variational_encoder_forward.35} parent=0 // pred_check_branch
    %9 = sbr.rel (0) target = $region5
  $region4: #{variational_encoder_forward.35} parent=0 // pred_region
    _
  $region5: #{variational_encoder_forward.35} parent=0 // pred_fallthru
    _
  // Predicated region
  $region6: #{variational_encoder_forward.35} parent=0 // pred_check
    _
  $region7: #{variational_encoder_forward.35} parent=0 // pred_check_branch
    %11 = sbr.rel (0) target = $region9
  $region8: #{variational_encoder_forward.35} parent=0 // pred_region
    _
  $region9: #{variational_encoder_forward.35} parent=0 // pred_fallthru
    _
  // Predicated region
  $region10: #{variational_encoder_forward.35} parent=0 // pred_check
    _
  $region11: #{variational_encoder_forward.35} parent=0 // pred_check_branch
    %13 = sbr.rel (0) target = $region13
  $region12: #{variational_encoder_forward.35} parent=0 // pred_region
    _
  $region13: #{variational_encoder_forward.35} parent=0 // pred_fallthru
    _
  %p15 = scmp.eq.s32.totalorder 0, 0
  // Predicated region
  $region14: #{variational_encoder_forward.35} parent=0 // pred_check
    %p16 = pneg %p15
  $region15: #{variational_encoder_forward.35} parent=0 // pred_check_branch
    %18 = sbr.rel (%p16) target = $region17
  $region16: #{variational_encoder_forward.35} parent=0 // pred_region
    %19 = vst [vmem:[#allocation2] sm:$0xff] 0.0
    %20 = vst [vmem:[#allocation2 + $0x8] sm:$0xff] 0.0
    %21 = vst [vmem:[#allocation2 + $0x10] sm:$0xff] 0.0
    %22 = vst [vmem:[#allocation2 + $0x18] sm:$0xff] 0.0
    %23 = vst [vmem:[#allocation2 + $0x20] sm:$0xff] 0.0
    %24 = vst [vmem:[#allocation2 + $0x28] sm:$0xff] 0.0
    %25 = vst [vmem:[#allocation2 + $0x30] sm:$0xff] 0.0
    %26 = vst [vmem:[#allocation2 + $0x38] sm:$0xff] 0.0
  $region17: #{variational_encoder_forward.35} parent=0 // pred_fallthru
    _
  %v27 = vld [vmem:[#allocation2] sm:$0xff]
  %v28 = vld [vmem:[#allocation2 + $0x8] sm:$0xff]
  %v29 = vld [vmem:[#allocation2 + $0x10] sm:$0xff]
  %v30 = vld [vmem:[#allocation2 + $0x18] sm:$0xff]
  %v31 = vld [vmem:[#allocation2 + $0x20] sm:$0xff]
  %v32 = vld [vmem:[#allocation2 + $0x28] sm:$0xff]
  %v33 = vld [vmem:[#allocation2 + $0x30] sm:$0xff]
  %v34 = vld [vmem:[#allocation2 + $0x38] sm:$0xff]
  %v35 = vld [vmem:[%s0] sm:$0xf]
  %v36 = vld [vmem:[%s0 + $0x4] sm:$0xf]
  %v37 = vld [vmem:[%s0 + $0x8] sm:$0xf]
  %v38 = vld [vmem:[%s0 + $0xc] sm:$0xf]
  %v39 = vld [vmem:[%s0 + $0x10] sm:$0xf]
  %v40 = vld [vmem:[%s0 + $0x14] sm:$0xf]
  %v41 = vld [vmem:[%s0 + $0x18] sm:$0xf]
  %v42 = vld [vmem:[%s0 + $0x1c] sm:$0xf]
  %v43 = vld [vmem:[%s1] sm:$0xf]
  %v44 = vld [vmem:[%s1 + $0x4] sm:$0xf]
  %v45 = vld [vmem:[%s1 + $0x8] sm:$0xf]
  %v46 = vld [vmem:[%s1 + $0xc] sm:$0xf]
  %v47 = vld [vmem:[%s1 + $0x10] sm:$0xf]
  %v48 = vld [vmem:[%s1 + $0x14] sm:$0xf]
  %v49 = vld [vmem:[%s1 + $0x18] sm:$0xf]
  %v50 = vld [vmem:[%s1 + $0x1c] sm:$0xf]
  %v51 = vld [vmem:[%s1 + $0x20] sm:$0xf]
  %v52 = vld [vmem:[%s1 + $0x24] sm:$0xf]
  %v53 = vld [vmem:[%s1 + $0x28] sm:$0xf]
  %v54 = vld [vmem:[%s1 + $0x2c] sm:$0xf]
  %v55 = vld [vmem:[%s1 + $0x30] sm:$0xf]
  %v56 = vld [vmem:[%s1 + $0x34] sm:$0xf]
  %v57 = vld [vmem:[%s1 + $0x38] sm:$0xf]
  %v58 = vld [vmem:[%s1 + $0x3c] sm:$0xf]
  %v67 = vunpack.c.l.b16 %v35
  %v68 = vunpack.c.l.b16 %v36
  %v69 = vunpack.c.l.b16 %v37
  %v70 = vunpack.c.l.b16 %v38
  %v71 = vunpack.c.l.b16 %v39
  %v72 = vunpack.c.l.b16 %v40
  %v73 = vunpack.c.l.b16 %v41
  %v74 = vunpack.c.l.b16 %v42
  %v75 = vpack.c.b16 %v68, %v67
  %v76 = vpack.c.b16 %v70, %v69
  %v77 = vpack.c.b16 %v72, %v71
  %v78 = vpack.c.b16 %v74, %v73
  %v99 = vunpack.c.l.b16 %v43
  %v100 = vunpack.c.l.b16 %v44
  %v101 = vunpack.c.l.b16 %v45
  %v102 = vunpack.c.l.b16 %v46
  %v103 = vunpack.c.l.b16 %v47
  %v104 = vunpack.c.l.b16 %v48
  %v105 = vunpack.c.l.b16 %v49
  %v106 = vunpack.c.l.b16 %v50
  %v107 = vunpack.c.l.b16 %v51
  %v108 = vunpack.c.l.b16 %v52
  %v109 = vunpack.c.l.b16 %v53
  %v110 = vunpack.c.l.b16 %v54
  %v111 = vunpack.c.l.b16 %v55
  %v112 = vunpack.c.l.b16 %v56
  %v113 = vunpack.c.l.b16 %v57
  %v114 = vunpack.c.l.b16 %v58
  %v115 = vpack.c.b16 %v100, %v99
  %v116 = vpack.c.b16 %v102, %v101
  %v117 = vpack.c.b16 %v104, %v103
  %v118 = vpack.c.b16 %v106, %v105
  %v119 = vpack.c.b16 %v108, %v107
  %v120 = vpack.c.b16 %v110, %v109
  %v121 = vpack.c.b16 %v112, %v111
  %v122 = vpack.c.b16 %v114, %v113
  %131 = vmatprep.subr.bf16.mxu0 0
  %132 = vmatpush1.bf16.msra.mxu0 %v122
  %133 = vmatprep.subr.bf16.mxu0 0
  %134 = vmatpush1.bf16.msra.mxu0 %v121
  %135 = vmatprep.subr.bf16.mxu0 0
  %136 = vmatpush1.bf16.msra.mxu0 %v120
  %137 = vmatprep.subr.bf16.mxu0 0
  %138 = vmatpush1.bf16.msra.mxu0 %v119
  %139 = vmatprep.subr.bf16.mxu0 0
  %140 = vmatpush1.bf16.msra.mxu0 %v118
  %141 = vmatprep.subr.bf16.mxu0 0
  %142 = vmatpush1.bf16.msra.mxu0 %v117
  %143 = vmatprep.subr.bf16.mxu0 0
  %144 = vmatpush1.bf16.msra.mxu0 %v116
  %145 = vmatprep.subr.bf16.mxu0 0
  %146 = vmatpush1.bf16.msra.mxu0 %v115
  %147 = vmatprep.subr.bf16.mxu0 0
  %148 = vmatpush2.bf16.msra.mxu0 0
  %149 = vmatprep.subr.bf16.mxu0 0
  %150 = vmatpush2.bf16.msra.mxu0 0
  %151 = vmatprep.subr.bf16.mxu0 0
  %152 = vmatpush2.bf16.msra.mxu0 0
  %153 = vmatprep.subr.bf16.mxu0 0
  %154 = vmatpush2.bf16.msra.mxu0 0
  %155 = vmatprep.subr.bf16.mxu0 0
  %156 = vmatpush2.bf16.msra.mxu0 0
  %157 = vmatprep.subr.bf16.mxu0 0
  %158 = vmatpush2.bf16.msra.mxu0 0
  %159 = vmatprep.subr.bf16.mxu0 0
  %160 = vmatpush2.bf16.msra.mxu0 0
  %161 = vmatprep.subr.bf16.mxu0 0
  %162 = vmatpush2.bf16.msra.mxu0 0
  %163 = vmatprep.mubr.bf16.mxu0 0
  %164 = vmatmul.mubr.bf16.gmra.mxu0 %v75
  %v165 = vpop.f32.mrf.mxu0
  %v166 = vadd.f32 0.0, %v165
  %v167 = vpop.f32.mrf.mxu0
  %v168 = vpop.f32.mrf.mxu0
  %v169 = vadd.f32 0.0, %v168
  %v170 = vpop.f32.mrf.mxu0
  %171 = vmatprep.mubr.bf16.mxu0 0
  %172 = vmatmul.mubr.bf16.gmra.mxu0 %v76
  %v173 = vpop.f32.mrf.mxu0
  %v174 = vadd.f32 0.0, %v173
  %v175 = vpop.f32.mrf.mxu0
  %v176 = vpop.f32.mrf.mxu0
  %v177 = vadd.f32 0.0, %v176
  %v178 = vpop.f32.mrf.mxu0
  %179 = vmatprep.mubr.bf16.mxu0 0
  %180 = vmatmul.mubr.bf16.gmra.mxu0 %v77
  %v181 = vpop.f32.mrf.mxu0
  %v182 = vadd.f32 0.0, %v181
  %v183 = vpop.f32.mrf.mxu0
  %v184 = vpop.f32.mrf.mxu0
  %v185 = vadd.f32 0.0, %v184
  %v186 = vpop.f32.mrf.mxu0
  %187 = vmatprep.mubr.bf16.mxu0 0
  %188 = vmatmul.mubr.bf16.gmra.mxu0 %v78
  %v189 = vpop.f32.mrf.mxu0
  %v190 = vadd.f32 0.0, %v189
  %v191 = vpop.f32.mrf.mxu0
  %v192 = vpop.f32.mrf.mxu0
  %v193 = vadd.f32 0.0, %v192
  %v194 = vpop.f32.mrf.mxu0
  %195 = vdwg.mxu0
  %v196 = vadd.f32 %v27, %v166
  %v197 = vadd.f32 %v28, %v169
  %v198 = vadd.f32 %v29, %v174
  %v199 = vadd.f32 %v30, %v177
  %v200 = vadd.f32 %v31, %v182
  %v201 = vadd.f32 %v32, %v185
  %v202 = vadd.f32 %v33, %v190
  %v203 = vadd.f32 %v34, %v193
  %204 = vst [vmem:[#allocation2] sm:$0xff] %v196
  %205 = vst [vmem:[#allocation2 + $0x8] sm:$0xff] %v197
  %206 = vst [vmem:[#allocation2 + $0x10] sm:$0xff] %v198
  %207 = vst [vmem:[#allocation2 + $0x18] sm:$0xff] %v199
  %208 = vst [vmem:[#allocation2 + $0x20] sm:$0xff] %v200
  %209 = vst [vmem:[#allocation2 + $0x28] sm:$0xff] %v201
  %210 = vst [vmem:[#allocation2 + $0x30] sm:$0xff] %v202
  %211 = vst [vmem:[#allocation2 + $0x38] sm:$0xff] %v203
  // Predicated region
  $region18: #{variational_encoder_forward.35} parent=0 // pred_check
    %p212 = pneg %p15
  $region19: #{variational_encoder_forward.35} parent=0 // pred_check_branch
    %214 = sbr.rel (%p212) target = $region21
  $region20: #{variational_encoder_forward.35} parent=0 // pred_region
    %v215 = vld [vmem:[#allocation2] sm:$0xff]
    %v216 = vld [vmem:[#allocation2 + $0x8] sm:$0xff]
    %v217 = vld [vmem:[#allocation2 + $0x10] sm:$0xff]
    %v218 = vld [vmem:[#allocation2 + $0x18] sm:$0xff]
    %v219 = vld [vmem:[#allocation2 + $0x20] sm:$0xff]
    %v220 = vld [vmem:[#allocation2 + $0x28] sm:$0xff]
    %v221 = vld [vmem:[#allocation2 + $0x30] sm:$0xff]
    %v222 = vld [vmem:[#allocation2 + $0x38] sm:$0xff]
    %v223 = vld [vmem:[%s2] sm:$0x1]
    %v225 = vlaneseq
    %v226 = vshrl.u32 %v225, 7
    %v227 = vsub.s32 0, %v226
    %v228 = vrot.slane %v223, %v227
    %v230 = vadd.f32 %v215, %v228
    %v231 = vadd.f32 %v216, %v228
    %v232 = vadd.f32 %v217, %v228
    %v233 = vadd.f32 %v218, %v228
    %v234 = vadd.f32 %v219, %v228
    %v235 = vadd.f32 %v220, %v228
    %v236 = vadd.f32 %v221, %v228
    %v237 = vadd.f32 %v222, %v228
    %vm238 = vcmp.ge.f32.partialorder %v230, 0.0
    %vm239 = vcmp.ge.f32.partialorder %v231, 0.0
    %vm240 = vcmp.ge.f32.partialorder %v232, 0.0
    %vm241 = vcmp.ge.f32.partialorder %v233, 0.0
    %vm242 = vcmp.ge.f32.partialorder %v234, 0.0
    %vm243 = vcmp.ge.f32.partialorder %v235, 0.0
    %vm244 = vcmp.ge.f32.partialorder %v236, 0.0
    %vm245 = vcmp.ge.f32.partialorder %v237, 0.0
    %v246 = vmul.f32 %v230, 0.2
    %v247 = vmul.f32 %v231, 0.2
    %v248 = vmul.f32 %v232, 0.2
    %v249 = vmul.f32 %v233, 0.2
    %v250 = vmul.f32 %v234, 0.2
    %v251 = vmul.f32 %v235, 0.2
    %v252 = vmul.f32 %v236, 0.2
    %v253 = vmul.f32 %v237, 0.2
    %v254 = vsel %vm238, %v230, %v246
    %v255 = vsel %vm239, %v231, %v247
    %v256 = vsel %vm240, %v232, %v248
    %v257 = vsel %vm241, %v233, %v249
    %v258 = vsel %vm242, %v234, %v250
    %v259 = vsel %vm243, %v235, %v251
    %v260 = vsel %vm244, %v236, %v252
    %v261 = vsel %vm245, %v237, %v253
    %262 = vst [vmem:[%s3] sm:$0xff] %v254
    %263 = vst [vmem:[%s3 + $0x8] sm:$0xff] %v255
    %264 = vst [vmem:[%s3 + $0x10] sm:$0xff] %v256
    %265 = vst [vmem:[%s3 + $0x18] sm:$0xff] %v257
    %266 = vst [vmem:[%s3 + $0x20] sm:$0xff] %v258
    %267 = vst [vmem:[%s3 + $0x28] sm:$0xff] %v259
    %268 = vst [vmem:[%s3 + $0x30] sm:$0xff] %v260
    %269 = vst [vmem:[%s3 + $0x38] sm:$0xff] %v261
  $region21: #{variational_encoder_forward.35} parent=0 // pred_fallthru
    _
  // Predicated region
  $region22: #{variational_encoder_forward.35} parent=0 // pred_check
    _
  $region23: #{variational_encoder_forward.35} parent=0 // pred_check_branch
    %271 = sbr.rel (0) target = $region25
  $region24: #{variational_encoder_forward.35} parent=0 // pred_region
    _
  $region25: #{variational_encoder_forward.35} parent=0 // pred_fallthru
    _
  // Predicated region
  $region26: #{variational_encoder_forward.35} parent=0 // pred_check
    _
  $region27: #{variational_encoder_forward.35} parent=0 // pred_check_branch
    %273 = sbr.rel (0) target = $region29
  $region28: #{variational_encoder_forward.35} parent=0 // pred_region
    _
  $region29: #{variational_encoder_forward.35} parent=0 // pred_fallthru
    _

// kernel: variational_encoder_forward.38
$region0: #{variational_encoder_forward.38}
  #allocation0 [shape = 'u32[]', space=smem, size = 0x4, offset = 0x4, fixed_abs, tag = 'smem constant byte address 0x4 - core index']
  #allocation1 [shape = 'u32[144,128]{1,0:T(1,128)}', space=vmem, size = 0x12000, scoped, tag = 'internal scratch']
  %s0 = inlined_call_operand.vmem [shape: f32[64,12], index: 0, kind: input, shape index: {}]
  %s1 = inlined_call_operand.vmem [shape: f32[64,12], index: 1, kind: output, shape index: {}]
  %s2 = sld [smem:[#allocation0]]
  $region14: #{variational_encoder_forward.38} parent=0
    _
  %s4 = ssub.s32 1, %s2
  %s5 = scalar_select 0, %s4, %s2
  // Predicated region
  $region2: #{variational_encoder_forward.38} parent=0 // pred_check
    _
  $region3: #{variational_encoder_forward.38} parent=0 // pred_check_branch
    %7 = sbr.rel (0) target = $region5
  $region4: #{variational_encoder_forward.38} parent=0 // pred_region
    _
  $region5: #{variational_encoder_forward.38} parent=0 // pred_fallthru
    _
  %v8 = vld [vmem:[%s0] sm:$0xff]
  %v9 = vld [vmem:[%s0 + $0x8] sm:$0xff]
  %v10 = vld [vmem:[%s0 + $0x10] sm:$0xff]
  %v11 = vld [vmem:[%s0 + $0x18] sm:$0xff]
  %v12 = vld [vmem:[%s0 + $0x20] sm:$0xff]
  %v13 = vld [vmem:[%s0 + $0x28] sm:$0xff]
  %v14 = vld [vmem:[%s0 + $0x30] sm:$0xff]
  %v15 = vld [vmem:[%s0 + $0x38] sm:$0xff]
  %vm16 = vcmp.ge.f32.partialorder %v8, 0.0
  %vm17 = vcmp.ge.f32.partialorder %v9, 0.0
  %vm18 = vcmp.ge.f32.partialorder %v10, 0.0
  %vm19 = vcmp.ge.f32.partialorder %v11, 0.0
  %vm20 = vcmp.ge.f32.partialorder %v12, 0.0
  %vm21 = vcmp.ge.f32.partialorder %v13, 0.0
  %vm22 = vcmp.ge.f32.partialorder %v14, 0.0
  %vm23 = vcmp.ge.f32.partialorder %v15, 0.0
  %v24 = vmul.f32 %v8, 0.2
  %v25 = vmul.f32 %v9, 0.2
  %v26 = vmul.f32 %v10, 0.2
  %v27 = vmul.f32 %v11, 0.2
  %v28 = vmul.f32 %v12, 0.2
  %v29 = vmul.f32 %v13, 0.2
  %v30 = vmul.f32 %v14, 0.2
  %v31 = vmul.f32 %v15, 0.2
  %v32 = vsel %vm16, %v8, %v24
  %v33 = vsel %vm17, %v9, %v25
  %v34 = vsel %vm18, %v10, %v26
  %v35 = vsel %vm19, %v11, %v27
  %v36 = vsel %vm20, %v12, %v28
  %v37 = vsel %vm21, %v13, %v29
  %v38 = vsel %vm22, %v14, %v30
  %v39 = vsel %vm23, %v15, %v31
  %vm40 = vcmask 97280
  %41 = vst.msk [vmem:[%s1] sm:$0xff] %vm40, %v32
  %42 = vst.msk [vmem:[%s1 + $0x8] sm:$0xff] %vm40, %v33
  %43 = vst.msk [vmem:[%s1 + $0x10] sm:$0xff] %vm40, %v34
  %44 = vst.msk [vmem:[%s1 + $0x18] sm:$0xff] %vm40, %v35
  %45 = vst.msk [vmem:[%s1 + $0x20] sm:$0xff] %vm40, %v36
  %46 = vst.msk [vmem:[%s1 + $0x28] sm:$0xff] %vm40, %v37
  %47 = vst.msk [vmem:[%s1 + $0x30] sm:$0xff] %vm40, %v38
  %48 = vst.msk [vmem:[%s1 + $0x38] sm:$0xff] %vm40, %v39
  // Predicated region
  $region6: #{variational_encoder_forward.38} parent=0 // pred_check
    _
  $region7: #{variational_encoder_forward.38} parent=0 // pred_check_branch
    %50 = sbr.rel (0) target = $region9
  $region8: #{variational_encoder_forward.38} parent=0 // pred_region
    _
  $region9: #{variational_encoder_forward.38} parent=0 // pred_fallthru
    _
  // Predicated region
  $region10: #{variational_encoder_forward.38} parent=0 // pred_check
    _
  $region11: #{variational_encoder_forward.38} parent=0 // pred_check_branch
    %52 = sbr.rel (0) target = $region13
  $region12: #{variational_encoder_forward.38} parent=0 // pred_region
    _
  $region13: #{variational_encoder_forward.38} parent=0 // pred_fallthru
    _

// kernel: variational_encoder_forward.40
$region0: #{variational_encoder_forward.40}
  #allocation0 [shape = 'u32[]', space=smem, size = 0x4, offset = 0x4, fixed_abs, tag = 'smem constant byte address 0x4 - core index']
  #allocation1 [shape = 'u32[144,128]{1,0:T(1,128)}', space=vmem, size = 0x12000, scoped, tag = 'internal scratch']
  %s0 = inlined_call_operand.vmem [shape: f32[2,32,32], index: 0, kind: input, shape index: {}]
  %s1 = inlined_call_operand.vmem [shape: f32[2,32,32], index: 1, kind: output, shape index: {}]
  %s2 = sld [smem:[#allocation0]]
  $region37: #{variational_encoder_forward.40} parent=0
    _
  %s4 = ssub.s32 1, %s2
  %s5 = scalar_select 0, %s4, %s2
  loop: start=0, step=1, limit=4
  $region2: #{variational_encoder_forward.40} parent=0 // loop_pre_header
    _
  $region3: #{variational_encoder_forward.40} parent=0 // loop_header
    %s7 = sphi 0, %s11
    %p8 = scmp.ge.s32.totalorder %s7, 4
    %s14 = sphi 0, %s26
    %s15 = sphi 0, %s22
    %s16 = sphi 0, %s14
    %s17 = sphi 0, %s15
    %s18 = sphi 0, %s16
    %s19 = sphi 0, %s17
    %s31 = sphi 0, %s33
    %s34 = sphi 0, %s31
    %s35 = sphi 0, %s34
    %s51 = sphi 0, %s35
    %s59 = sphi 0, %s61
    %s62 = sphi 0, %s59
    %s63 = sphi 0, %s62
    %s79 = sphi 0, %s63
  $region4: #{variational_encoder_forward.40} parent=0 // loop_header_branch
    %10 = sbr.rel (%p8) target = $region8
  $region5: #{variational_encoder_forward.40} parent=0 // loop_body
    %s12 = ssub.s32 %s7, 1
    %s13 = ssub.s32 %s7, 2
    %s20 = sadd.s32 1, %s15
    %p21 = scmp.ge.s32.totalorder %s20, 1
    %s22 = scalar_select %p21, 0, %s20
    %s23 = sadd.s32 1, %s14
    %s24 = scalar_select %p21, %s23, %s14
    %p25 = scmp.ge.s32.totalorder %s24, 2
    %s26 = scalar_select %p25, 0, %s24
    %s27 = ssub.s32 %s14, %s26
    %s28 = ssub.s32 %s15, %s22
    %s29 = sor.u32 %s27, %s28
    %p30 = scmp.eq.s32.totalorder %s29, 0
    %s32 = sadd.s32 %s31, 1
    %s33 = scalar_select %p30, %s31, %s32
    %p36 = pneg %p30
    %p37 = scmp.eq.s32.totalorder %s7, 1
    %p38 = por %p36, %p37
    %p39 = scmp.ne.s32.totalorder %s31, %s34
    %p40 = scmp.eq.s32.totalorder %s7, 0
    %p41 = por %p39, %p40
    %p42 = scmp.ne.s32.totalorder %s31, %s34
    %p43 = scmp.eq.s32.totalorder %s12, 1
    %p44 = por %p42, %p43
    %p45 = scmp.ne.s32.totalorder %s34, %s35
    %p46 = scmp.eq.s32.totalorder %s12, 0
    %p47 = por %p45, %p46
    %p48 = scmp.ne.s32.totalorder %s34, %s35
    %p49 = scmp.eq.s32.totalorder %s13, 1
    %p50 = por %p48, %p49
    %p52 = scmp.ne.s32.totalorder %s35, %s51
    %p53 = scmp.eq.s32.totalorder %s13, 0
    %p54 = por %p52, %p53
    %s55 = ssub.s32 %s14, %s26
    %s56 = ssub.s32 %s15, %s22
    %s57 = sor.u32 %s55, %s56
    %p58 = scmp.eq.s32.totalorder %s57, 0
    %s60 = sadd.s32 %s59, 1
    %s61 = scalar_select %p58, %s59, %s60
    %p64 = pneg %p58
    %p65 = scmp.eq.s32.totalorder %s7, 1
    %p66 = por %p64, %p65
    %p67 = scmp.ne.s32.totalorder %s59, %s62
    %p68 = scmp.eq.s32.totalorder %s7, 0
    %p69 = por %p67, %p68
    %p70 = scmp.ne.s32.totalorder %s59, %s62
    %p71 = scmp.eq.s32.totalorder %s12, 1
    %p72 = por %p70, %p71
    %p73 = scmp.ne.s32.totalorder %s62, %s63
    %p74 = scmp.eq.s32.totalorder %s12, 0
    %p75 = por %p73, %p74
    %p76 = scmp.ne.s32.totalorder %s62, %s63
    %p77 = scmp.eq.s32.totalorder %s13, 1
    %p78 = por %p76, %p77
    %p80 = scmp.ne.s32.totalorder %s63, %s79
    %p81 = scmp.eq.s32.totalorder %s13, 0
    %p82 = por %p80, %p81
    %p83 = scmp.le.s32.totalorder 1, %s7
    %p84 = scmp.lt.s32.totalorder %s7, 3
    %p85 = pnand %p83, %p84
    %p86 = pneg %p85
    // Predicated region
    $region9: #{variational_encoder_forward.40} parent=5 // pred_check
      _
    $region10: #{variational_encoder_forward.40} parent=5 // pred_check_branch
      %88 = sbr.rel (%p85) target = $region12
    $region11: #{variational_encoder_forward.40} parent=5 // pred_region
      %s89 = ssub.s32 %s7, 1
    $region12: #{variational_encoder_forward.40} parent=5 // pred_fallthru
      _
    %p90 = scmp.lt.s32.totalorder %s7, 2
    // Predicated region
    $region13: #{variational_encoder_forward.40} parent=5 // pred_check
      %p91 = pneg %p90
    $region14: #{variational_encoder_forward.40} parent=5 // pred_check_branch
      %93 = sbr.rel (%p91) target = $region16
    $region15: #{variational_encoder_forward.40} parent=5 // pred_region
      // Predicated region
      $region17: #{variational_encoder_forward.40} parent=15 // pred_check
        %p94 = pneg %p41
      $region18: #{variational_encoder_forward.40} parent=15 // pred_check_branch
        %96 = sbr.rel (%p94) target = $region20
      $region19: #{variational_encoder_forward.40} parent=15 // pred_region
        %p97 = scmp.lt.s32.totalorder %s14, 1
        %s98 = scalar_select %p97, %s14, 1
        %p99 = scmp.lt.s32.totalorder %s15, 0
        %s100 = scalar_select %p99, %s15, 0
        %s101 = smul.addr %s98, 4
        %s102 = sadd.s32 %s100, %s101
        %s103 = smul.addr %s102, 8
        %s104 = scalar_lea.vmem %s0, %s103
      $region20: #{variational_encoder_forward.40} parent=15 // pred_fallthru
        _
    $region16: #{variational_encoder_forward.40} parent=5 // pred_fallthru
      _
    %p105 = scmp.le.s32.totalorder 1, %s7
    %p106 = scmp.lt.s32.totalorder %s7, 3
    %p107 = pnand %p105, %p106
    %p108 = pneg %p107
    // Predicated region
    $region21: #{variational_encoder_forward.40} parent=5 // pred_check
      _
    $region22: #{variational_encoder_forward.40} parent=5 // pred_check_branch
      %110 = sbr.rel (%p107) target = $region24
    $region23: #{variational_encoder_forward.40} parent=5 // pred_region
      %s111 = ssub.s32 %s7, 1
      %p112 = scmp.lt.s32.totalorder %s16, 1
      %s113 = scalar_select %p112, %s16, 1
      %p114 = scmp.lt.s32.totalorder %s17, 0
      %s115 = scalar_select %p114, %s17, 0
      %s116 = smul.addr %s113, 4
      %s117 = sadd.s32 %s115, %s116
      %s118 = smul.addr %s117, 8
      %s119 = scalar_lea.vmem %s0, %s118
      %p120 = pneg %p47
      %p121 = pneg %p44
      %p122 = pneg %p75
      %p123 = pneg %p72
      %p124 = scmp.lt.s32.totalorder %s16, 1
      %s125 = scalar_select %p124, %s16, 1
      %p126 = scmp.lt.s32.totalorder %s17, 0
      %s127 = scalar_select %p126, %s17, 0
      %s128 = smul.addr %s125, 4
      %s129 = sadd.s32 %s127, %s128
      %s130 = smul.addr %s129, 8
      %s131 = scalar_lea.vmem %s1, %s130
      %p132 = scmp.lt.s32.totalorder %s16, 1
      %s133 = scalar_select %p132, %s16, 1
      %p134 = scmp.lt.s32.totalorder %s17, 0
      %s135 = scalar_select %p134, %s17, 0
      %s136 = smul.addr %s133, 4
      %s137 = sadd.s32 %s135, %s136
      %s138 = smul.addr %s137, 8
      %s139 = scalar_lea.vmem %s0, %s138
      %p140 = scmp.lt.s32.totalorder %s16, 1
      %s141 = scalar_select %p140, %s16, 1
      %p142 = scmp.lt.s32.totalorder %s17, 0
      %s143 = scalar_select %p142, %s17, 0
      %s144 = smul.addr %s141, 4
      %s145 = sadd.s32 %s143, %s144
      %s146 = smul.addr %s145, 8
      %s147 = scalar_lea.vmem %s1, %s146
      %v148 = vld [vmem:[%s139] sm:$0xff]
      %v149 = vld [vmem:[%s139 + $0x8] sm:$0xff]
      %v150 = vld [vmem:[%s139 + $0x10] sm:$0xff]
      %v151 = vld [vmem:[%s139 + $0x18] sm:$0xff]
      %vm152 = vcmask 261120
      %v153 = vsel %vm152, %v148, 0.0
      %v154 = vsel %vm152, %v149, 0.0
      %v155 = vadd.f32 %v153, %v154
      %v156 = vsel %vm152, %v150, 0.0
      %v157 = vadd.f32 %v155, %v156
      %v158 = vsel %vm152, %v151, 0.0
      %v159 = vadd.f32 %v157, %v158
      %v160 = vrot.slane %v159, 4
      %v161 = vadd.f32 %v159, %v160
      %v162 = vrot.slane %v161, 2
      %v163 = vadd.f32 %v161, %v162
      %v164 = vrot.slane %v163, 1
      %v165 = vadd.f32 %v163, %v164
      %v166 = vrcp.pop 32.0
      %v167 = vmul.f32 %v165, %v166
      %v168 = vsub.f32 %v148, %v167
      %v169 = vsub.f32 %v149, %v167
      %v170 = vsub.f32 %v150, %v167
      %v171 = vsub.f32 %v151, %v167
      %v172 = vmul.f32 %v168, %v168
      %v173 = vmul.f32 %v169, %v169
      %v174 = vmul.f32 %v170, %v170
      %v175 = vmul.f32 %v171, %v171
      %v176 = vsel %vm152, %v172, 0.0
      %v177 = vsel %vm152, %v173, 0.0
      %v178 = vadd.f32 %v176, %v177
      %v179 = vsel %vm152, %v174, 0.0
      %v180 = vadd.f32 %v178, %v179
      %v181 = vsel %vm152, %v175, 0.0
      %v182 = vadd.f32 %v180, %v181
      %v183 = vrot.slane %v182, 4
      %v184 = vadd.f32 %v182, %v183
      %v185 = vrot.slane %v184, 2
      %v186 = vadd.f32 %v184, %v185
      %v187 = vrot.slane %v186, 1
      %v188 = vadd.f32 %v186, %v187
      %v189 = vmul.f32 %v188, %v166
      %v190 = vadd.f32 %v189, 1e-05
      %v191 = vrsqrt.pop %v190
      %v192 = vmul.f32 %v168, %v191
      %v193 = vmul.f32 %v169, %v191
      %v194 = vmul.f32 %v170, %v191
      %v195 = vmul.f32 %v171, %v191
      %196 = vst.msk [vmem:[%s147] sm:$0xff] %vm152, %v192
      %197 = vst.msk [vmem:[%s147 + $0x8] sm:$0xff] %vm152, %v193
      %198 = vst.msk [vmem:[%s147 + $0x10] sm:$0xff] %vm152, %v194
      %199 = vst.msk [vmem:[%s147 + $0x18] sm:$0xff] %vm152, %v195
      %p200 = scmp.lt.s32.totalorder %s16, 1
      %s201 = scalar_select %p200, %s16, 1
      %p202 = scmp.lt.s32.totalorder %s17, 0
      %s203 = scalar_select %p202, %s17, 0
      %s204 = smul.addr %s201, 4
      %s205 = sadd.s32 %s203, %s204
      %s206 = smul.addr %s205, 8
      %s207 = scalar_lea.vmem %s1, %s206
      // Predicated region
      $region25: #{variational_encoder_forward.40} parent=23 // pred_check
        %p208 = pneg %p72
      $region26: #{variational_encoder_forward.40} parent=23 // pred_check_branch
        %210 = sbr.rel (%p208) target = $region28
      $region27: #{variational_encoder_forward.40} parent=23 // pred_region
        _
      $region28: #{variational_encoder_forward.40} parent=23 // pred_fallthru
        _
    $region24: #{variational_encoder_forward.40} parent=5 // pred_fallthru
      _
    %p211 = scmp.le.s32.totalorder 2, %s7
    // Predicated region
    $region29: #{variational_encoder_forward.40} parent=5 // pred_check
      %p212 = pneg %p211
    $region30: #{variational_encoder_forward.40} parent=5 // pred_check_branch
      %214 = sbr.rel (%p212) target = $region32
    $region31: #{variational_encoder_forward.40} parent=5 // pred_region
      %s215 = ssub.s32 %s7, 2
      // Predicated region
      $region33: #{variational_encoder_forward.40} parent=31 // pred_check
        %p216 = pneg %p78
      $region34: #{variational_encoder_forward.40} parent=31 // pred_check_branch
        %218 = sbr.rel (%p216) target = $region36
      $region35: #{variational_encoder_forward.40} parent=31 // pred_region
        %p219 = scmp.lt.s32.totalorder %s18, 1
        %s220 = scalar_select %p219, %s18, 1
        %p221 = scmp.lt.s32.totalorder %s19, 0
        %s222 = scalar_select %p221, %s19, 0
        %s223 = smul.addr %s220, 4
        %s224 = sadd.s32 %s222, %s223
        %s225 = smul.addr %s224, 8
        %s226 = scalar_lea.vmem %s1, %s225
      $region36: #{variational_encoder_forward.40} parent=31 // pred_fallthru
        _
    $region32: #{variational_encoder_forward.40} parent=5 // pred_fallthru
      _
  $region6: #{variational_encoder_forward.40} parent=0 // loop_footer
    %s11 = sadd.s32 1, %s7
  $region7: #{variational_encoder_forward.40} parent=0 // loop_footer_branch
    %6 = sbr.rel target = $region3
  $region8: #{variational_encoder_forward.40} parent=0 // loop_exit
    _

// kernel: variational_encoder_forward.41
$region0: #{variational_encoder_forward.41}
  #allocation0 [shape = 'u32[]', space=smem, size = 0x4, offset = 0x4, fixed_abs, tag = 'smem constant byte address 0x4 - core index']
  #allocation1 [shape = 'u32[144,128]{1,0:T(1,128)}', space=vmem, size = 0x12000, scoped, tag = 'internal scratch']
  #allocation2 [shape = 'f32[64,128]{1,0:T(8,128)}', space=vmem, size = 0x8000, scoped, tag = 'scratch operand']
  %s0 = inlined_call_operand.vmem [shape: bf16[64,256], index: 0, kind: input, shape index: {}]
  %s1 = inlined_call_operand.vmem [shape: bf16[256,128], index: 1, kind: input, shape index: {}]
  %s2 = inlined_call_operand.vmem [shape: f32[1,128], index: 2, kind: input, shape index: {}]
  %s3 = inlined_call_operand.vmem [shape: f32[64,128], index: 3, kind: output, shape index: {}]
  %s4 = sld [smem:[#allocation0]]
  $region30: #{variational_encoder_forward.41} parent=0
    _
  %s6 = ssub.s32 1, %s4
  %s7 = scalar_select 0, %s6, %s4
  // Predicated region
  $region2: #{variational_encoder_forward.41} parent=0 // pred_check
    _
  $region3: #{variational_encoder_forward.41} parent=0 // pred_check_branch
    %9 = sbr.rel (0) target = $region5
  $region4: #{variational_encoder_forward.41} parent=0 // pred_region
    _
  $region5: #{variational_encoder_forward.41} parent=0 // pred_fallthru
    _
  // Predicated region
  $region6: #{variational_encoder_forward.41} parent=0 // pred_check
    _
  $region7: #{variational_encoder_forward.41} parent=0 // pred_check_branch
    %11 = sbr.rel (0) target = $region9
  $region8: #{variational_encoder_forward.41} parent=0 // pred_region
    _
  $region9: #{variational_encoder_forward.41} parent=0 // pred_fallthru
    _
  // Predicated region
  $region10: #{variational_encoder_forward.41} parent=0 // pred_check
    _
  $region11: #{variational_encoder_forward.41} parent=0 // pred_check_branch
    %13 = sbr.rel (0) target = $region13
  $region12: #{variational_encoder_forward.41} parent=0 // pred_region
    _
  $region13: #{variational_encoder_forward.41} parent=0 // pred_fallthru
    _
  %p15 = scmp.eq.s32.totalorder 0, 0
  // Predicated region
  $region14: #{variational_encoder_forward.41} parent=0 // pred_check
    %p16 = pneg %p15
  $region15: #{variational_encoder_forward.41} parent=0 // pred_check_branch
    %18 = sbr.rel (%p16) target = $region17
  $region16: #{variational_encoder_forward.41} parent=0 // pred_region
    %19 = vst [vmem:[#allocation2] sm:$0xff] 0.0
    %20 = vst [vmem:[#allocation2 + $0x8] sm:$0xff] 0.0
    %21 = vst [vmem:[#allocation2 + $0x10] sm:$0xff] 0.0
    %22 = vst [vmem:[#allocation2 + $0x18] sm:$0xff] 0.0
    %23 = vst [vmem:[#allocation2 + $0x20] sm:$0xff] 0.0
    %24 = vst [vmem:[#allocation2 + $0x28] sm:$0xff] 0.0
    %25 = vst [vmem:[#allocation2 + $0x30] sm:$0xff] 0.0
    %26 = vst [vmem:[#allocation2 + $0x38] sm:$0xff] 0.0
  $region17: #{variational_encoder_forward.41} parent=0 // pred_fallthru
    _
  %v27 = vld [vmem:[#allocation2] sm:$0xff]
  %v28 = vld [vmem:[#allocation2 + $0x8] sm:$0xff]
  %v29 = vld [vmem:[#allocation2 + $0x10] sm:$0xff]
  %v30 = vld [vmem:[#allocation2 + $0x18] sm:$0xff]
  %v31 = vld [vmem:[#allocation2 + $0x20] sm:$0xff]
  %v32 = vld [vmem:[#allocation2 + $0x28] sm:$0xff]
  %v33 = vld [vmem:[#allocation2 + $0x30] sm:$0xff]
  %v34 = vld [vmem:[#allocation2 + $0x38] sm:$0xff]
  %v35 = vld [vmem:[%s0] sm:$0xff]
  %v36 = vld [vmem:[%s0 + $0x8] sm:$0xff]
  %v37 = vld [vmem:[%s0 + $0x10] sm:$0xff]
  %v38 = vld [vmem:[%s0 + $0x18] sm:$0xff]
  %v39 = vld [vmem:[%s0 + $0x20] sm:$0xff]
  %v40 = vld [vmem:[%s0 + $0x28] sm:$0xff]
  %v41 = vld [vmem:[%s0 + $0x30] sm:$0xff]
  %v42 = vld [vmem:[%s0 + $0x38] sm:$0xff]
  %v43 = vld [vmem:[%s1] sm:$0xf]
  %v44 = vld [vmem:[%s1 + $0x4] sm:$0xf]
  %v45 = vld [vmem:[%s1 + $0x8] sm:$0xf]
  %v46 = vld [vmem:[%s1 + $0xc] sm:$0xf]
  %v47 = vld [vmem:[%s1 + $0x10] sm:$0xf]
  %v48 = vld [vmem:[%s1 + $0x14] sm:$0xf]
  %v49 = vld [vmem:[%s1 + $0x18] sm:$0xf]
  %v50 = vld [vmem:[%s1 + $0x1c] sm:$0xf]
  %v51 = vld [vmem:[%s1 + $0x20] sm:$0xf]
  %v52 = vld [vmem:[%s1 + $0x24] sm:$0xf]
  %v53 = vld [vmem:[%s1 + $0x28] sm:$0xf]
  %v54 = vld [vmem:[%s1 + $0x2c] sm:$0xf]
  %v55 = vld [vmem:[%s1 + $0x30] sm:$0xf]
  %v56 = vld [vmem:[%s1 + $0x34] sm:$0xf]
  %v57 = vld [vmem:[%s1 + $0x38] sm:$0xf]
  %v58 = vld [vmem:[%s1 + $0x3c] sm:$0xf]
  %v59 = vld [vmem:[%s1 + $0x40] sm:$0xf]
  %v60 = vld [vmem:[%s1 + $0x44] sm:$0xf]
  %v61 = vld [vmem:[%s1 + $0x48] sm:$0xf]
  %v62 = vld [vmem:[%s1 + $0x4c] sm:$0xf]
  %v63 = vld [vmem:[%s1 + $0x50] sm:$0xf]
  %v64 = vld [vmem:[%s1 + $0x54] sm:$0xf]
  %v65 = vld [vmem:[%s1 + $0x58] sm:$0xf]
  %v66 = vld [vmem:[%s1 + $0x5c] sm:$0xf]
  %v67 = vld [vmem:[%s1 + $0x60] sm:$0xf]
  %v68 = vld [vmem:[%s1 + $0x64] sm:$0xf]
  %v69 = vld [vmem:[%s1 + $0x68] sm:$0xf]
  %v70 = vld [vmem:[%s1 + $0x6c] sm:$0xf]
  %v71 = vld [vmem:[%s1 + $0x70] sm:$0xf]
  %v72 = vld [vmem:[%s1 + $0x74] sm:$0xf]
  %v73 = vld [vmem:[%s1 + $0x78] sm:$0xf]
  %v74 = vld [vmem:[%s1 + $0x7c] sm:$0xf]
  %v83 = vunpack.c.l.b16 %v35
  %v84 = vunpack.c.h.b16 %v35
  %v85 = vunpack.c.l.b16 %v36
  %v86 = vunpack.c.h.b16 %v36
  %v87 = vunpack.c.l.b16 %v37
  %v88 = vunpack.c.h.b16 %v37
  %v89 = vunpack.c.l.b16 %v38
  %v90 = vunpack.c.h.b16 %v38
  %v91 = vunpack.c.l.b16 %v39
  %v92 = vunpack.c.h.b16 %v39
  %v93 = vunpack.c.l.b16 %v40
  %v94 = vunpack.c.h.b16 %v40
  %v95 = vunpack.c.l.b16 %v41
  %v96 = vunpack.c.h.b16 %v41
  %v97 = vunpack.c.l.b16 %v42
  %v98 = vunpack.c.h.b16 %v42
  %v99 = vpack.c.b16 %v85, %v83
  %v100 = vpack.c.b16 %v86, %v84
  %v101 = vpack.c.b16 %v89, %v87
  %v102 = vpack.c.b16 %v90, %v88
  %v103 = vpack.c.b16 %v93, %v91
  %v104 = vpack.c.b16 %v94, %v92
  %v105 = vpack.c.b16 %v97, %v95
  %v106 = vpack.c.b16 %v98, %v96
  %v147 = vunpack.c.l.b16 %v43
  %v148 = vunpack.c.l.b16 %v44
  %v149 = vunpack.c.l.b16 %v45
  %v150 = vunpack.c.l.b16 %v46
  %v151 = vunpack.c.l.b16 %v47
  %v152 = vunpack.c.l.b16 %v48
  %v153 = vunpack.c.l.b16 %v49
  %v154 = vunpack.c.l.b16 %v50
  %v155 = vunpack.c.l.b16 %v51
  %v156 = vunpack.c.l.b16 %v52
  %v157 = vunpack.c.l.b16 %v53
  %v158 = vunpack.c.l.b16 %v54
  %v159 = vunpack.c.l.b16 %v55
  %v160 = vunpack.c.l.b16 %v56
  %v161 = vunpack.c.l.b16 %v57
  %v162 = vunpack.c.l.b16 %v58
  %v163 = vunpack.c.l.b16 %v59
  %v164 = vunpack.c.l.b16 %v60
  %v165 = vunpack.c.l.b16 %v61
  %v166 = vunpack.c.l.b16 %v62
  %v167 = vunpack.c.l.b16 %v63
  %v168 = vunpack.c.l.b16 %v64
  %v169 = vunpack.c.l.b16 %v65
  %v170 = vunpack.c.l.b16 %v66
  %v171 = vunpack.c.l.b16 %v67
  %v172 = vunpack.c.l.b16 %v68
  %v173 = vunpack.c.l.b16 %v69
  %v174 = vunpack.c.l.b16 %v70
  %v175 = vunpack.c.l.b16 %v71
  %v176 = vunpack.c.l.b16 %v72
  %v177 = vunpack.c.l.b16 %v73
  %v178 = vunpack.c.l.b16 %v74
  %v179 = vpack.c.b16 %v148, %v147
  %v180 = vpack.c.b16 %v150, %v149
  %v181 = vpack.c.b16 %v152, %v151
  %v182 = vpack.c.b16 %v154, %v153
  %v183 = vpack.c.b16 %v156, %v155
  %v184 = vpack.c.b16 %v158, %v157
  %v185 = vpack.c.b16 %v160, %v159
  %v186 = vpack.c.b16 %v162, %v161
  %v187 = vpack.c.b16 %v164, %v163
  %v188 = vpack.c.b16 %v166, %v165
  %v189 = vpack.c.b16 %v168, %v167
  %v190 = vpack.c.b16 %v170, %v169
  %v191 = vpack.c.b16 %v172, %v171
  %v192 = vpack.c.b16 %v174, %v173
  %v193 = vpack.c.b16 %v176, %v175
  %v194 = vpack.c.b16 %v178, %v177
  %211 = vmatprep.subr.bf16.mxu0 0
  %212 = vmatpush1.bf16.msra.mxu0 %v186
  %213 = vmatprep.subr.bf16.mxu0 0
  %214 = vmatpush1.bf16.msra.mxu0 %v185
  %215 = vmatprep.subr.bf16.mxu0 0
  %216 = vmatpush1.bf16.msra.mxu0 %v184
  %217 = vmatprep.subr.bf16.mxu0 0
  %218 = vmatpush1.bf16.msra.mxu0 %v183
  %219 = vmatprep.subr.bf16.mxu0 0
  %220 = vmatpush1.bf16.msra.mxu0 %v182
  %221 = vmatprep.subr.bf16.mxu0 0
  %222 = vmatpush1.bf16.msra.mxu0 %v181
  %223 = vmatprep.subr.bf16.mxu0 0
  %224 = vmatpush1.bf16.msra.mxu0 %v180
  %225 = vmatprep.subr.bf16.mxu0 0
  %226 = vmatpush1.bf16.msra.mxu0 %v179
  %227 = vmatprep.subr.bf16.mxu0 0
  %228 = vmatpush2.bf16.msra.mxu0 %v194
  %229 = vmatprep.subr.bf16.mxu0 0
  %230 = vmatpush2.bf16.msra.mxu0 %v193
  %231 = vmatprep.subr.bf16.mxu0 0
  %232 = vmatpush2.bf16.msra.mxu0 %v192
  %233 = vmatprep.subr.bf16.mxu0 0
  %234 = vmatpush2.bf16.msra.mxu0 %v191
  %235 = vmatprep.subr.bf16.mxu0 0
  %236 = vmatpush2.bf16.msra.mxu0 %v190
  %237 = vmatprep.subr.bf16.mxu0 0
  %238 = vmatpush2.bf16.msra.mxu0 %v189
  %239 = vmatprep.subr.bf16.mxu0 0
  %240 = vmatpush2.bf16.msra.mxu0 %v188
  %241 = vmatprep.subr.bf16.mxu0 0
  %242 = vmatpush2.bf16.msra.mxu0 %v187
  %243 = vmatprep.mubr.bf16.mxu0 %v100
  %244 = vmatmul.mubr.bf16.gmra.mxu0 %v99
  %v245 = vpop.f32.mrf.mxu0
  %v246 = vadd.f32 0.0, %v245
  %v247 = vpop.f32.mrf.mxu0
  %v248 = vpop.f32.mrf.mxu0
  %v249 = vadd.f32 0.0, %v248
  %v250 = vpop.f32.mrf.mxu0
  %251 = vmatprep.mubr.bf16.mxu0 %v102
  %252 = vmatmul.mubr.bf16.gmra.mxu0 %v101
  %v253 = vpop.f32.mrf.mxu0
  %v254 = vadd.f32 0.0, %v253
  %v255 = vpop.f32.mrf.mxu0
  %v256 = vpop.f32.mrf.mxu0
  %v257 = vadd.f32 0.0, %v256
  %v258 = vpop.f32.mrf.mxu0
  %259 = vmatprep.mubr.bf16.mxu0 %v104
  %260 = vmatmul.mubr.bf16.gmra.mxu0 %v103
  %v261 = vpop.f32.mrf.mxu0
  %v262 = vadd.f32 0.0, %v261
  %v263 = vpop.f32.mrf.mxu0
  %v264 = vpop.f32.mrf.mxu0
  %v265 = vadd.f32 0.0, %v264
  %v266 = vpop.f32.mrf.mxu0
  %267 = vmatprep.mubr.bf16.mxu0 %v106
  %268 = vmatmul.mubr.bf16.gmra.mxu0 %v105
  %v269 = vpop.f32.mrf.mxu0
  %v270 = vadd.f32 0.0, %v269
  %v271 = vpop.f32.mrf.mxu0
  %v272 = vpop.f32.mrf.mxu0
  %v273 = vadd.f32 0.0, %v272
  %v274 = vpop.f32.mrf.mxu0
  %275 = vdwg.mxu0
  %v276 = vadd.f32 %v27, %v246
  %v277 = vadd.f32 %v28, %v249
  %v278 = vadd.f32 %v29, %v254
  %v279 = vadd.f32 %v30, %v257
  %v280 = vadd.f32 %v31, %v262
  %v281 = vadd.f32 %v32, %v265
  %v282 = vadd.f32 %v33, %v270
  %v283 = vadd.f32 %v34, %v273
  %284 = vst [vmem:[#allocation2] sm:$0xff] %v276
  %285 = vst [vmem:[#allocation2 + $0x8] sm:$0xff] %v277
  %286 = vst [vmem:[#allocation2 + $0x10] sm:$0xff] %v278
  %287 = vst [vmem:[#allocation2 + $0x18] sm:$0xff] %v279
  %288 = vst [vmem:[#allocation2 + $0x20] sm:$0xff] %v280
  %289 = vst [vmem:[#allocation2 + $0x28] sm:$0xff] %v281
  %290 = vst [vmem:[#allocation2 + $0x30] sm:$0xff] %v282
  %291 = vst [vmem:[#allocation2 + $0x38] sm:$0xff] %v283
  // Predicated region
  $region18: #{variational_encoder_forward.41} parent=0 // pred_check
    %p292 = pneg %p15
  $region19: #{variational_encoder_forward.41} parent=0 // pred_check_branch
    %294 = sbr.rel (%p292) target = $region21
  $region20: #{variational_encoder_forward.41} parent=0 // pred_region
    %v295 = vld [vmem:[#allocation2] sm:$0xff]
    %v296 = vld [vmem:[#allocation2 + $0x8] sm:$0xff]
    %v297 = vld [vmem:[#allocation2 + $0x10] sm:$0xff]
    %v298 = vld [vmem:[#allocation2 + $0x18] sm:$0xff]
    %v299 = vld [vmem:[#allocation2 + $0x20] sm:$0xff]
    %v300 = vld [vmem:[#allocation2 + $0x28] sm:$0xff]
    %v301 = vld [vmem:[#allocation2 + $0x30] sm:$0xff]
    %v302 = vld [vmem:[#allocation2 + $0x38] sm:$0xff]
    %v303 = vld [vmem:[%s2] sm:$0x1]
    %v305 = vlaneseq
    %v306 = vshrl.u32 %v305, 7
    %v307 = vsub.s32 0, %v306
    %v308 = vrot.slane %v303, %v307
    %v310 = vadd.f32 %v295, %v308
    %v311 = vadd.f32 %v296, %v308
    %v312 = vadd.f32 %v297, %v308
    %v313 = vadd.f32 %v298, %v308
    %v314 = vadd.f32 %v299, %v308
    %v315 = vadd.f32 %v300, %v308
    %v316 = vadd.f32 %v301, %v308
    %v317 = vadd.f32 %v302, %v308
    %vm318 = vcmp.ge.f32.partialorder %v310, 0.0
    %vm319 = vcmp.ge.f32.partialorder %v311, 0.0
    %vm320 = vcmp.ge.f32.partialorder %v312, 0.0
    %vm321 = vcmp.ge.f32.partialorder %v313, 0.0
    %vm322 = vcmp.ge.f32.partialorder %v314, 0.0
    %vm323 = vcmp.ge.f32.partialorder %v315, 0.0
    %vm324 = vcmp.ge.f32.partialorder %v316, 0.0
    %vm325 = vcmp.ge.f32.partialorder %v317, 0.0
    %v326 = vmul.f32 %v310, 0.2
    %v327 = vmul.f32 %v311, 0.2
    %v328 = vmul.f32 %v312, 0.2
    %v329 = vmul.f32 %v313, 0.2
    %v330 = vmul.f32 %v314, 0.2
    %v331 = vmul.f32 %v315, 0.2
    %v332 = vmul.f32 %v316, 0.2
    %v333 = vmul.f32 %v317, 0.2
    %v334 = vsel %vm318, %v310, %v326
    %v335 = vsel %vm319, %v311, %v327
    %v336 = vsel %vm320, %v312, %v328
    %v337 = vsel %vm321, %v313, %v329
    %v338 = vsel %vm322, %v314, %v330
    %v339 = vsel %vm323, %v315, %v331
    %v340 = vsel %vm324, %v316, %v332
    %v341 = vsel %vm325, %v317, %v333
    %342 = vst [vmem:[%s3] sm:$0xff] %v334
    %343 = vst [vmem:[%s3 + $0x8] sm:$0xff] %v335
    %344 = vst [vmem:[%s3 + $0x10] sm:$0xff] %v336
    %345 = vst [vmem:[%s3 + $0x18] sm:$0xff] %v337
    %346 = vst [vmem:[%s3 + $0x20] sm:$0xff] %v338
    %347 = vst [vmem:[%s3 + $0x28] sm:$0xff] %v339
    %348 = vst [vmem:[%s3 + $0x30] sm:$0xff] %v340
    %349 = vst [vmem:[%s3 + $0x38] sm:$0xff] %v341
  $region21: #{variational_encoder_forward.41} parent=0 // pred_fallthru
    _
  // Predicated region
  $region22: #{variational_encoder_forward.41} parent=0 // pred_check
    _
  $region23: #{variational_encoder_forward.41} parent=0 // pred_check_branch
    %351 = sbr.rel (0) target = $region25
  $region24: #{variational_encoder_forward.41} parent=0 // pred_region
    _
  $region25: #{variational_encoder_forward.41} parent=0 // pred_fallthru
    _
  // Predicated region
  $region26: #{variational_encoder_forward.41} parent=0 // pred_check
    _
  $region27: #{variational_encoder_forward.41} parent=0 // pred_check_branch
    %353 = sbr.rel (0) target = $region29
  $region28: #{variational_encoder_forward.41} parent=0 // pred_region
    _
  $region29: #{variational_encoder_forward.41} parent=0 // pred_fallthru
    _

// kernel: variational_encoder_forward.43
$region0: #{variational_encoder_forward.43}
  #allocation0 [shape = 'u32[]', space=smem, size = 0x4, offset = 0x4, fixed_abs, tag = 'smem constant byte address 0x4 - core index']
  #allocation1 [shape = 'u32[144,128]{1,0:T(1,128)}', space=vmem, size = 0x12000, scoped, tag = 'internal scratch']
  %s0 = inlined_call_operand.vmem [shape: f32[2,16,32], index: 0, kind: input, shape index: {}]
  %s1 = inlined_call_operand.vmem [shape: f32[2,16,32], index: 1, kind: input, shape index: {}]
  %s2 = inlined_call_operand.vmem [shape: f32[2,16,32], index: 2, kind: output, shape index: {}]
  %s3 = sld [smem:[#allocation0]]
  $region41: #{variational_encoder_forward.43} parent=0
    _
  %s5 = ssub.s32 1, %s3
  %s6 = scalar_select 0, %s5, %s3
  loop: start=0, step=1, limit=4
  $region2: #{variational_encoder_forward.43} parent=0 // loop_pre_header
    _
  $region3: #{variational_encoder_forward.43} parent=0 // loop_header
    %s8 = sphi 0, %s12
    %p9 = scmp.ge.s32.totalorder %s8, 4
    %s15 = sphi 0, %s27
    %s16 = sphi 0, %s23
    %s17 = sphi 0, %s15
    %s18 = sphi 0, %s16
    %s19 = sphi 0, %s17
    %s20 = sphi 0, %s18
    %s32 = sphi 0, %s34
    %s35 = sphi 0, %s32
    %s36 = sphi 0, %s35
    %s52 = sphi 0, %s36
    %s60 = sphi 0, %s62
    %s63 = sphi 0, %s60
    %s64 = sphi 0, %s63
    %s80 = sphi 0, %s64
    %s88 = sphi 0, %s90
    %s91 = sphi 0, %s88
    %s92 = sphi 0, %s91
    %s108 = sphi 0, %s92
  $region4: #{variational_encoder_forward.43} parent=0 // loop_header_branch
    %11 = sbr.rel (%p9) target = $region8
  $region5: #{variational_encoder_forward.43} parent=0 // loop_body
    %s13 = ssub.s32 %s8, 1
    %s14 = ssub.s32 %s8, 2
    %s21 = sadd.s32 1, %s16
    %p22 = scmp.ge.s32.totalorder %s21, 1
    %s23 = scalar_select %p22, 0, %s21
    %s24 = sadd.s32 1, %s15
    %s25 = scalar_select %p22, %s24, %s15
    %p26 = scmp.ge.s32.totalorder %s25, 2
    %s27 = scalar_select %p26, 0, %s25
    %s28 = ssub.s32 %s15, %s27
    %s29 = ssub.s32 %s16, %s23
    %s30 = sor.u32 %s28, %s29
    %p31 = scmp.eq.s32.totalorder %s30, 0
    %s33 = sadd.s32 %s32, 1
    %s34 = scalar_select %p31, %s32, %s33
    %p37 = pneg %p31
    %p38 = scmp.eq.s32.totalorder %s8, 1
    %p39 = por %p37, %p38
    %p40 = scmp.ne.s32.totalorder %s32, %s35
    %p41 = scmp.eq.s32.totalorder %s8, 0
    %p42 = por %p40, %p41
    %p43 = scmp.ne.s32.totalorder %s32, %s35
    %p44 = scmp.eq.s32.totalorder %s13, 1
    %p45 = por %p43, %p44
    %p46 = scmp.ne.s32.totalorder %s35, %s36
    %p47 = scmp.eq.s32.totalorder %s13, 0
    %p48 = por %p46, %p47
    %p49 = scmp.ne.s32.totalorder %s35, %s36
    %p50 = scmp.eq.s32.totalorder %s14, 1
    %p51 = por %p49, %p50
    %p53 = scmp.ne.s32.totalorder %s36, %s52
    %p54 = scmp.eq.s32.totalorder %s14, 0
    %p55 = por %p53, %p54
    %s56 = ssub.s32 %s15, %s27
    %s57 = ssub.s32 %s16, %s23
    %s58 = sor.u32 %s56, %s57
    %p59 = scmp.eq.s32.totalorder %s58, 0
    %s61 = sadd.s32 %s60, 1
    %s62 = scalar_select %p59, %s60, %s61
    %p65 = pneg %p59
    %p66 = scmp.eq.s32.totalorder %s8, 1
    %p67 = por %p65, %p66
    %p68 = scmp.ne.s32.totalorder %s60, %s63
    %p69 = scmp.eq.s32.totalorder %s8, 0
    %p70 = por %p68, %p69
    %p71 = scmp.ne.s32.totalorder %s60, %s63
    %p72 = scmp.eq.s32.totalorder %s13, 1
    %p73 = por %p71, %p72
    %p74 = scmp.ne.s32.totalorder %s63, %s64
    %p75 = scmp.eq.s32.totalorder %s13, 0
    %p76 = por %p74, %p75
    %p77 = scmp.ne.s32.totalorder %s63, %s64
    %p78 = scmp.eq.s32.totalorder %s14, 1
    %p79 = por %p77, %p78
    %p81 = scmp.ne.s32.totalorder %s64, %s80
    %p82 = scmp.eq.s32.totalorder %s14, 0
    %p83 = por %p81, %p82
    %s84 = ssub.s32 %s15, %s27
    %s85 = ssub.s32 %s16, %s23
    %s86 = sor.u32 %s84, %s85
    %p87 = scmp.eq.s32.totalorder %s86, 0
    %s89 = sadd.s32 %s88, 1
    %s90 = scalar_select %p87, %s88, %s89
    %p93 = pneg %p87
    %p94 = scmp.eq.s32.totalorder %s8, 1
    %p95 = por %p93, %p94
    %p96 = scmp.ne.s32.totalorder %s88, %s91
    %p97 = scmp.eq.s32.totalorder %s8, 0
    %p98 = por %p96, %p97
    %p99 = scmp.ne.s32.totalorder %s88, %s91
    %p100 = scmp.eq.s32.totalorder %s13, 1
    %p101 = por %p99, %p100
    %p102 = scmp.ne.s32.totalorder %s91, %s92
    %p103 = scmp.eq.s32.totalorder %s13, 0
    %p104 = por %p102, %p103
    %p105 = scmp.ne.s32.totalorder %s91, %s92
    %p106 = scmp.eq.s32.totalorder %s14, 1
    %p107 = por %p105, %p106
    %p109 = scmp.ne.s32.totalorder %s92, %s108
    %p110 = scmp.eq.s32.totalorder %s14, 0
    %p111 = por %p109, %p110
    %p112 = scmp.le.s32.totalorder 1, %s8
    %p113 = scmp.lt.s32.totalorder %s8, 3
    %p114 = pnand %p112, %p113
    %p115 = pneg %p114
    // Predicated region
    $region9: #{variational_encoder_forward.43} parent=5 // pred_check
      _
    $region10: #{variational_encoder_forward.43} parent=5 // pred_check_branch
      %117 = sbr.rel (%p114) target = $region12
    $region11: #{variational_encoder_forward.43} parent=5 // pred_region
      %s118 = ssub.s32 %s8, 1
    $region12: #{variational_encoder_forward.43} parent=5 // pred_fallthru
      _
    %p119 = scmp.lt.s32.totalorder %s8, 2
    // Predicated region
    $region13: #{variational_encoder_forward.43} parent=5 // pred_check
      %p120 = pneg %p119
    $region14: #{variational_encoder_forward.43} parent=5 // pred_check_branch
      %122 = sbr.rel (%p120) target = $region16
    $region15: #{variational_encoder_forward.43} parent=5 // pred_region
      // Predicated region
      $region17: #{variational_encoder_forward.43} parent=15 // pred_check
        %p123 = pneg %p42
      $region18: #{variational_encoder_forward.43} parent=15 // pred_check_branch
        %125 = sbr.rel (%p123) target = $region20
      $region19: #{variational_encoder_forward.43} parent=15 // pred_region
        %p126 = scmp.lt.s32.totalorder %s15, 1
        %s127 = scalar_select %p126, %s15, 1
        %p128 = scmp.lt.s32.totalorder %s16, 0
        %s129 = scalar_select %p128, %s16, 0
        %s130 = smul.addr %s127, 2
        %s131 = sadd.s32 %s129, %s130
        %s132 = smul.addr %s131, 8
        %s133 = scalar_lea.vmem %s0, %s132
      $region20: #{variational_encoder_forward.43} parent=15 // pred_fallthru
        _
      // Predicated region
      $region21: #{variational_encoder_forward.43} parent=15 // pred_check
        %p134 = pneg %p70
      $region22: #{variational_encoder_forward.43} parent=15 // pred_check_branch
        %136 = sbr.rel (%p134) target = $region24
      $region23: #{variational_encoder_forward.43} parent=15 // pred_region
        %p137 = scmp.lt.s32.totalorder %s15, 1
        %s138 = scalar_select %p137, %s15, 1
        %p139 = scmp.lt.s32.totalorder %s16, 0
        %s140 = scalar_select %p139, %s16, 0
        %s141 = smul.addr %s138, 2
        %s142 = sadd.s32 %s140, %s141
        %s143 = smul.addr %s142, 8
        %s144 = scalar_lea.vmem %s1, %s143
      $region24: #{variational_encoder_forward.43} parent=15 // pred_fallthru
        _
    $region16: #{variational_encoder_forward.43} parent=5 // pred_fallthru
      _
    %p145 = scmp.le.s32.totalorder 1, %s8
    %p146 = scmp.lt.s32.totalorder %s8, 3
    %p147 = pnand %p145, %p146
    %p148 = pneg %p147
    // Predicated region
    $region25: #{variational_encoder_forward.43} parent=5 // pred_check
      _
    $region26: #{variational_encoder_forward.43} parent=5 // pred_check_branch
      %150 = sbr.rel (%p147) target = $region28
    $region27: #{variational_encoder_forward.43} parent=5 // pred_region
      %s151 = ssub.s32 %s8, 1
      %p152 = scmp.lt.s32.totalorder %s17, 1
      %s153 = scalar_select %p152, %s17, 1
      %p154 = scmp.lt.s32.totalorder %s18, 0
      %s155 = scalar_select %p154, %s18, 0
      %s156 = smul.addr %s153, 2
      %s157 = sadd.s32 %s155, %s156
      %s158 = smul.addr %s157, 8
      %s159 = scalar_lea.vmem %s0, %s158
      %p160 = pneg %p48
      %p161 = pneg %p45
      %p162 = scmp.lt.s32.totalorder %s17, 1
      %s163 = scalar_select %p162, %s17, 1
      %p164 = scmp.lt.s32.totalorder %s18, 0
      %s165 = scalar_select %p164, %s18, 0
      %s166 = smul.addr %s163, 2
      %s167 = sadd.s32 %s165, %s166
      %s168 = smul.addr %s167, 8
      %s169 = scalar_lea.vmem %s1, %s168
      %p170 = pneg %p76
      %p171 = pneg %p73
      %p172 = pneg %p104
      %p173 = pneg %p101
      %p174 = scmp.lt.s32.totalorder %s17, 1
      %s175 = scalar_select %p174, %s17, 1
      %p176 = scmp.lt.s32.totalorder %s18, 0
      %s177 = scalar_select %p176, %s18, 0
      %s178 = smul.addr %s175, 2
      %s179 = sadd.s32 %s177, %s178
      %s180 = smul.addr %s179, 8
      %s181 = scalar_lea.vmem %s2, %s180
      %p182 = scmp.lt.s32.totalorder %s17, 1
      %s183 = scalar_select %p182, %s17, 1
      %p184 = scmp.lt.s32.totalorder %s18, 0
      %s185 = scalar_select %p184, %s18, 0
      %s186 = smul.addr %s183, 2
      %s187 = sadd.s32 %s185, %s186
      %s188 = smul.addr %s187, 8
      %s189 = scalar_lea.vmem %s0, %s188
      %p190 = scmp.lt.s32.totalorder %s17, 1
      %s191 = scalar_select %p190, %s17, 1
      %p192 = scmp.lt.s32.totalorder %s18, 0
      %s193 = scalar_select %p192, %s18, 0
      %s194 = smul.addr %s191, 2
      %s195 = sadd.s32 %s193, %s194
      %s196 = smul.addr %s195, 8
      %s197 = scalar_lea.vmem %s1, %s196
      %p198 = scmp.lt.s32.totalorder %s17, 1
      %s199 = scalar_select %p198, %s17, 1
      %p200 = scmp.lt.s32.totalorder %s18, 0
      %s201 = scalar_select %p200, %s18, 0
      %s202 = smul.addr %s199, 2
      %s203 = sadd.s32 %s201, %s202
      %s204 = smul.addr %s203, 8
      %s205 = scalar_lea.vmem %s2, %s204
      %v206 = vld [vmem:[%s189] sm:$0xff]
      %v207 = vld [vmem:[%s189 + $0x8] sm:$0xff]
      %vm208 = vcmask 261120
      %v209 = vsel %vm208, %v206, 0.0
      %v210 = vsel %vm208, %v207, 0.0
      %v211 = vadd.f32 %v209, %v210
      %v212 = vrot.slane %v211, 4
      %v213 = vadd.f32 %v211, %v212
      %v214 = vrot.slane %v213, 2
      %v215 = vadd.f32 %v213, %v214
      %v216 = vrot.slane %v215, 1
      %v217 = vadd.f32 %v215, %v216
      %v218 = vrcp.pop 16.0
      %v219 = vmul.f32 %v217, %v218
      %v220 = vsub.f32 %v206, %v219
      %v221 = vsub.f32 %v207, %v219
      %v222 = vmul.f32 %v220, %v220
      %v223 = vmul.f32 %v221, %v221
      %v224 = vsel %vm208, %v222, 0.0
      %v225 = vsel %vm208, %v223, 0.0
      %v226 = vadd.f32 %v224, %v225
      %v227 = vrot.slane %v226, 4
      %v228 = vadd.f32 %v226, %v227
      %v229 = vrot.slane %v228, 2
      %v230 = vadd.f32 %v228, %v229
      %v231 = vrot.slane %v230, 1
      %v232 = vadd.f32 %v230, %v231
      %v233 = vmul.f32 %v232, %v218
      %v234 = vadd.f32 %v233, 1e-05
      %v235 = vrsqrt.pop %v234
      %v236 = vmul.f32 %v220, %v235
      %v237 = vmul.f32 %v221, %v235
      %v238 = vld [vmem:[%s197] sm:$0xff]
      %v239 = vld [vmem:[%s197 + $0x8] sm:$0xff]
      %v240 = vadd.f32 %v236, %v238
      %v241 = vadd.f32 %v237, %v239
      %242 = vst.msk [vmem:[%s205] sm:$0xff] %vm208, %v240
      %243 = vst.msk [vmem:[%s205 + $0x8] sm:$0xff] %vm208, %v241
      %p244 = scmp.lt.s32.totalorder %s17, 1
      %s245 = scalar_select %p244, %s17, 1
      %p246 = scmp.lt.s32.totalorder %s18, 0
      %s247 = scalar_select %p246, %s18, 0
      %s248 = smul.addr %s245, 2
      %s249 = sadd.s32 %s247, %s248
      %s250 = smul.addr %s249, 8
      %s251 = scalar_lea.vmem %s2, %s250
      // Predicated region
      $region29: #{variational_encoder_forward.43} parent=27 // pred_check
        %p252 = pneg %p101
      $region30: #{variational_encoder_forward.43} parent=27 // pred_check_branch
        %254 = sbr.rel (%p252) target = $region32
      $region31: #{variational_encoder_forward.43} parent=27 // pred_region
        _
      $region32: #{variational_encoder_forward.43} parent=27 // pred_fallthru
        _
    $region28: #{variational_encoder_forward.43} parent=5 // pred_fallthru
      _
    %p255 = scmp.le.s32.totalorder 2, %s8
    // Predicated region
    $region33: #{variational_encoder_forward.43} parent=5 // pred_check
      %p256 = pneg %p255
    $region34: #{variational_encoder_forward.43} parent=5 // pred_check_branch
      %258 = sbr.rel (%p256) target = $region36
    $region35: #{variational_encoder_forward.43} parent=5 // pred_region
      %s259 = ssub.s32 %s8, 2
      // Predicated region
      $region37: #{variational_encoder_forward.43} parent=35 // pred_check
        %p260 = pneg %p107
      $region38: #{variational_encoder_forward.43} parent=35 // pred_check_branch
        %262 = sbr.rel (%p260) target = $region40
      $region39: #{variational_encoder_forward.43} parent=35 // pred_region
        %p263 = scmp.lt.s32.totalorder %s19, 1
        %s264 = scalar_select %p263, %s19, 1
        %p265 = scmp.lt.s32.totalorder %s20, 0
        %s266 = scalar_select %p265, %s20, 0
        %s267 = smul.addr %s264, 2
        %s268 = sadd.s32 %s266, %s267
        %s269 = smul.addr %s268, 8
        %s270 = scalar_lea.vmem %s2, %s269
      $region40: #{variational_encoder_forward.43} parent=35 // pred_fallthru
        _
    $region36: #{variational_encoder_forward.43} parent=5 // pred_fallthru
      _
  $region6: #{variational_encoder_forward.43} parent=0 // loop_footer
    %s12 = sadd.s32 1, %s8
  $region7: #{variational_encoder_forward.43} parent=0 // loop_footer_branch
    %7 = sbr.rel target = $region3
  $region8: #{variational_encoder_forward.43} parent=0 // loop_exit
    _

// kernel: variational_encoder_forward.42
$region0: #{variational_encoder_forward.42}
  #allocation0 [shape = 'u32[]', space=smem, size = 0x4, offset = 0x4, fixed_abs, tag = 'smem constant byte address 0x4 - core index']
  #allocation1 [shape = 'u32[144,128]{1,0:T(1,128)}', space=vmem, size = 0x12000, scoped, tag = 'internal scratch']
  #allocation2 [shape = 'f32[32,128]{1,0:T(8,128)}', space=vmem, size = 0x4000, scoped, tag = 'scratch operand']
  %s0 = inlined_call_operand.vmem [shape: bf16[32,256], index: 0, kind: input, shape index: {}]
  %s1 = inlined_call_operand.vmem [shape: bf16[256,128], index: 1, kind: input, shape index: {}]
  %s2 = inlined_call_operand.vmem [shape: f32[1,128], index: 2, kind: input, shape index: {}]
  %s3 = inlined_call_operand.vmem [shape: f32[32,128], index: 3, kind: output, shape index: {}]
  %s4 = sld [smem:[#allocation0]]
  $region30: #{variational_encoder_forward.42} parent=0
    _
  %s6 = ssub.s32 1, %s4
  %s7 = scalar_select 0, %s6, %s4
  // Predicated region
  $region2: #{variational_encoder_forward.42} parent=0 // pred_check
    _
  $region3: #{variational_encoder_forward.42} parent=0 // pred_check_branch
    %9 = sbr.rel (0) target = $region5
  $region4: #{variational_encoder_forward.42} parent=0 // pred_region
    _
  $region5: #{variational_encoder_forward.42} parent=0 // pred_fallthru
    _
  // Predicated region
  $region6: #{variational_encoder_forward.42} parent=0 // pred_check
    _
  $region7: #{variational_encoder_forward.42} parent=0 // pred_check_branch
    %11 = sbr.rel (0) target = $region9
  $region8: #{variational_encoder_forward.42} parent=0 // pred_region
    _
  $region9: #{variational_encoder_forward.42} parent=0 // pred_fallthru
    _
  // Predicated region
  $region10: #{variational_encoder_forward.42} parent=0 // pred_check
    _
  $region11: #{variational_encoder_forward.42} parent=0 // pred_check_branch
    %13 = sbr.rel (0) target = $region13
  $region12: #{variational_encoder_forward.42} parent=0 // pred_region
    _
  $region13: #{variational_encoder_forward.42} parent=0 // pred_fallthru
    _
  %p15 = scmp.eq.s32.totalorder 0, 0
  // Predicated region
  $region14: #{variational_encoder_forward.42} parent=0 // pred_check
    %p16 = pneg %p15
  $region15: #{variational_encoder_forward.42} parent=0 // pred_check_branch
    %18 = sbr.rel (%p16) target = $region17
  $region16: #{variational_encoder_forward.42} parent=0 // pred_region
    %19 = vst [vmem:[#allocation2] sm:$0xff] 0.0
    %20 = vst [vmem:[#allocation2 + $0x8] sm:$0xff] 0.0
    %21 = vst [vmem:[#allocation2 + $0x10] sm:$0xff] 0.0
    %22 = vst [vmem:[#allocation2 + $0x18] sm:$0xff] 0.0
  $region17: #{variational_encoder_forward.42} parent=0 // pred_fallthru
    _
  %v23 = vld [vmem:[#allocation2] sm:$0xff]
  %v24 = vld [vmem:[#allocation2 + $0x8] sm:$0xff]
  %v25 = vld [vmem:[#allocation2 + $0x10] sm:$0xff]
  %v26 = vld [vmem:[#allocation2 + $0x18] sm:$0xff]
  %v27 = vld [vmem:[%s0] sm:$0xff]
  %v28 = vld [vmem:[%s0 + $0x8] sm:$0xff]
  %v29 = vld [vmem:[%s0 + $0x10] sm:$0xff]
  %v30 = vld [vmem:[%s0 + $0x18] sm:$0xff]
  %v31 = vld [vmem:[%s1] sm:$0xf]
  %v32 = vld [vmem:[%s1 + $0x4] sm:$0xf]
  %v33 = vld [vmem:[%s1 + $0x8] sm:$0xf]
  %v34 = vld [vmem:[%s1 + $0xc] sm:$0xf]
  %v35 = vld [vmem:[%s1 + $0x10] sm:$0xf]
  %v36 = vld [vmem:[%s1 + $0x14] sm:$0xf]
  %v37 = vld [vmem:[%s1 + $0x18] sm:$0xf]
  %v38 = vld [vmem:[%s1 + $0x1c] sm:$0xf]
  %v39 = vld [vmem:[%s1 + $0x20] sm:$0xf]
  %v40 = vld [vmem:[%s1 + $0x24] sm:$0xf]
  %v41 = vld [vmem:[%s1 + $0x28] sm:$0xf]
  %v42 = vld [vmem:[%s1 + $0x2c] sm:$0xf]
  %v43 = vld [vmem:[%s1 + $0x30] sm:$0xf]
  %v44 = vld [vmem:[%s1 + $0x34] sm:$0xf]
  %v45 = vld [vmem:[%s1 + $0x38] sm:$0xf]
  %v46 = vld [vmem:[%s1 + $0x3c] sm:$0xf]
  %v47 = vld [vmem:[%s1 + $0x40] sm:$0xf]
  %v48 = vld [vmem:[%s1 + $0x44] sm:$0xf]
  %v49 = vld [vmem:[%s1 + $0x48] sm:$0xf]
  %v50 = vld [vmem:[%s1 + $0x4c] sm:$0xf]
  %v51 = vld [vmem:[%s1 + $0x50] sm:$0xf]
  %v52 = vld [vmem:[%s1 + $0x54] sm:$0xf]
  %v53 = vld [vmem:[%s1 + $0x58] sm:$0xf]
  %v54 = vld [vmem:[%s1 + $0x5c] sm:$0xf]
  %v55 = vld [vmem:[%s1 + $0x60] sm:$0xf]
  %v56 = vld [vmem:[%s1 + $0x64] sm:$0xf]
  %v57 = vld [vmem:[%s1 + $0x68] sm:$0xf]
  %v58 = vld [vmem:[%s1 + $0x6c] sm:$0xf]
  %v59 = vld [vmem:[%s1 + $0x70] sm:$0xf]
  %v60 = vld [vmem:[%s1 + $0x74] sm:$0xf]
  %v61 = vld [vmem:[%s1 + $0x78] sm:$0xf]
  %v62 = vld [vmem:[%s1 + $0x7c] sm:$0xf]
  %v67 = vunpack.c.l.b16 %v27
  %v68 = vunpack.c.h.b16 %v27
  %v69 = vunpack.c.l.b16 %v28
  %v70 = vunpack.c.h.b16 %v28
  %v71 = vunpack.c.l.b16 %v29
  %v72 = vunpack.c.h.b16 %v29
  %v73 = vunpack.c.l.b16 %v30
  %v74 = vunpack.c.h.b16 %v30
  %v75 = vpack.c.b16 %v69, %v67
  %v76 = vpack.c.b16 %v70, %v68
  %v77 = vpack.c.b16 %v73, %v71
  %v78 = vpack.c.b16 %v74, %v72
  %v115 = vunpack.c.l.b16 %v31
  %v116 = vunpack.c.l.b16 %v32
  %v117 = vunpack.c.l.b16 %v33
  %v118 = vunpack.c.l.b16 %v34
  %v119 = vunpack.c.l.b16 %v35
  %v120 = vunpack.c.l.b16 %v36
  %v121 = vunpack.c.l.b16 %v37
  %v122 = vunpack.c.l.b16 %v38
  %v123 = vunpack.c.l.b16 %v39
  %v124 = vunpack.c.l.b16 %v40
  %v125 = vunpack.c.l.b16 %v41
  %v126 = vunpack.c.l.b16 %v42
  %v127 = vunpack.c.l.b16 %v43
  %v128 = vunpack.c.l.b16 %v44
  %v129 = vunpack.c.l.b16 %v45
  %v130 = vunpack.c.l.b16 %v46
  %v131 = vunpack.c.l.b16 %v47
  %v132 = vunpack.c.l.b16 %v48
  %v133 = vunpack.c.l.b16 %v49
  %v134 = vunpack.c.l.b16 %v50
  %v135 = vunpack.c.l.b16 %v51
  %v136 = vunpack.c.l.b16 %v52
  %v137 = vunpack.c.l.b16 %v53
  %v138 = vunpack.c.l.b16 %v54
  %v139 = vunpack.c.l.b16 %v55
  %v140 = vunpack.c.l.b16 %v56
  %v141 = vunpack.c.l.b16 %v57
  %v142 = vunpack.c.l.b16 %v58
  %v143 = vunpack.c.l.b16 %v59
  %v144 = vunpack.c.l.b16 %v60
  %v145 = vunpack.c.l.b16 %v61
  %v146 = vunpack.c.l.b16 %v62
  %v147 = vpack.c.b16 %v116, %v115
  %v148 = vpack.c.b16 %v118, %v117
  %v149 = vpack.c.b16 %v120, %v119
  %v150 = vpack.c.b16 %v122, %v121
  %v151 = vpack.c.b16 %v124, %v123
  %v152 = vpack.c.b16 %v126, %v125
  %v153 = vpack.c.b16 %v128, %v127
  %v154 = vpack.c.b16 %v130, %v129
  %v155 = vpack.c.b16 %v132, %v131
  %v156 = vpack.c.b16 %v134, %v133
  %v157 = vpack.c.b16 %v136, %v135
  %v158 = vpack.c.b16 %v138, %v137
  %v159 = vpack.c.b16 %v140, %v139
  %v160 = vpack.c.b16 %v142, %v141
  %v161 = vpack.c.b16 %v144, %v143
  %v162 = vpack.c.b16 %v146, %v145
  %179 = vmatprep.subr.bf16.mxu0 0
  %180 = vmatpush1.bf16.msra.mxu0 %v154
  %181 = vmatprep.subr.bf16.mxu0 0
  %182 = vmatpush1.bf16.msra.mxu0 %v153
  %183 = vmatprep.subr.bf16.mxu0 0
  %184 = vmatpush1.bf16.msra.mxu0 %v152
  %185 = vmatprep.subr.bf16.mxu0 0
  %186 = vmatpush1.bf16.msra.mxu0 %v151
  %187 = vmatprep.subr.bf16.mxu0 0
  %188 = vmatpush1.bf16.msra.mxu0 %v150
  %189 = vmatprep.subr.bf16.mxu0 0
  %190 = vmatpush1.bf16.msra.mxu0 %v149
  %191 = vmatprep.subr.bf16.mxu0 0
  %192 = vmatpush1.bf16.msra.mxu0 %v148
  %193 = vmatprep.subr.bf16.mxu0 0
  %194 = vmatpush1.bf16.msra.mxu0 %v147
  %195 = vmatprep.subr.bf16.mxu0 0
  %196 = vmatpush2.bf16.msra.mxu0 %v162
  %197 = vmatprep.subr.bf16.mxu0 0
  %198 = vmatpush2.bf16.msra.mxu0 %v161
  %199 = vmatprep.subr.bf16.mxu0 0
  %200 = vmatpush2.bf16.msra.mxu0 %v160
  %201 = vmatprep.subr.bf16.mxu0 0
  %202 = vmatpush2.bf16.msra.mxu0 %v159
  %203 = vmatprep.subr.bf16.mxu0 0
  %204 = vmatpush2.bf16.msra.mxu0 %v158
  %205 = vmatprep.subr.bf16.mxu0 0
  %206 = vmatpush2.bf16.msra.mxu0 %v157
  %207 = vmatprep.subr.bf16.mxu0 0
  %208 = vmatpush2.bf16.msra.mxu0 %v156
  %209 = vmatprep.subr.bf16.mxu0 0
  %210 = vmatpush2.bf16.msra.mxu0 %v155
  %211 = vmatprep.mubr.bf16.mxu0 %v76
  %212 = vmatmul.mubr.bf16.gmra.mxu0 %v75
  %v213 = vpop.f32.mrf.mxu0
  %v214 = vadd.f32 0.0, %v213
  %v215 = vpop.f32.mrf.mxu0
  %v216 = vpop.f32.mrf.mxu0
  %v217 = vadd.f32 0.0, %v216
  %v218 = vpop.f32.mrf.mxu0
  %219 = vmatprep.mubr.bf16.mxu0 %v78
  %220 = vmatmul.mubr.bf16.gmra.mxu0 %v77
  %v221 = vpop.f32.mrf.mxu0
  %v222 = vadd.f32 0.0, %v221
  %v223 = vpop.f32.mrf.mxu0
  %v224 = vpop.f32.mrf.mxu0
  %v225 = vadd.f32 0.0, %v224
  %v226 = vpop.f32.mrf.mxu0
  %227 = vdwg.mxu0
  %v228 = vadd.f32 %v23, %v214
  %v229 = vadd.f32 %v24, %v217
  %v230 = vadd.f32 %v25, %v222
  %v231 = vadd.f32 %v26, %v225
  %232 = vst [vmem:[#allocation2] sm:$0xff] %v228
  %233 = vst [vmem:[#allocation2 + $0x8] sm:$0xff] %v229
  %234 = vst [vmem:[#allocation2 + $0x10] sm:$0xff] %v230
  %235 = vst [vmem:[#allocation2 + $0x18] sm:$0xff] %v231
  // Predicated region
  $region18: #{variational_encoder_forward.42} parent=0 // pred_check
    %p236 = pneg %p15
  $region19: #{variational_encoder_forward.42} parent=0 // pred_check_branch
    %238 = sbr.rel (%p236) target = $region21
  $region20: #{variational_encoder_forward.42} parent=0 // pred_region
    %v239 = vld [vmem:[#allocation2] sm:$0xff]
    %v240 = vld [vmem:[#allocation2 + $0x8] sm:$0xff]
    %v241 = vld [vmem:[#allocation2 + $0x10] sm:$0xff]
    %v242 = vld [vmem:[#allocation2 + $0x18] sm:$0xff]
    %v243 = vld [vmem:[%s2] sm:$0x1]
    %v245 = vlaneseq
    %v246 = vshrl.u32 %v245, 7
    %v247 = vsub.s32 0, %v246
    %v248 = vrot.slane %v243, %v247
    %v250 = vadd.f32 %v239, %v248
    %v251 = vadd.f32 %v240, %v248
    %v252 = vadd.f32 %v241, %v248
    %v253 = vadd.f32 %v242, %v248
    %vm254 = vcmp.ge.f32.partialorder %v250, 0.0
    %vm255 = vcmp.ge.f32.partialorder %v251, 0.0
    %vm256 = vcmp.ge.f32.partialorder %v252, 0.0
    %vm257 = vcmp.ge.f32.partialorder %v253, 0.0
    %v258 = vmul.f32 %v250, 0.2
    %v259 = vmul.f32 %v251, 0.2
    %v260 = vmul.f32 %v252, 0.2
    %v261 = vmul.f32 %v253, 0.2
    %v262 = vsel %vm254, %v250, %v258
    %v263 = vsel %vm255, %v251, %v259
    %v264 = vsel %vm256, %v252, %v260
    %v265 = vsel %vm257, %v253, %v261
    %266 = vst [vmem:[%s3] sm:$0xff] %v262
    %267 = vst [vmem:[%s3 + $0x8] sm:$0xff] %v263
    %268 = vst [vmem:[%s3 + $0x10] sm:$0xff] %v264
    %269 = vst [vmem:[%s3 + $0x18] sm:$0xff] %v265
  $region21: #{variational_encoder_forward.42} parent=0 // pred_fallthru
    _
  // Predicated region
  $region22: #{variational_encoder_forward.42} parent=0 // pred_check
    _
  $region23: #{variational_encoder_forward.42} parent=0 // pred_check_branch
    %271 = sbr.rel (0) target = $region25
  $region24: #{variational_encoder_forward.42} parent=0 // pred_region
    _
  $region25: #{variational_encoder_forward.42} parent=0 // pred_fallthru
    _
  // Predicated region
  $region26: #{variational_encoder_forward.42} parent=0 // pred_check
    _
  $region27: #{variational_encoder_forward.42} parent=0 // pred_check_branch
    %273 = sbr.rel (0) target = $region29
  $region28: #{variational_encoder_forward.42} parent=0 // pred_region
    _
  $region29: #{variational_encoder_forward.42} parent=0 // pred_fallthru
    _

// kernel: variational_encoder_forward.45
$region0: #{variational_encoder_forward.45}
  #allocation0 [shape = 'u32[]', space=smem, size = 0x4, offset = 0x4, fixed_abs, tag = 'smem constant byte address 0x4 - core index']
  #allocation1 [shape = 'u32[144,128]{1,0:T(1,128)}', space=vmem, size = 0x12000, scoped, tag = 'internal scratch']
  #allocation2 [shape = 'f32[16,128]{1,0:T(8,128)}', space=vmem, size = 0x2000, scoped, tag = 'scratch operand']
  %s0 = inlined_call_operand.vmem [shape: bf16[16,256], index: 0, kind: input, shape index: {}]
  %s1 = inlined_call_operand.vmem [shape: bf16[256,128], index: 1, kind: input, shape index: {}]
  %s2 = inlined_call_operand.vmem [shape: f32[1,128], index: 2, kind: input, shape index: {}]
  %s3 = inlined_call_operand.vmem [shape: f32[16,128], index: 3, kind: output, shape index: {}]
  %s4 = sld [smem:[#allocation0]]
  $region30: #{variational_encoder_forward.45} parent=0
    _
  %s6 = ssub.s32 1, %s4
  %s7 = scalar_select 0, %s6, %s4
  // Predicated region
  $region2: #{variational_encoder_forward.45} parent=0 // pred_check
    _
  $region3: #{variational_encoder_forward.45} parent=0 // pred_check_branch
    %9 = sbr.rel (0) target = $region5
  $region4: #{variational_encoder_forward.45} parent=0 // pred_region
    _
  $region5: #{variational_encoder_forward.45} parent=0 // pred_fallthru
    _
  // Predicated region
  $region6: #{variational_encoder_forward.45} parent=0 // pred_check
    _
  $region7: #{variational_encoder_forward.45} parent=0 // pred_check_branch
    %11 = sbr.rel (0) target = $region9
  $region8: #{variational_encoder_forward.45} parent=0 // pred_region
    _
  $region9: #{variational_encoder_forward.45} parent=0 // pred_fallthru
    _
  // Predicated region
  $region10: #{variational_encoder_forward.45} parent=0 // pred_check
    _
  $region11: #{variational_encoder_forward.45} parent=0 // pred_check_branch
    %13 = sbr.rel (0) target = $region13
  $region12: #{variational_encoder_forward.45} parent=0 // pred_region
    _
  $region13: #{variational_encoder_forward.45} parent=0 // pred_fallthru
    _
  %p15 = scmp.eq.s32.totalorder 0, 0
  // Predicated region
  $region14: #{variational_encoder_forward.45} parent=0 // pred_check
    %p16 = pneg %p15
  $region15: #{variational_encoder_forward.45} parent=0 // pred_check_branch
    %18 = sbr.rel (%p16) target = $region17
  $region16: #{variational_encoder_forward.45} parent=0 // pred_region
    %19 = vst [vmem:[#allocation2] sm:$0xff] 0.0
    %20 = vst [vmem:[#allocation2 + $0x8] sm:$0xff] 0.0
  $region17: #{variational_encoder_forward.45} parent=0 // pred_fallthru
    _
  %v21 = vld [vmem:[#allocation2] sm:$0xff]
  %v22 = vld [vmem:[#allocation2 + $0x8] sm:$0xff]
  %v23 = vld [vmem:[%s0] sm:$0xff]
  %v24 = vld [vmem:[%s0 + $0x8] sm:$0xff]
  %v25 = vld [vmem:[%s1] sm:$0xf]
  %v26 = vld [vmem:[%s1 + $0x4] sm:$0xf]
  %v27 = vld [vmem:[%s1 + $0x8] sm:$0xf]
  %v28 = vld [vmem:[%s1 + $0xc] sm:$0xf]
  %v29 = vld [vmem:[%s1 + $0x10] sm:$0xf]
  %v30 = vld [vmem:[%s1 + $0x14] sm:$0xf]
  %v31 = vld [vmem:[%s1 + $0x18] sm:$0xf]
  %v32 = vld [vmem:[%s1 + $0x1c] sm:$0xf]
  %v33 = vld [vmem:[%s1 + $0x20] sm:$0xf]
  %v34 = vld [vmem:[%s1 + $0x24] sm:$0xf]
  %v35 = vld [vmem:[%s1 + $0x28] sm:$0xf]
  %v36 = vld [vmem:[%s1 + $0x2c] sm:$0xf]
  %v37 = vld [vmem:[%s1 + $0x30] sm:$0xf]
  %v38 = vld [vmem:[%s1 + $0x34] sm:$0xf]
  %v39 = vld [vmem:[%s1 + $0x38] sm:$0xf]
  %v40 = vld [vmem:[%s1 + $0x3c] sm:$0xf]
  %v41 = vld [vmem:[%s1 + $0x40] sm:$0xf]
  %v42 = vld [vmem:[%s1 + $0x44] sm:$0xf]
  %v43 = vld [vmem:[%s1 + $0x48] sm:$0xf]
  %v44 = vld [vmem:[%s1 + $0x4c] sm:$0xf]
  %v45 = vld [vmem:[%s1 + $0x50] sm:$0xf]
  %v46 = vld [vmem:[%s1 + $0x54] sm:$0xf]
  %v47 = vld [vmem:[%s1 + $0x58] sm:$0xf]
  %v48 = vld [vmem:[%s1 + $0x5c] sm:$0xf]
  %v49 = vld [vmem:[%s1 + $0x60] sm:$0xf]
  %v50 = vld [vmem:[%s1 + $0x64] sm:$0xf]
  %v51 = vld [vmem:[%s1 + $0x68] sm:$0xf]
  %v52 = vld [vmem:[%s1 + $0x6c] sm:$0xf]
  %v53 = vld [vmem:[%s1 + $0x70] sm:$0xf]
  %v54 = vld [vmem:[%s1 + $0x74] sm:$0xf]
  %v55 = vld [vmem:[%s1 + $0x78] sm:$0xf]
  %v56 = vld [vmem:[%s1 + $0x7c] sm:$0xf]
  %v59 = vunpack.c.l.b16 %v23
  %v60 = vunpack.c.h.b16 %v23
  %v61 = vunpack.c.l.b16 %v24
  %v62 = vunpack.c.h.b16 %v24
  %v63 = vpack.c.b16 %v61, %v59
  %v64 = vpack.c.b16 %v62, %v60
  %v99 = vunpack.c.l.b16 %v25
  %v100 = vunpack.c.l.b16 %v26
  %v101 = vunpack.c.l.b16 %v27
  %v102 = vunpack.c.l.b16 %v28
  %v103 = vunpack.c.l.b16 %v29
  %v104 = vunpack.c.l.b16 %v30
  %v105 = vunpack.c.l.b16 %v31
  %v106 = vunpack.c.l.b16 %v32
  %v107 = vunpack.c.l.b16 %v33
  %v108 = vunpack.c.l.b16 %v34
  %v109 = vunpack.c.l.b16 %v35
  %v110 = vunpack.c.l.b16 %v36
  %v111 = vunpack.c.l.b16 %v37
  %v112 = vunpack.c.l.b16 %v38
  %v113 = vunpack.c.l.b16 %v39
  %v114 = vunpack.c.l.b16 %v40
  %v115 = vunpack.c.l.b16 %v41
  %v116 = vunpack.c.l.b16 %v42
  %v117 = vunpack.c.l.b16 %v43
  %v118 = vunpack.c.l.b16 %v44
  %v119 = vunpack.c.l.b16 %v45
  %v120 = vunpack.c.l.b16 %v46
  %v121 = vunpack.c.l.b16 %v47
  %v122 = vunpack.c.l.b16 %v48
  %v123 = vunpack.c.l.b16 %v49
  %v124 = vunpack.c.l.b16 %v50
  %v125 = vunpack.c.l.b16 %v51
  %v126 = vunpack.c.l.b16 %v52
  %v127 = vunpack.c.l.b16 %v53
  %v128 = vunpack.c.l.b16 %v54
  %v129 = vunpack.c.l.b16 %v55
  %v130 = vunpack.c.l.b16 %v56
  %v131 = vpack.c.b16 %v100, %v99
  %v132 = vpack.c.b16 %v102, %v101
  %v133 = vpack.c.b16 %v104, %v103
  %v134 = vpack.c.b16 %v106, %v105
  %v135 = vpack.c.b16 %v108, %v107
  %v136 = vpack.c.b16 %v110, %v109
  %v137 = vpack.c.b16 %v112, %v111
  %v138 = vpack.c.b16 %v114, %v113
  %v139 = vpack.c.b16 %v116, %v115
  %v140 = vpack.c.b16 %v118, %v117
  %v141 = vpack.c.b16 %v120, %v119
  %v142 = vpack.c.b16 %v122, %v121
  %v143 = vpack.c.b16 %v124, %v123
  %v144 = vpack.c.b16 %v126, %v125
  %v145 = vpack.c.b16 %v128, %v127
  %v146 = vpack.c.b16 %v130, %v129
  %163 = vmatprep.subr.bf16.mxu0 0
  %164 = vmatpush1.bf16.msra.mxu0 %v138
  %165 = vmatprep.subr.bf16.mxu0 0
  %166 = vmatpush1.bf16.msra.mxu0 %v137
  %167 = vmatprep.subr.bf16.mxu0 0
  %168 = vmatpush1.bf16.msra.mxu0 %v136
  %169 = vmatprep.subr.bf16.mxu0 0
  %170 = vmatpush1.bf16.msra.mxu0 %v135
  %171 = vmatprep.subr.bf16.mxu0 0
  %172 = vmatpush1.bf16.msra.mxu0 %v134
  %173 = vmatprep.subr.bf16.mxu0 0
  %174 = vmatpush1.bf16.msra.mxu0 %v133
  %175 = vmatprep.subr.bf16.mxu0 0
  %176 = vmatpush1.bf16.msra.mxu0 %v132
  %177 = vmatprep.subr.bf16.mxu0 0
  %178 = vmatpush1.bf16.msra.mxu0 %v131
  %179 = vmatprep.subr.bf16.mxu0 0
  %180 = vmatpush2.bf16.msra.mxu0 %v146
  %181 = vmatprep.subr.bf16.mxu0 0
  %182 = vmatpush2.bf16.msra.mxu0 %v145
  %183 = vmatprep.subr.bf16.mxu0 0
  %184 = vmatpush2.bf16.msra.mxu0 %v144
  %185 = vmatprep.subr.bf16.mxu0 0
  %186 = vmatpush2.bf16.msra.mxu0 %v143
  %187 = vmatprep.subr.bf16.mxu0 0
  %188 = vmatpush2.bf16.msra.mxu0 %v142
  %189 = vmatprep.subr.bf16.mxu0 0
  %190 = vmatpush2.bf16.msra.mxu0 %v141
  %191 = vmatprep.subr.bf16.mxu0 0
  %192 = vmatpush2.bf16.msra.mxu0 %v140
  %193 = vmatprep.subr.bf16.mxu0 0
  %194 = vmatpush2.bf16.msra.mxu0 %v139
  %195 = vmatprep.mubr.bf16.mxu0 %v64
  %196 = vmatmul.mubr.bf16.gmra.mxu0 %v63
  %v197 = vpop.f32.mrf.mxu0
  %v198 = vadd.f32 0.0, %v197
  %v199 = vpop.f32.mrf.mxu0
  %v200 = vpop.f32.mrf.mxu0
  %v201 = vadd.f32 0.0, %v200
  %v202 = vpop.f32.mrf.mxu0
  %203 = vdwg.mxu0
  %v204 = vadd.f32 %v21, %v198
  %v205 = vadd.f32 %v22, %v201
  %206 = vst [vmem:[#allocation2] sm:$0xff] %v204
  %207 = vst [vmem:[#allocation2 + $0x8] sm:$0xff] %v205
  // Predicated region
  $region18: #{variational_encoder_forward.45} parent=0 // pred_check
    %p208 = pneg %p15
  $region19: #{variational_encoder_forward.45} parent=0 // pred_check_branch
    %210 = sbr.rel (%p208) target = $region21
  $region20: #{variational_encoder_forward.45} parent=0 // pred_region
    %v211 = vld [vmem:[#allocation2] sm:$0xff]
    %v212 = vld [vmem:[#allocation2 + $0x8] sm:$0xff]
    %v213 = vld [vmem:[%s2] sm:$0x1]
    %v215 = vlaneseq
    %v216 = vshrl.u32 %v215, 7
    %v217 = vsub.s32 0, %v216
    %v218 = vrot.slane %v213, %v217
    %v220 = vadd.f32 %v211, %v218
    %v221 = vadd.f32 %v212, %v218
    %vm222 = vcmp.ge.f32.partialorder %v220, 0.0
    %vm223 = vcmp.ge.f32.partialorder %v221, 0.0
    %v224 = vmul.f32 %v220, 0.2
    %v225 = vmul.f32 %v221, 0.2
    %v226 = vsel %vm222, %v220, %v224
    %v227 = vsel %vm223, %v221, %v225
    %228 = vst [vmem:[%s3] sm:$0xff] %v226
    %229 = vst [vmem:[%s3 + $0x8] sm:$0xff] %v227
  $region21: #{variational_encoder_forward.45} parent=0 // pred_fallthru
    _
  // Predicated region
  $region22: #{variational_encoder_forward.45} parent=0 // pred_check
    _
  $region23: #{variational_encoder_forward.45} parent=0 // pred_check_branch
    %231 = sbr.rel (0) target = $region25
  $region24: #{variational_encoder_forward.45} parent=0 // pred_region
    _
  $region25: #{variational_encoder_forward.45} parent=0 // pred_fallthru
    _
  // Predicated region
  $region26: #{variational_encoder_forward.45} parent=0 // pred_check
    _
  $region27: #{variational_encoder_forward.45} parent=0 // pred_check_branch
    %233 = sbr.rel (0) target = $region29
  $region28: #{variational_encoder_forward.45} parent=0 // pred_region
    _
  $region29: #{variational_encoder_forward.45} parent=0 // pred_fallthru
    _

// kernel: variational_encoder_forward.46
$region0: #{variational_encoder_forward.46}
  #allocation0 [shape = 'u32[]', space=smem, size = 0x4, offset = 0x4, fixed_abs, tag = 'smem constant byte address 0x4 - core index']
  #allocation1 [shape = 'u32[144,128]{1,0:T(1,128)}', space=vmem, size = 0x12000, scoped, tag = 'internal scratch']
  %s0 = inlined_call_operand.vmem [shape: f32[2,8,32], index: 0, kind: input, shape index: {}]
  %s1 = inlined_call_operand.vmem [shape: f32[2,8,32], index: 1, kind: input, shape index: {}]
  %s2 = inlined_call_operand.vmem [shape: f32[2,8,32], index: 2, kind: output, shape index: {}]
  %s3 = sld [smem:[#allocation0]]
  $region41: #{variational_encoder_forward.46} parent=0
    _
  %s5 = ssub.s32 1, %s3
  %s6 = scalar_select 0, %s5, %s3
  loop: start=0, step=1, limit=4
  $region2: #{variational_encoder_forward.46} parent=0 // loop_pre_header
    _
  $region3: #{variational_encoder_forward.46} parent=0 // loop_header
    %s8 = sphi 0, %s12
    %p9 = scmp.ge.s32.totalorder %s8, 4
    %s15 = sphi 0, %s27
    %s16 = sphi 0, %s23
    %s17 = sphi 0, %s15
    %s18 = sphi 0, %s16
    %s19 = sphi 0, %s17
    %s20 = sphi 0, %s18
    %s32 = sphi 0, %s34
    %s35 = sphi 0, %s32
    %s36 = sphi 0, %s35
    %s52 = sphi 0, %s36
    %s60 = sphi 0, %s62
    %s63 = sphi 0, %s60
    %s64 = sphi 0, %s63
    %s80 = sphi 0, %s64
    %s88 = sphi 0, %s90
    %s91 = sphi 0, %s88
    %s92 = sphi 0, %s91
    %s108 = sphi 0, %s92
  $region4: #{variational_encoder_forward.46} parent=0 // loop_header_branch
    %11 = sbr.rel (%p9) target = $region8
  $region5: #{variational_encoder_forward.46} parent=0 // loop_body
    %s13 = ssub.s32 %s8, 1
    %s14 = ssub.s32 %s8, 2
    %s21 = sadd.s32 1, %s16
    %p22 = scmp.ge.s32.totalorder %s21, 1
    %s23 = scalar_select %p22, 0, %s21
    %s24 = sadd.s32 1, %s15
    %s25 = scalar_select %p22, %s24, %s15
    %p26 = scmp.ge.s32.totalorder %s25, 2
    %s27 = scalar_select %p26, 0, %s25
    %s28 = ssub.s32 %s15, %s27
    %s29 = ssub.s32 %s16, %s23
    %s30 = sor.u32 %s28, %s29
    %p31 = scmp.eq.s32.totalorder %s30, 0
    %s33 = sadd.s32 %s32, 1
    %s34 = scalar_select %p31, %s32, %s33
    %p37 = pneg %p31
    %p38 = scmp.eq.s32.totalorder %s8, 1
    %p39 = por %p37, %p38
    %p40 = scmp.ne.s32.totalorder %s32, %s35
    %p41 = scmp.eq.s32.totalorder %s8, 0
    %p42 = por %p40, %p41
    %p43 = scmp.ne.s32.totalorder %s32, %s35
    %p44 = scmp.eq.s32.totalorder %s13, 1
    %p45 = por %p43, %p44
    %p46 = scmp.ne.s32.totalorder %s35, %s36
    %p47 = scmp.eq.s32.totalorder %s13, 0
    %p48 = por %p46, %p47
    %p49 = scmp.ne.s32.totalorder %s35, %s36
    %p50 = scmp.eq.s32.totalorder %s14, 1
    %p51 = por %p49, %p50
    %p53 = scmp.ne.s32.totalorder %s36, %s52
    %p54 = scmp.eq.s32.totalorder %s14, 0
    %p55 = por %p53, %p54
    %s56 = ssub.s32 %s15, %s27
    %s57 = ssub.s32 %s16, %s23
    %s58 = sor.u32 %s56, %s57
    %p59 = scmp.eq.s32.totalorder %s58, 0
    %s61 = sadd.s32 %s60, 1
    %s62 = scalar_select %p59, %s60, %s61
    %p65 = pneg %p59
    %p66 = scmp.eq.s32.totalorder %s8, 1
    %p67 = por %p65, %p66
    %p68 = scmp.ne.s32.totalorder %s60, %s63
    %p69 = scmp.eq.s32.totalorder %s8, 0
    %p70 = por %p68, %p69
    %p71 = scmp.ne.s32.totalorder %s60, %s63
    %p72 = scmp.eq.s32.totalorder %s13, 1
    %p73 = por %p71, %p72
    %p74 = scmp.ne.s32.totalorder %s63, %s64
    %p75 = scmp.eq.s32.totalorder %s13, 0
    %p76 = por %p74, %p75
    %p77 = scmp.ne.s32.totalorder %s63, %s64
    %p78 = scmp.eq.s32.totalorder %s14, 1
    %p79 = por %p77, %p78
    %p81 = scmp.ne.s32.totalorder %s64, %s80
    %p82 = scmp.eq.s32.totalorder %s14, 0
    %p83 = por %p81, %p82
    %s84 = ssub.s32 %s15, %s27
    %s85 = ssub.s32 %s16, %s23
    %s86 = sor.u32 %s84, %s85
    %p87 = scmp.eq.s32.totalorder %s86, 0
    %s89 = sadd.s32 %s88, 1
    %s90 = scalar_select %p87, %s88, %s89
    %p93 = pneg %p87
    %p94 = scmp.eq.s32.totalorder %s8, 1
    %p95 = por %p93, %p94
    %p96 = scmp.ne.s32.totalorder %s88, %s91
    %p97 = scmp.eq.s32.totalorder %s8, 0
    %p98 = por %p96, %p97
    %p99 = scmp.ne.s32.totalorder %s88, %s91
    %p100 = scmp.eq.s32.totalorder %s13, 1
    %p101 = por %p99, %p100
    %p102 = scmp.ne.s32.totalorder %s91, %s92
    %p103 = scmp.eq.s32.totalorder %s13, 0
    %p104 = por %p102, %p103
    %p105 = scmp.ne.s32.totalorder %s91, %s92
    %p106 = scmp.eq.s32.totalorder %s14, 1
    %p107 = por %p105, %p106
    %p109 = scmp.ne.s32.totalorder %s92, %s108
    %p110 = scmp.eq.s32.totalorder %s14, 0
    %p111 = por %p109, %p110
    %p112 = scmp.le.s32.totalorder 1, %s8
    %p113 = scmp.lt.s32.totalorder %s8, 3
    %p114 = pnand %p112, %p113
    %p115 = pneg %p114
    // Predicated region
    $region9: #{variational_encoder_forward.46} parent=5 // pred_check
      _
    $region10: #{variational_encoder_forward.46} parent=5 // pred_check_branch
      %117 = sbr.rel (%p114) target = $region12
    $region11: #{variational_encoder_forward.46} parent=5 // pred_region
      %s118 = ssub.s32 %s8, 1
    $region12: #{variational_encoder_forward.46} parent=5 // pred_fallthru
      _
    %p119 = scmp.lt.s32.totalorder %s8, 2
    // Predicated region
    $region13: #{variational_encoder_forward.46} parent=5 // pred_check
      %p120 = pneg %p119
    $region14: #{variational_encoder_forward.46} parent=5 // pred_check_branch
      %122 = sbr.rel (%p120) target = $region16
    $region15: #{variational_encoder_forward.46} parent=5 // pred_region
      // Predicated region
      $region17: #{variational_encoder_forward.46} parent=15 // pred_check
        %p123 = pneg %p42
      $region18: #{variational_encoder_forward.46} parent=15 // pred_check_branch
        %125 = sbr.rel (%p123) target = $region20
      $region19: #{variational_encoder_forward.46} parent=15 // pred_region
        %p126 = scmp.lt.s32.totalorder %s15, 1
        %s127 = scalar_select %p126, %s15, 1
        %p128 = scmp.lt.s32.totalorder %s16, 0
        %s129 = scalar_select %p128, %s16, 0
        %s130 = sadd.s32 %s129, %s127
        %s131 = smul.addr %s130, 8
        %s132 = scalar_lea.vmem %s0, %s131
      $region20: #{variational_encoder_forward.46} parent=15 // pred_fallthru
        _
      // Predicated region
      $region21: #{variational_encoder_forward.46} parent=15 // pred_check
        %p133 = pneg %p70
      $region22: #{variational_encoder_forward.46} parent=15 // pred_check_branch
        %135 = sbr.rel (%p133) target = $region24
      $region23: #{variational_encoder_forward.46} parent=15 // pred_region
        %p136 = scmp.lt.s32.totalorder %s15, 1
        %s137 = scalar_select %p136, %s15, 1
        %p138 = scmp.lt.s32.totalorder %s16, 0
        %s139 = scalar_select %p138, %s16, 0
        %s140 = sadd.s32 %s139, %s137
        %s141 = smul.addr %s140, 8
        %s142 = scalar_lea.vmem %s1, %s141
      $region24: #{variational_encoder_forward.46} parent=15 // pred_fallthru
        _
    $region16: #{variational_encoder_forward.46} parent=5 // pred_fallthru
      _
    %p143 = scmp.le.s32.totalorder 1, %s8
    %p144 = scmp.lt.s32.totalorder %s8, 3
    %p145 = pnand %p143, %p144
    %p146 = pneg %p145
    // Predicated region
    $region25: #{variational_encoder_forward.46} parent=5 // pred_check
      _
    $region26: #{variational_encoder_forward.46} parent=5 // pred_check_branch
      %148 = sbr.rel (%p145) target = $region28
    $region27: #{variational_encoder_forward.46} parent=5 // pred_region
      %s149 = ssub.s32 %s8, 1
      %p150 = scmp.lt.s32.totalorder %s17, 1
      %s151 = scalar_select %p150, %s17, 1
      %p152 = scmp.lt.s32.totalorder %s18, 0
      %s153 = scalar_select %p152, %s18, 0
      %s154 = sadd.s32 %s153, %s151
      %s155 = smul.addr %s154, 8
      %s156 = scalar_lea.vmem %s0, %s155
      %p157 = pneg %p48
      %p158 = pneg %p45
      %p159 = scmp.lt.s32.totalorder %s17, 1
      %s160 = scalar_select %p159, %s17, 1
      %p161 = scmp.lt.s32.totalorder %s18, 0
      %s162 = scalar_select %p161, %s18, 0
      %s163 = sadd.s32 %s162, %s160
      %s164 = smul.addr %s163, 8
      %s165 = scalar_lea.vmem %s1, %s164
      %p166 = pneg %p76
      %p167 = pneg %p73
      %p168 = pneg %p104
      %p169 = pneg %p101
      %p170 = scmp.lt.s32.totalorder %s17, 1
      %s171 = scalar_select %p170, %s17, 1
      %p172 = scmp.lt.s32.totalorder %s18, 0
      %s173 = scalar_select %p172, %s18, 0
      %s174 = sadd.s32 %s173, %s171
      %s175 = smul.addr %s174, 8
      %s176 = scalar_lea.vmem %s2, %s175
      %p177 = scmp.lt.s32.totalorder %s17, 1
      %s178 = scalar_select %p177, %s17, 1
      %p179 = scmp.lt.s32.totalorder %s18, 0
      %s180 = scalar_select %p179, %s18, 0
      %s181 = sadd.s32 %s180, %s178
      %s182 = smul.addr %s181, 8
      %s183 = scalar_lea.vmem %s0, %s182
      %p184 = scmp.lt.s32.totalorder %s17, 1
      %s185 = scalar_select %p184, %s17, 1
      %p186 = scmp.lt.s32.totalorder %s18, 0
      %s187 = scalar_select %p186, %s18, 0
      %s188 = sadd.s32 %s187, %s185
      %s189 = smul.addr %s188, 8
      %s190 = scalar_lea.vmem %s1, %s189
      %p191 = scmp.lt.s32.totalorder %s17, 1
      %s192 = scalar_select %p191, %s17, 1
      %p193 = scmp.lt.s32.totalorder %s18, 0
      %s194 = scalar_select %p193, %s18, 0
      %s195 = sadd.s32 %s194, %s192
      %s196 = smul.addr %s195, 8
      %s197 = scalar_lea.vmem %s2, %s196
      %v198 = vld [vmem:[%s183] sm:$0xff]
      %vm199 = vcmask 261120
      %v200 = vsel %vm199, %v198, 0.0
      %v201 = vrot.slane %v200, 4
      %v202 = vadd.f32 %v200, %v201
      %v203 = vrot.slane %v202, 2
      %v204 = vadd.f32 %v202, %v203
      %v205 = vrot.slane %v204, 1
      %v206 = vadd.f32 %v204, %v205
      %v207 = vrcp.pop 8.0
      %v208 = vmul.f32 %v206, %v207
      %v209 = vsub.f32 %v198, %v208
      %v210 = vmul.f32 %v209, %v209
      %v211 = vsel %vm199, %v210, 0.0
      %v212 = vrot.slane %v211, 4
      %v213 = vadd.f32 %v211, %v212
      %v214 = vrot.slane %v213, 2
      %v215 = vadd.f32 %v213, %v214
      %v216 = vrot.slane %v215, 1
      %v217 = vadd.f32 %v215, %v216
      %v218 = vmul.f32 %v217, %v207
      %v219 = vadd.f32 %v218, 1e-05
      %v220 = vrsqrt.pop %v219
      %v221 = vmul.f32 %v209, %v220
      %v222 = vld [vmem:[%s190] sm:$0xff]
      %v223 = vadd.f32 %v221, %v222
      %224 = vst.msk [vmem:[%s197] sm:$0xff] %vm199, %v223
      %p225 = scmp.lt.s32.totalorder %s17, 1
      %s226 = scalar_select %p225, %s17, 1
      %p227 = scmp.lt.s32.totalorder %s18, 0
      %s228 = scalar_select %p227, %s18, 0
      %s229 = sadd.s32 %s228, %s226
      %s230 = smul.addr %s229, 8
      %s231 = scalar_lea.vmem %s2, %s230
      // Predicated region
      $region29: #{variational_encoder_forward.46} parent=27 // pred_check
        %p232 = pneg %p101
      $region30: #{variational_encoder_forward.46} parent=27 // pred_check_branch
        %234 = sbr.rel (%p232) target = $region32
      $region31: #{variational_encoder_forward.46} parent=27 // pred_region
        _
      $region32: #{variational_encoder_forward.46} parent=27 // pred_fallthru
        _
    $region28: #{variational_encoder_forward.46} parent=5 // pred_fallthru
      _
    %p235 = scmp.le.s32.totalorder 2, %s8
    // Predicated region
    $region33: #{variational_encoder_forward.46} parent=5 // pred_check
      %p236 = pneg %p235
    $region34: #{variational_encoder_forward.46} parent=5 // pred_check_branch
      %238 = sbr.rel (%p236) target = $region36
    $region35: #{variational_encoder_forward.46} parent=5 // pred_region
      %s239 = ssub.s32 %s8, 2
      // Predicated region
      $region37: #{variational_encoder_forward.46} parent=35 // pred_check
        %p240 = pneg %p107
      $region38: #{variational_encoder_forward.46} parent=35 // pred_check_branch
        %242 = sbr.rel (%p240) target = $region40
      $region39: #{variational_encoder_forward.46} parent=35 // pred_region
        %p243 = scmp.lt.s32.totalorder %s19, 1
        %s244 = scalar_select %p243, %s19, 1
        %p245 = scmp.lt.s32.totalorder %s20, 0
        %s246 = scalar_select %p245, %s20, 0
        %s247 = sadd.s32 %s246, %s244
        %s248 = smul.addr %s247, 8
        %s249 = scalar_lea.vmem %s2, %s248
      $region40: #{variational_encoder_forward.46} parent=35 // pred_fallthru
        _
    $region36: #{variational_encoder_forward.46} parent=5 // pred_fallthru
      _
  $region6: #{variational_encoder_forward.46} parent=0 // loop_footer
    %s12 = sadd.s32 1, %s8
  $region7: #{variational_encoder_forward.46} parent=0 // loop_footer_branch
    %7 = sbr.rel target = $region3
  $region8: #{variational_encoder_forward.46} parent=0 // loop_exit
    _

// kernel: variational_encoder_forward.49
$region0: #{variational_encoder_forward.49}
  #allocation0 [shape = 'u32[]', space=smem, size = 0x4, offset = 0x4, fixed_abs, tag = 'smem constant byte address 0x4 - core index']
  #allocation1 [shape = 'u32[144,128]{1,0:T(1,128)}', space=vmem, size = 0x12000, scoped, tag = 'internal scratch']
  %s0 = inlined_call_operand.vmem [shape: f32[2,4,32], index: 0, kind: input, shape index: {}]
  %s1 = inlined_call_operand.vmem [shape: f32[2,4,32], index: 1, kind: input, shape index: {}]
  %s2 = inlined_call_operand.vmem [shape: f32[2,4,32], index: 2, kind: output, shape index: {}]
  %s3 = sld [smem:[#allocation0]]
  $region41: #{variational_encoder_forward.49} parent=0
    _
  %s5 = ssub.s32 1, %s3
  %s6 = scalar_select 0, %s5, %s3
  loop: start=0, step=1, limit=4
  $region2: #{variational_encoder_forward.49} parent=0 // loop_pre_header
    _
  $region3: #{variational_encoder_forward.49} parent=0 // loop_header
    %s8 = sphi 0, %s12
    %p9 = scmp.ge.s32.totalorder %s8, 4
    %s15 = sphi 0, %s27
    %s16 = sphi 0, %s23
    %s17 = sphi 0, %s15
    %s18 = sphi 0, %s16
    %s19 = sphi 0, %s17
    %s20 = sphi 0, %s18
    %s32 = sphi 0, %s34
    %s35 = sphi 0, %s32
    %s36 = sphi 0, %s35
    %s52 = sphi 0, %s36
    %s60 = sphi 0, %s62
    %s63 = sphi 0, %s60
    %s64 = sphi 0, %s63
    %s80 = sphi 0, %s64
    %s88 = sphi 0, %s90
    %s91 = sphi 0, %s88
    %s92 = sphi 0, %s91
    %s108 = sphi 0, %s92
  $region4: #{variational_encoder_forward.49} parent=0 // loop_header_branch
    %11 = sbr.rel (%p9) target = $region8
  $region5: #{variational_encoder_forward.49} parent=0 // loop_body
    %s13 = ssub.s32 %s8, 1
    %s14 = ssub.s32 %s8, 2
    %s21 = sadd.s32 1, %s16
    %p22 = scmp.ge.s32.totalorder %s21, 1
    %s23 = scalar_select %p22, 0, %s21
    %s24 = sadd.s32 1, %s15
    %s25 = scalar_select %p22, %s24, %s15
    %p26 = scmp.ge.s32.totalorder %s25, 2
    %s27 = scalar_select %p26, 0, %s25
    %s28 = ssub.s32 %s15, %s27
    %s29 = ssub.s32 %s16, %s23
    %s30 = sor.u32 %s28, %s29
    %p31 = scmp.eq.s32.totalorder %s30, 0
    %s33 = sadd.s32 %s32, 1
    %s34 = scalar_select %p31, %s32, %s33
    %p37 = pneg %p31
    %p38 = scmp.eq.s32.totalorder %s8, 1
    %p39 = por %p37, %p38
    %p40 = scmp.ne.s32.totalorder %s32, %s35
    %p41 = scmp.eq.s32.totalorder %s8, 0
    %p42 = por %p40, %p41
    %p43 = scmp.ne.s32.totalorder %s32, %s35
    %p44 = scmp.eq.s32.totalorder %s13, 1
    %p45 = por %p43, %p44
    %p46 = scmp.ne.s32.totalorder %s35, %s36
    %p47 = scmp.eq.s32.totalorder %s13, 0
    %p48 = por %p46, %p47
    %p49 = scmp.ne.s32.totalorder %s35, %s36
    %p50 = scmp.eq.s32.totalorder %s14, 1
    %p51 = por %p49, %p50
    %p53 = scmp.ne.s32.totalorder %s36, %s52
    %p54 = scmp.eq.s32.totalorder %s14, 0
    %p55 = por %p53, %p54
    %s56 = ssub.s32 %s15, %s27
    %s57 = ssub.s32 %s16, %s23
    %s58 = sor.u32 %s56, %s57
    %p59 = scmp.eq.s32.totalorder %s58, 0
    %s61 = sadd.s32 %s60, 1
    %s62 = scalar_select %p59, %s60, %s61
    %p65 = pneg %p59
    %p66 = scmp.eq.s32.totalorder %s8, 1
    %p67 = por %p65, %p66
    %p68 = scmp.ne.s32.totalorder %s60, %s63
    %p69 = scmp.eq.s32.totalorder %s8, 0
    %p70 = por %p68, %p69
    %p71 = scmp.ne.s32.totalorder %s60, %s63
    %p72 = scmp.eq.s32.totalorder %s13, 1
    %p73 = por %p71, %p72
    %p74 = scmp.ne.s32.totalorder %s63, %s64
    %p75 = scmp.eq.s32.totalorder %s13, 0
    %p76 = por %p74, %p75
    %p77 = scmp.ne.s32.totalorder %s63, %s64
    %p78 = scmp.eq.s32.totalorder %s14, 1
    %p79 = por %p77, %p78
    %p81 = scmp.ne.s32.totalorder %s64, %s80
    %p82 = scmp.eq.s32.totalorder %s14, 0
    %p83 = por %p81, %p82
    %s84 = ssub.s32 %s15, %s27
    %s85 = ssub.s32 %s16, %s23
    %s86 = sor.u32 %s84, %s85
    %p87 = scmp.eq.s32.totalorder %s86, 0
    %s89 = sadd.s32 %s88, 1
    %s90 = scalar_select %p87, %s88, %s89
    %p93 = pneg %p87
    %p94 = scmp.eq.s32.totalorder %s8, 1
    %p95 = por %p93, %p94
    %p96 = scmp.ne.s32.totalorder %s88, %s91
    %p97 = scmp.eq.s32.totalorder %s8, 0
    %p98 = por %p96, %p97
    %p99 = scmp.ne.s32.totalorder %s88, %s91
    %p100 = scmp.eq.s32.totalorder %s13, 1
    %p101 = por %p99, %p100
    %p102 = scmp.ne.s32.totalorder %s91, %s92
    %p103 = scmp.eq.s32.totalorder %s13, 0
    %p104 = por %p102, %p103
    %p105 = scmp.ne.s32.totalorder %s91, %s92
    %p106 = scmp.eq.s32.totalorder %s14, 1
    %p107 = por %p105, %p106
    %p109 = scmp.ne.s32.totalorder %s92, %s108
    %p110 = scmp.eq.s32.totalorder %s14, 0
    %p111 = por %p109, %p110
    %p112 = scmp.le.s32.totalorder 1, %s8
    %p113 = scmp.lt.s32.totalorder %s8, 3
    %p114 = pnand %p112, %p113
    %p115 = pneg %p114
    // Predicated region
    $region9: #{variational_encoder_forward.49} parent=5 // pred_check
      _
    $region10: #{variational_encoder_forward.49} parent=5 // pred_check_branch
      %117 = sbr.rel (%p114) target = $region12
    $region11: #{variational_encoder_forward.49} parent=5 // pred_region
      %s118 = ssub.s32 %s8, 1
    $region12: #{variational_encoder_forward.49} parent=5 // pred_fallthru
      _
    %p119 = scmp.lt.s32.totalorder %s8, 2
    // Predicated region
    $region13: #{variational_encoder_forward.49} parent=5 // pred_check
      %p120 = pneg %p119
    $region14: #{variational_encoder_forward.49} parent=5 // pred_check_branch
      %122 = sbr.rel (%p120) target = $region16
    $region15: #{variational_encoder_forward.49} parent=5 // pred_region
      // Predicated region
      $region17: #{variational_encoder_forward.49} parent=15 // pred_check
        %p123 = pneg %p42
      $region18: #{variational_encoder_forward.49} parent=15 // pred_check_branch
        %125 = sbr.rel (%p123) target = $region20
      $region19: #{variational_encoder_forward.49} parent=15 // pred_region
        %p126 = scmp.lt.s32.totalorder %s15, 1
        %s127 = scalar_select %p126, %s15, 1
        %p128 = scmp.lt.s32.totalorder %s16, 0
        %s129 = scalar_select %p128, %s16, 0
        %s130 = sadd.s32 %s129, %s127
        %s131 = smul.addr %s130, 4
        %s132 = scalar_lea.vmem %s0, %s131
      $region20: #{variational_encoder_forward.49} parent=15 // pred_fallthru
        _
      // Predicated region
      $region21: #{variational_encoder_forward.49} parent=15 // pred_check
        %p133 = pneg %p70
      $region22: #{variational_encoder_forward.49} parent=15 // pred_check_branch
        %135 = sbr.rel (%p133) target = $region24
      $region23: #{variational_encoder_forward.49} parent=15 // pred_region
        %p136 = scmp.lt.s32.totalorder %s15, 1
        %s137 = scalar_select %p136, %s15, 1
        %p138 = scmp.lt.s32.totalorder %s16, 0
        %s139 = scalar_select %p138, %s16, 0
        %s140 = sadd.s32 %s139, %s137
        %s141 = smul.addr %s140, 4
        %s142 = scalar_lea.vmem %s1, %s141
      $region24: #{variational_encoder_forward.49} parent=15 // pred_fallthru
        _
    $region16: #{variational_encoder_forward.49} parent=5 // pred_fallthru
      _
    %p143 = scmp.le.s32.totalorder 1, %s8
    %p144 = scmp.lt.s32.totalorder %s8, 3
    %p145 = pnand %p143, %p144
    %p146 = pneg %p145
    // Predicated region
    $region25: #{variational_encoder_forward.49} parent=5 // pred_check
      _
    $region26: #{variational_encoder_forward.49} parent=5 // pred_check_branch
      %148 = sbr.rel (%p145) target = $region28
    $region27: #{variational_encoder_forward.49} parent=5 // pred_region
      %s149 = ssub.s32 %s8, 1
      %p150 = scmp.lt.s32.totalorder %s17, 1
      %s151 = scalar_select %p150, %s17, 1
      %p152 = scmp.lt.s32.totalorder %s18, 0
      %s153 = scalar_select %p152, %s18, 0
      %s154 = sadd.s32 %s153, %s151
      %s155 = smul.addr %s154, 4
      %s156 = scalar_lea.vmem %s0, %s155
      %p157 = pneg %p48
      %p158 = pneg %p45
      %p159 = scmp.lt.s32.totalorder %s17, 1
      %s160 = scalar_select %p159, %s17, 1
      %p161 = scmp.lt.s32.totalorder %s18, 0
      %s162 = scalar_select %p161, %s18, 0
      %s163 = sadd.s32 %s162, %s160
      %s164 = smul.addr %s163, 4
      %s165 = scalar_lea.vmem %s1, %s164
      %p166 = pneg %p76
      %p167 = pneg %p73
      %p168 = pneg %p104
      %p169 = pneg %p101
      %p170 = scmp.lt.s32.totalorder %s17, 1
      %s171 = scalar_select %p170, %s17, 1
      %p172 = scmp.lt.s32.totalorder %s18, 0
      %s173 = scalar_select %p172, %s18, 0
      %s174 = sadd.s32 %s173, %s171
      %s175 = smul.addr %s174, 4
      %s176 = scalar_lea.vmem %s2, %s175
      %p177 = scmp.lt.s32.totalorder %s17, 1
      %s178 = scalar_select %p177, %s17, 1
      %p179 = scmp.lt.s32.totalorder %s18, 0
      %s180 = scalar_select %p179, %s18, 0
      %s181 = sadd.s32 %s180, %s178
      %s182 = smul.addr %s181, 4
      %s183 = scalar_lea.vmem %s0, %s182
      %p184 = scmp.lt.s32.totalorder %s17, 1
      %s185 = scalar_select %p184, %s17, 1
      %p186 = scmp.lt.s32.totalorder %s18, 0
      %s187 = scalar_select %p186, %s18, 0
      %s188 = sadd.s32 %s187, %s185
      %s189 = smul.addr %s188, 4
      %s190 = scalar_lea.vmem %s1, %s189
      %p191 = scmp.lt.s32.totalorder %s17, 1
      %s192 = scalar_select %p191, %s17, 1
      %p193 = scmp.lt.s32.totalorder %s18, 0
      %s194 = scalar_select %p193, %s18, 0
      %s195 = sadd.s32 %s194, %s192
      %s196 = smul.addr %s195, 4
      %s197 = scalar_lea.vmem %s2, %s196
      %v198 = vld [vmem:[%s183] sm:$0xf]
      %vm199 = vcmask 257024
      %v200 = vsel %vm199, %v198, 0.0
      %v201 = vrot.slane %v200, 4
      %v202 = vadd.f32 %v200, %v201
      %v203 = vrot.slane %v202, 2
      %v204 = vadd.f32 %v202, %v203
      %v205 = vrot.slane %v204, 1
      %v206 = vadd.f32 %v204, %v205
      %v207 = vrcp.pop 4.0
      %v208 = vmul.f32 %v206, %v207
      %v209 = vsub.f32 %v198, %v208
      %v210 = vmul.f32 %v209, %v209
      %v211 = vsel %vm199, %v210, 0.0
      %v212 = vrot.slane %v211, 4
      %v213 = vadd.f32 %v211, %v212
      %v214 = vrot.slane %v213, 2
      %v215 = vadd.f32 %v213, %v214
      %v216 = vrot.slane %v215, 1
      %v217 = vadd.f32 %v215, %v216
      %v218 = vmul.f32 %v217, %v207
      %v219 = vadd.f32 %v218, 1e-05
      %v220 = vrsqrt.pop %v219
      %v221 = vmul.f32 %v209, %v220
      %v222 = vld [vmem:[%s190] sm:$0xf]
      %v223 = vadd.f32 %v221, %v222
      %224 = vst.msk [vmem:[%s197] sm:$0xf] %vm199, %v223
      %p225 = scmp.lt.s32.totalorder %s17, 1
      %s226 = scalar_select %p225, %s17, 1
      %p227 = scmp.lt.s32.totalorder %s18, 0
      %s228 = scalar_select %p227, %s18, 0
      %s229 = sadd.s32 %s228, %s226
      %s230 = smul.addr %s229, 4
      %s231 = scalar_lea.vmem %s2, %s230
      // Predicated region
      $region29: #{variational_encoder_forward.49} parent=27 // pred_check
        %p232 = pneg %p101
      $region30: #{variational_encoder_forward.49} parent=27 // pred_check_branch
        %234 = sbr.rel (%p232) target = $region32
      $region31: #{variational_encoder_forward.49} parent=27 // pred_region
        _
      $region32: #{variational_encoder_forward.49} parent=27 // pred_fallthru
        _
    $region28: #{variational_encoder_forward.49} parent=5 // pred_fallthru
      _
    %p235 = scmp.le.s32.totalorder 2, %s8
    // Predicated region
    $region33: #{variational_encoder_forward.49} parent=5 // pred_check
      %p236 = pneg %p235
    $region34: #{variational_encoder_forward.49} parent=5 // pred_check_branch
      %238 = sbr.rel (%p236) target = $region36
    $region35: #{variational_encoder_forward.49} parent=5 // pred_region
      %s239 = ssub.s32 %s8, 2
      // Predicated region
      $region37: #{variational_encoder_forward.49} parent=35 // pred_check
        %p240 = pneg %p107
      $region38: #{variational_encoder_forward.49} parent=35 // pred_check_branch
        %242 = sbr.rel (%p240) target = $region40
      $region39: #{variational_encoder_forward.49} parent=35 // pred_region
        %p243 = scmp.lt.s32.totalorder %s19, 1
        %s244 = scalar_select %p243, %s19, 1
        %p245 = scmp.lt.s32.totalorder %s20, 0
        %s246 = scalar_select %p245, %s20, 0
        %s247 = sadd.s32 %s246, %s244
        %s248 = smul.addr %s247, 4
        %s249 = scalar_lea.vmem %s2, %s248
      $region40: #{variational_encoder_forward.49} parent=35 // pred_fallthru
        _
    $region36: #{variational_encoder_forward.49} parent=5 // pred_fallthru
      _
  $region6: #{variational_encoder_forward.49} parent=0 // loop_footer
    %s12 = sadd.s32 1, %s8
  $region7: #{variational_encoder_forward.49} parent=0 // loop_footer_branch
    %7 = sbr.rel target = $region3
  $region8: #{variational_encoder_forward.49} parent=0 // loop_exit
    _

// kernel: variational_encoder_forward.48
$region0: #{variational_encoder_forward.48}
  #allocation0 [shape = 'u32[]', space=smem, size = 0x4, offset = 0x4, fixed_abs, tag = 'smem constant byte address 0x4 - core index']
  #allocation1 [shape = 'u32[144,128]{1,0:T(1,128)}', space=vmem, size = 0x12000, scoped, tag = 'internal scratch']
  #allocation2 [shape = 'f32[8,128]{1,0:T(8,128)}', space=vmem, size = 0x1000, scoped, tag = 'scratch operand']
  %s0 = inlined_call_operand.vmem [shape: bf16[8,256], index: 0, kind: input, shape index: {}]
  %s1 = inlined_call_operand.vmem [shape: bf16[256,128], index: 1, kind: input, shape index: {}]
  %s2 = inlined_call_operand.vmem [shape: f32[1,128], index: 2, kind: input, shape index: {}]
  %s3 = inlined_call_operand.vmem [shape: f32[8,128], index: 3, kind: output, shape index: {}]
  %s4 = sld [smem:[#allocation0]]
  $region30: #{variational_encoder_forward.48} parent=0
    _
  %s6 = ssub.s32 1, %s4
  %s7 = scalar_select 0, %s6, %s4
  // Predicated region
  $region2: #{variational_encoder_forward.48} parent=0 // pred_check
    _
  $region3: #{variational_encoder_forward.48} parent=0 // pred_check_branch
    %9 = sbr.rel (0) target = $region5
  $region4: #{variational_encoder_forward.48} parent=0 // pred_region
    _
  $region5: #{variational_encoder_forward.48} parent=0 // pred_fallthru
    _
  // Predicated region
  $region6: #{variational_encoder_forward.48} parent=0 // pred_check
    _
  $region7: #{variational_encoder_forward.48} parent=0 // pred_check_branch
    %11 = sbr.rel (0) target = $region9
  $region8: #{variational_encoder_forward.48} parent=0 // pred_region
    _
  $region9: #{variational_encoder_forward.48} parent=0 // pred_fallthru
    _
  // Predicated region
  $region10: #{variational_encoder_forward.48} parent=0 // pred_check
    _
  $region11: #{variational_encoder_forward.48} parent=0 // pred_check_branch
    %13 = sbr.rel (0) target = $region13
  $region12: #{variational_encoder_forward.48} parent=0 // pred_region
    _
  $region13: #{variational_encoder_forward.48} parent=0 // pred_fallthru
    _
  %p15 = scmp.eq.s32.totalorder 0, 0
  // Predicated region
  $region14: #{variational_encoder_forward.48} parent=0 // pred_check
    %p16 = pneg %p15
  $region15: #{variational_encoder_forward.48} parent=0 // pred_check_branch
    %18 = sbr.rel (%p16) target = $region17
  $region16: #{variational_encoder_forward.48} parent=0 // pred_region
    %19 = vst [vmem:[#allocation2] sm:$0xff] 0.0
  $region17: #{variational_encoder_forward.48} parent=0 // pred_fallthru
    _
  %v20 = vld [vmem:[#allocation2] sm:$0xff]
  %v21 = vld [vmem:[%s0] sm:$0xff]
  %v22 = vld [vmem:[%s1] sm:$0xf]
  %v23 = vld [vmem:[%s1 + $0x4] sm:$0xf]
  %v24 = vld [vmem:[%s1 + $0x8] sm:$0xf]
  %v25 = vld [vmem:[%s1 + $0xc] sm:$0xf]
  %v26 = vld [vmem:[%s1 + $0x10] sm:$0xf]
  %v27 = vld [vmem:[%s1 + $0x14] sm:$0xf]
  %v28 = vld [vmem:[%s1 + $0x18] sm:$0xf]
  %v29 = vld [vmem:[%s1 + $0x1c] sm:$0xf]
  %v30 = vld [vmem:[%s1 + $0x20] sm:$0xf]
  %v31 = vld [vmem:[%s1 + $0x24] sm:$0xf]
  %v32 = vld [vmem:[%s1 + $0x28] sm:$0xf]
  %v33 = vld [vmem:[%s1 + $0x2c] sm:$0xf]
  %v34 = vld [vmem:[%s1 + $0x30] sm:$0xf]
  %v35 = vld [vmem:[%s1 + $0x34] sm:$0xf]
  %v36 = vld [vmem:[%s1 + $0x38] sm:$0xf]
  %v37 = vld [vmem:[%s1 + $0x3c] sm:$0xf]
  %v38 = vld [vmem:[%s1 + $0x40] sm:$0xf]
  %v39 = vld [vmem:[%s1 + $0x44] sm:$0xf]
  %v40 = vld [vmem:[%s1 + $0x48] sm:$0xf]
  %v41 = vld [vmem:[%s1 + $0x4c] sm:$0xf]
  %v42 = vld [vmem:[%s1 + $0x50] sm:$0xf]
  %v43 = vld [vmem:[%s1 + $0x54] sm:$0xf]
  %v44 = vld [vmem:[%s1 + $0x58] sm:$0xf]
  %v45 = vld [vmem:[%s1 + $0x5c] sm:$0xf]
  %v46 = vld [vmem:[%s1 + $0x60] sm:$0xf]
  %v47 = vld [vmem:[%s1 + $0x64] sm:$0xf]
  %v48 = vld [vmem:[%s1 + $0x68] sm:$0xf]
  %v49 = vld [vmem:[%s1 + $0x6c] sm:$0xf]
  %v50 = vld [vmem:[%s1 + $0x70] sm:$0xf]
  %v51 = vld [vmem:[%s1 + $0x74] sm:$0xf]
  %v52 = vld [vmem:[%s1 + $0x78] sm:$0xf]
  %v53 = vld [vmem:[%s1 + $0x7c] sm:$0xf]
  %v55 = vunpack.c.l.b16 %v21
  %v56 = vunpack.c.h.b16 %v21
  %v57 = vpack.c.b16 %v55, %v55
  %v58 = vpack.c.b16 %v56, %v56
  %v93 = vunpack.c.l.b16 %v22
  %v94 = vunpack.c.l.b16 %v23
  %v95 = vunpack.c.l.b16 %v24
  %v96 = vunpack.c.l.b16 %v25
  %v97 = vunpack.c.l.b16 %v26
  %v98 = vunpack.c.l.b16 %v27
  %v99 = vunpack.c.l.b16 %v28
  %v100 = vunpack.c.l.b16 %v29
  %v101 = vunpack.c.l.b16 %v30
  %v102 = vunpack.c.l.b16 %v31
  %v103 = vunpack.c.l.b16 %v32
  %v104 = vunpack.c.l.b16 %v33
  %v105 = vunpack.c.l.b16 %v34
  %v106 = vunpack.c.l.b16 %v35
  %v107 = vunpack.c.l.b16 %v36
  %v108 = vunpack.c.l.b16 %v37
  %v109 = vunpack.c.l.b16 %v38
  %v110 = vunpack.c.l.b16 %v39
  %v111 = vunpack.c.l.b16 %v40
  %v112 = vunpack.c.l.b16 %v41
  %v113 = vunpack.c.l.b16 %v42
  %v114 = vunpack.c.l.b16 %v43
  %v115 = vunpack.c.l.b16 %v44
  %v116 = vunpack.c.l.b16 %v45
  %v117 = vunpack.c.l.b16 %v46
  %v118 = vunpack.c.l.b16 %v47
  %v119 = vunpack.c.l.b16 %v48
  %v120 = vunpack.c.l.b16 %v49
  %v121 = vunpack.c.l.b16 %v50
  %v122 = vunpack.c.l.b16 %v51
  %v123 = vunpack.c.l.b16 %v52
  %v124 = vunpack.c.l.b16 %v53
  %v125 = vpack.c.b16 %v94, %v93
  %v126 = vpack.c.b16 %v96, %v95
  %v127 = vpack.c.b16 %v98, %v97
  %v128 = vpack.c.b16 %v100, %v99
  %v129 = vpack.c.b16 %v102, %v101
  %v130 = vpack.c.b16 %v104, %v103
  %v131 = vpack.c.b16 %v106, %v105
  %v132 = vpack.c.b16 %v108, %v107
  %v133 = vpack.c.b16 %v110, %v109
  %v134 = vpack.c.b16 %v112, %v111
  %v135 = vpack.c.b16 %v114, %v113
  %v136 = vpack.c.b16 %v116, %v115
  %v137 = vpack.c.b16 %v118, %v117
  %v138 = vpack.c.b16 %v120, %v119
  %v139 = vpack.c.b16 %v122, %v121
  %v140 = vpack.c.b16 %v124, %v123
  %157 = vmatprep.subr.bf16.mxu0 0
  %158 = vmatpush1.bf16.msra.mxu0 %v132
  %159 = vmatprep.subr.bf16.mxu0 0
  %160 = vmatpush1.bf16.msra.mxu0 %v131
  %161 = vmatprep.subr.bf16.mxu0 0
  %162 = vmatpush1.bf16.msra.mxu0 %v130
  %163 = vmatprep.subr.bf16.mxu0 0
  %164 = vmatpush1.bf16.msra.mxu0 %v129
  %165 = vmatprep.subr.bf16.mxu0 0
  %166 = vmatpush1.bf16.msra.mxu0 %v128
  %167 = vmatprep.subr.bf16.mxu0 0
  %168 = vmatpush1.bf16.msra.mxu0 %v127
  %169 = vmatprep.subr.bf16.mxu0 0
  %170 = vmatpush1.bf16.msra.mxu0 %v126
  %171 = vmatprep.subr.bf16.mxu0 0
  %172 = vmatpush1.bf16.msra.mxu0 %v125
  %173 = vmatprep.subr.bf16.mxu0 0
  %174 = vmatpush2.bf16.msra.mxu0 %v140
  %175 = vmatprep.subr.bf16.mxu0 0
  %176 = vmatpush2.bf16.msra.mxu0 %v139
  %177 = vmatprep.subr.bf16.mxu0 0
  %178 = vmatpush2.bf16.msra.mxu0 %v138
  %179 = vmatprep.subr.bf16.mxu0 0
  %180 = vmatpush2.bf16.msra.mxu0 %v137
  %181 = vmatprep.subr.bf16.mxu0 0
  %182 = vmatpush2.bf16.msra.mxu0 %v136
  %183 = vmatprep.subr.bf16.mxu0 0
  %184 = vmatpush2.bf16.msra.mxu0 %v135
  %185 = vmatprep.subr.bf16.mxu0 0
  %186 = vmatpush2.bf16.msra.mxu0 %v134
  %187 = vmatprep.subr.bf16.mxu0 0
  %188 = vmatpush2.bf16.msra.mxu0 %v133
  %189 = vmatprep.mubr.bf16.mxu0 %v58
  %190 = vmatmul.mubr.bf16.gmra.mxu0 %v57
  %v191 = vpop.f32.mrf.mxu0
  %v192 = vadd.f32 0.0, %v191
  %v193 = vpop.f32.mrf.mxu0
  %v194 = vpop.f32.mrf.mxu0
  %v195 = vpop.f32.mrf.mxu0
  %196 = vdwg.mxu0
  %v197 = vadd.f32 %v20, %v192
  %198 = vst [vmem:[#allocation2] sm:$0xff] %v197
  // Predicated region
  $region18: #{variational_encoder_forward.48} parent=0 // pred_check
    %p199 = pneg %p15
  $region19: #{variational_encoder_forward.48} parent=0 // pred_check_branch
    %201 = sbr.rel (%p199) target = $region21
  $region20: #{variational_encoder_forward.48} parent=0 // pred_region
    %v202 = vld [vmem:[#allocation2] sm:$0xff]
    %v203 = vld [vmem:[%s2] sm:$0x1]
    %v205 = vlaneseq
    %v206 = vshrl.u32 %v205, 7
    %v207 = vsub.s32 0, %v206
    %v208 = vrot.slane %v203, %v207
    %v210 = vadd.f32 %v202, %v208
    %vm211 = vcmp.ge.f32.partialorder %v210, 0.0
    %v212 = vmul.f32 %v210, 0.2
    %v213 = vsel %vm211, %v210, %v212
    %214 = vst [vmem:[%s3] sm:$0xff] %v213
  $region21: #{variational_encoder_forward.48} parent=0 // pred_fallthru
    _
  // Predicated region
  $region22: #{variational_encoder_forward.48} parent=0 // pred_check
    _
  $region23: #{variational_encoder_forward.48} parent=0 // pred_check_branch
    %216 = sbr.rel (0) target = $region25
  $region24: #{variational_encoder_forward.48} parent=0 // pred_region
    _
  $region25: #{variational_encoder_forward.48} parent=0 // pred_fallthru
    _
  // Predicated region
  $region26: #{variational_encoder_forward.48} parent=0 // pred_check
    _
  $region27: #{variational_encoder_forward.48} parent=0 // pred_check_branch
    %218 = sbr.rel (0) target = $region29
  $region28: #{variational_encoder_forward.48} parent=0 // pred_region
    _
  $region29: #{variational_encoder_forward.48} parent=0 // pred_fallthru
    _

// kernel: variational_encoder_forward.50
$region0: #{variational_encoder_forward.50}
  #allocation0 [shape = 'u32[]', space=smem, size = 0x4, offset = 0x4, fixed_abs, tag = 'smem constant byte address 0x4 - core index']
  #allocation1 [shape = 'u32[144,128]{1,0:T(1,128)}', space=vmem, size = 0x12000, scoped, tag = 'internal scratch']
  #allocation2 [shape = 'f32[8,128]{1,0:T(8,128)}', space=vmem, size = 0x1000, scoped, tag = 'scratch operand']
  %s0 = inlined_call_operand.vmem [shape: bf16[8,128], index: 0, kind: input, shape index: {}]
  %s1 = inlined_call_operand.vmem [shape: bf16[128,128], index: 1, kind: input, shape index: {}]
  %s2 = inlined_call_operand.vmem [shape: f32[1,128], index: 2, kind: input, shape index: {}]
  %s3 = inlined_call_operand.vmem [shape: f32[8,128], index: 3, kind: output, shape index: {}]
  %s4 = sld [smem:[#allocation0]]
  $region30: #{variational_encoder_forward.50} parent=0
    _
  %s6 = ssub.s32 1, %s4
  %s7 = scalar_select 0, %s6, %s4
  // Predicated region
  $region2: #{variational_encoder_forward.50} parent=0 // pred_check
    _
  $region3: #{variational_encoder_forward.50} parent=0 // pred_check_branch
    %9 = sbr.rel (0) target = $region5
  $region4: #{variational_encoder_forward.50} parent=0 // pred_region
    _
  $region5: #{variational_encoder_forward.50} parent=0 // pred_fallthru
    _
  // Predicated region
  $region6: #{variational_encoder_forward.50} parent=0 // pred_check
    _
  $region7: #{variational_encoder_forward.50} parent=0 // pred_check_branch
    %11 = sbr.rel (0) target = $region9
  $region8: #{variational_encoder_forward.50} parent=0 // pred_region
    _
  $region9: #{variational_encoder_forward.50} parent=0 // pred_fallthru
    _
  // Predicated region
  $region10: #{variational_encoder_forward.50} parent=0 // pred_check
    _
  $region11: #{variational_encoder_forward.50} parent=0 // pred_check_branch
    %13 = sbr.rel (0) target = $region13
  $region12: #{variational_encoder_forward.50} parent=0 // pred_region
    _
  $region13: #{variational_encoder_forward.50} parent=0 // pred_fallthru
    _
  %p15 = scmp.eq.s32.totalorder 0, 0
  // Predicated region
  $region14: #{variational_encoder_forward.50} parent=0 // pred_check
    %p16 = pneg %p15
  $region15: #{variational_encoder_forward.50} parent=0 // pred_check_branch
    %18 = sbr.rel (%p16) target = $region17
  $region16: #{variational_encoder_forward.50} parent=0 // pred_region
    %19 = vst [vmem:[#allocation2] sm:$0xff] 0.0
  $region17: #{variational_encoder_forward.50} parent=0 // pred_fallthru
    _
  %v20 = vld [vmem:[#allocation2] sm:$0xff]
  %v21 = vld [vmem:[%s0] sm:$0xf]
  %v22 = vld [vmem:[%s1] sm:$0xf]
  %v23 = vld [vmem:[%s1 + $0x4] sm:$0xf]
  %v24 = vld [vmem:[%s1 + $0x8] sm:$0xf]
  %v25 = vld [vmem:[%s1 + $0xc] sm:$0xf]
  %v26 = vld [vmem:[%s1 + $0x10] sm:$0xf]
  %v27 = vld [vmem:[%s1 + $0x14] sm:$0xf]
  %v28 = vld [vmem:[%s1 + $0x18] sm:$0xf]
  %v29 = vld [vmem:[%s1 + $0x1c] sm:$0xf]
  %v30 = vld [vmem:[%s1 + $0x20] sm:$0xf]
  %v31 = vld [vmem:[%s1 + $0x24] sm:$0xf]
  %v32 = vld [vmem:[%s1 + $0x28] sm:$0xf]
  %v33 = vld [vmem:[%s1 + $0x2c] sm:$0xf]
  %v34 = vld [vmem:[%s1 + $0x30] sm:$0xf]
  %v35 = vld [vmem:[%s1 + $0x34] sm:$0xf]
  %v36 = vld [vmem:[%s1 + $0x38] sm:$0xf]
  %v37 = vld [vmem:[%s1 + $0x3c] sm:$0xf]
  %v54 = vunpack.c.l.b16 %v22
  %v55 = vunpack.c.l.b16 %v23
  %v56 = vunpack.c.l.b16 %v24
  %v57 = vunpack.c.l.b16 %v25
  %v58 = vunpack.c.l.b16 %v26
  %v59 = vunpack.c.l.b16 %v27
  %v60 = vunpack.c.l.b16 %v28
  %v61 = vunpack.c.l.b16 %v29
  %v62 = vunpack.c.l.b16 %v30
  %v63 = vunpack.c.l.b16 %v31
  %v64 = vunpack.c.l.b16 %v32
  %v65 = vunpack.c.l.b16 %v33
  %v66 = vunpack.c.l.b16 %v34
  %v67 = vunpack.c.l.b16 %v35
  %v68 = vunpack.c.l.b16 %v36
  %v69 = vunpack.c.l.b16 %v37
  %v70 = vpack.c.b16 %v55, %v54
  %v71 = vpack.c.b16 %v57, %v56
  %v72 = vpack.c.b16 %v59, %v58
  %v73 = vpack.c.b16 %v61, %v60
  %v74 = vpack.c.b16 %v63, %v62
  %v75 = vpack.c.b16 %v65, %v64
  %v76 = vpack.c.b16 %v67, %v66
  %v77 = vpack.c.b16 %v69, %v68
  %86 = vmatprep.subr.bf16.mxu0 0
  %87 = vmatpush1.bf16.msra.mxu0 %v77
  %88 = vmatprep.subr.bf16.mxu0 0
  %89 = vmatpush1.bf16.msra.mxu0 %v76
  %90 = vmatprep.subr.bf16.mxu0 0
  %91 = vmatpush1.bf16.msra.mxu0 %v75
  %92 = vmatprep.subr.bf16.mxu0 0
  %93 = vmatpush1.bf16.msra.mxu0 %v74
  %94 = vmatprep.subr.bf16.mxu0 0
  %95 = vmatpush1.bf16.msra.mxu0 %v73
  %96 = vmatprep.subr.bf16.mxu0 0
  %97 = vmatpush1.bf16.msra.mxu0 %v72
  %98 = vmatprep.subr.bf16.mxu0 0
  %99 = vmatpush1.bf16.msra.mxu0 %v71
  %100 = vmatprep.subr.bf16.mxu0 0
  %101 = vmatpush1.bf16.msra.mxu0 %v70
  %102 = vmatprep.subr.bf16.mxu0 0
  %103 = vmatpush2.bf16.msra.mxu0 0
  %104 = vmatprep.subr.bf16.mxu0 0
  %105 = vmatpush2.bf16.msra.mxu0 0
  %106 = vmatprep.subr.bf16.mxu0 0
  %107 = vmatpush2.bf16.msra.mxu0 0
  %108 = vmatprep.subr.bf16.mxu0 0
  %109 = vmatpush2.bf16.msra.mxu0 0
  %110 = vmatprep.subr.bf16.mxu0 0
  %111 = vmatpush2.bf16.msra.mxu0 0
  %112 = vmatprep.subr.bf16.mxu0 0
  %113 = vmatpush2.bf16.msra.mxu0 0
  %114 = vmatprep.subr.bf16.mxu0 0
  %115 = vmatpush2.bf16.msra.mxu0 0
  %116 = vmatprep.subr.bf16.mxu0 0
  %117 = vmatpush2.bf16.msra.mxu0 0
  %118 = vmatprep.mubr.bf16.mxu0 0
  %119 = vmatmul.mubr.bf16.gmra.mxu0 %v21
  %v120 = vpop.f32.mrf.mxu0
  %v121 = vadd.f32 0.0, %v120
  %v122 = vpop.f32.mrf.mxu0
  %v123 = vpop.f32.mrf.mxu0
  %v124 = vpop.f32.mrf.mxu0
  %125 = vdwg.mxu0
  %v126 = vadd.f32 %v20, %v121
  %127 = vst [vmem:[#allocation2] sm:$0xff] %v126
  // Predicated region
  $region18: #{variational_encoder_forward.50} parent=0 // pred_check
    %p128 = pneg %p15
  $region19: #{variational_encoder_forward.50} parent=0 // pred_check_branch
    %130 = sbr.rel (%p128) target = $region21
  $region20: #{variational_encoder_forward.50} parent=0 // pred_region
    %v131 = vld [vmem:[#allocation2] sm:$0xff]
    %v132 = vld [vmem:[%s2] sm:$0x1]
    %v134 = vlaneseq
    %v135 = vshrl.u32 %v134, 7
    %v136 = vsub.s32 0, %v135
    %v137 = vrot.slane %v132, %v136
    %v139 = vadd.f32 %v131, %v137
    %vm140 = vcmp.ge.f32.partialorder %v139, 0.0
    %v141 = vmul.f32 %v139, 0.2
    %v142 = vsel %vm140, %v139, %v141
    %143 = vst [vmem:[%s3] sm:$0xff] %v142
  $region21: #{variational_encoder_forward.50} parent=0 // pred_fallthru
    _
  // Predicated region
  $region22: #{variational_encoder_forward.50} parent=0 // pred_check
    _
  $region23: #{variational_encoder_forward.50} parent=0 // pred_check_branch
    %145 = sbr.rel (0) target = $region25
  $region24: #{variational_encoder_forward.50} parent=0 // pred_region
    _
  $region25: #{variational_encoder_forward.50} parent=0 // pred_fallthru
    _
  // Predicated region
  $region26: #{variational_encoder_forward.50} parent=0 // pred_check
    _
  $region27: #{variational_encoder_forward.50} parent=0 // pred_check_branch
    %147 = sbr.rel (0) target = $region29
  $region28: #{variational_encoder_forward.50} parent=0 // pred_region
    _
  $region29: #{variational_encoder_forward.50} parent=0 // pred_fallthru
    _

// kernel: variational_encoder_forward.56
$region0: #{variational_encoder_forward.56}
  #allocation0 [shape = 'u32[]', space=smem, size = 0x4, offset = 0x4, fixed_abs, tag = 'smem constant byte address 0x4 - core index']
  #allocation1 [shape = 'u32[144,128]{1,0:T(1,128)}', space=vmem, size = 0x12000, scoped, tag = 'internal scratch']
  #allocation2 [shape = 'f32[8,256]{1,0:T(8,128)}', space=vmem, size = 0x2000, scoped, tag = 'scratch operand']
  %s0 = inlined_call_operand.vmem [shape: bf16[8,128], index: 0, kind: input, shape index: {}]
  %s1 = inlined_call_operand.vmem [shape: bf16[128,768], index: 1, kind: input, shape index: {}]
  %s2 = inlined_call_operand.vmem [shape: f32[1,768], index: 2, kind: input, shape index: {}]
  %s3 = inlined_call_operand.vmem [shape: f32[8,768], index: 3, kind: output, shape index: {}]
  %s4 = sld [smem:[#allocation0]]
  $region91: #{variational_encoder_forward.56} parent=0
    _
  %s6 = ssub.s32 1, %s4
  %s7 = scalar_select 0, %s6, %s4
  $region1: #{variational_encoder_forward.56} parent=0
    #allocation3 [shape = 'u8[131072]{0}', space=vmem, size = 0x20000, scoped, tag = 'input window, operand 1']
    loop: start=0, step=1, limit=5
    $region2: #{variational_encoder_forward.56} parent=1 // loop_pre_header
      _
    $region3: #{variational_encoder_forward.56} parent=1 // loop_header
      %s9 = sphi 0, %s13
      %p10 = scmp.ge.s32.totalorder %s9, 5
      %s16 = sphi 0, %s35
      %s17 = sphi 0, %s31
      %s18 = sphi 0, %s27
      %s19 = sphi 0, %s16
      %s20 = sphi 0, %s17
      %s21 = sphi 0, %s18
      %s22 = sphi 0, %s19
      %s23 = sphi 0, %s20
      %s24 = sphi 0, %s21
      %s40 = sphi 0, %s42
      %s43 = sphi 0, %s40
      %s44 = sphi 0, %s43
      %s60 = sphi 0, %s44
      %s68 = sphi 0, %s70
      %s71 = sphi 0, %s68
      %s72 = sphi 0, %s71
      %s88 = sphi 0, %s72
      %s94 = sphi 0, %s96
      %s97 = sphi 0, %s94
      %s98 = sphi 0, %s97
      %s114 = sphi 0, %s98
      %s122 = sphi 0, %s124
      %s125 = sphi 0, %s122
      %s126 = sphi 0, %s125
      %s142 = sphi 0, %s126
    $region4: #{variational_encoder_forward.56} parent=1 // loop_header_branch
      %12 = sbr.rel (%p10) target = $region8
    $region5: #{variational_encoder_forward.56} parent=1 // loop_body
      %s14 = ssub.s32 %s9, 1
      %s15 = ssub.s32 %s9, 2
      %s25 = sadd.s32 1, %s18
      %p26 = scmp.ge.s32.totalorder %s25, 1
      %s27 = scalar_select %p26, 0, %s25
      %s28 = sadd.s32 1, %s17
      %s29 = scalar_select %p26, %s28, %s17
      %p30 = scmp.ge.s32.totalorder %s29, 3
      %s31 = scalar_select %p30, 0, %s29
      %s32 = sadd.s32 1, %s16
      %s33 = scalar_select %p30, %s32, %s16
      %p34 = scmp.ge.s32.totalorder %s33, 1
      %s35 = scalar_select %p34, 0, %s33
      %s36 = ssub.s32 %s16, %s35
      %s37 = ssub.s32 %s18, %s27
      %s38 = sor.u32 %s36, %s37
      %p39 = scmp.eq.s32.totalorder %s38, 0
      %s41 = sadd.s32 %s40, 1
      %s42 = scalar_select %p39, %s40, %s41
      %p45 = pneg %p39
      %p46 = scmp.eq.s32.totalorder %s9, 2
      %p47 = por %p45, %p46
      %p48 = scmp.ne.s32.totalorder %s40, %s43
      %p49 = scmp.eq.s32.totalorder %s9, 0
      %p50 = por %p48, %p49
      %p51 = scmp.ne.s32.totalorder %s40, %s43
      %p52 = scmp.eq.s32.totalorder %s14, 2
      %p53 = por %p51, %p52
      %p54 = scmp.ne.s32.totalorder %s43, %s44
      %p55 = scmp.eq.s32.totalorder %s14, 0
      %p56 = por %p54, %p55
      %p57 = scmp.ne.s32.totalorder %s43, %s44
      %p58 = scmp.eq.s32.totalorder %s15, 2
      %p59 = por %p57, %p58
      %p61 = scmp.ne.s32.totalorder %s44, %s60
      %p62 = scmp.eq.s32.totalorder %s15, 0
      %p63 = por %p61, %p62
      %s64 = ssub.s32 %s18, %s27
      %s65 = ssub.s32 %s17, %s31
      %s66 = sor.u32 %s64, %s65
      %p67 = scmp.eq.s32.totalorder %s66, 0
      %s69 = sadd.s32 %s68, 1
      %s70 = scalar_select %p67, %s68, %s69
      %p73 = pneg %p67
      %p74 = scmp.eq.s32.totalorder %s9, 2
      %p75 = por %p73, %p74
      %p76 = scmp.ne.s32.totalorder %s68, %s71
      %p77 = scmp.eq.s32.totalorder %s9, 0
      %p78 = por %p76, %p77
      %p79 = scmp.ne.s32.totalorder %s68, %s71
      %p80 = scmp.eq.s32.totalorder %s14, 2
      %p81 = por %p79, %p80
      %p82 = scmp.ne.s32.totalorder %s71, %s72
      %p83 = scmp.eq.s32.totalorder %s14, 0
      %p84 = por %p82, %p83
      %p85 = scmp.ne.s32.totalorder %s71, %s72
      %p86 = scmp.eq.s32.totalorder %s15, 2
      %p87 = por %p85, %p86
      %p89 = scmp.ne.s32.totalorder %s72, %s88
      %p90 = scmp.eq.s32.totalorder %s15, 0
      %p91 = por %p89, %p90
      %s92 = ssub.s32 %s17, %s31
      %p93 = scmp.eq.s32.totalorder %s92, 0
      %s95 = sadd.s32 %s94, 1
      %s96 = scalar_select %p93, %s94, %s95
      %p99 = pneg %p93
      %p100 = scmp.eq.s32.totalorder %s9, 2
      %p101 = por %p99, %p100
      %p102 = scmp.ne.s32.totalorder %s94, %s97
      %p103 = scmp.eq.s32.totalorder %s9, 0
      %p104 = por %p102, %p103
      %p105 = scmp.ne.s32.totalorder %s94, %s97
      %p106 = scmp.eq.s32.totalorder %s14, 2
      %p107 = por %p105, %p106
      %p108 = scmp.ne.s32.totalorder %s97, %s98
      %p109 = scmp.eq.s32.totalorder %s14, 0
      %p110 = por %p108, %p109
      %p111 = scmp.ne.s32.totalorder %s97, %s98
      %p112 = scmp.eq.s32.totalorder %s15, 2
      %p113 = por %p111, %p112
      %p115 = scmp.ne.s32.totalorder %s98, %s114
      %p116 = scmp.eq.s32.totalorder %s15, 0
      %p117 = por %p115, %p116
      %s118 = ssub.s32 %s16, %s35
      %s119 = ssub.s32 %s17, %s31
      %s120 = sor.u32 %s118, %s119
      %p121 = scmp.eq.s32.totalorder %s120, 0
      %s123 = sadd.s32 %s122, 1
      %s124 = scalar_select %p121, %s122, %s123
      %p127 = pneg %p121
      %p128 = scmp.eq.s32.totalorder %s9, 2
      %p129 = por %p127, %p128
      %p130 = scmp.ne.s32.totalorder %s122, %s125
      %p131 = scmp.eq.s32.totalorder %s9, 0
      %p132 = por %p130, %p131
      %p133 = scmp.ne.s32.totalorder %s122, %s125
      %p134 = scmp.eq.s32.totalorder %s14, 2
      %p135 = por %p133, %p134
      %p136 = scmp.ne.s32.totalorder %s125, %s126
      %p137 = scmp.eq.s32.totalorder %s14, 0
      %p138 = por %p136, %p137
      %p139 = scmp.ne.s32.totalorder %s125, %s126
      %p140 = scmp.eq.s32.totalorder %s15, 2
      %p141 = por %p139, %p140
      %p143 = scmp.ne.s32.totalorder %s126, %s142
      %p144 = scmp.eq.s32.totalorder %s15, 0
      %p145 = por %p143, %p144
      %p146 = scmp.le.s32.totalorder 1, %s9
      %p147 = scmp.lt.s32.totalorder %s9, 4
      %p148 = pnand %p146, %p147
      %p149 = pneg %p148
      // Predicated region
      $region9: #{variational_encoder_forward.56} parent=5 // pred_check
        _
      $region10: #{variational_encoder_forward.56} parent=5 // pred_check_branch
        %151 = sbr.rel (%p148) target = $region12
      $region11: #{variational_encoder_forward.56} parent=5 // pred_region
        %s152 = ssub.s32 %s9, 1
        // Predicated region
        $region13: #{variational_encoder_forward.56} parent=11 // pred_check
          %p153 = pneg %p56
        $region14: #{variational_encoder_forward.56} parent=11 // pred_check_branch
          %155 = sbr.rel (%p153) target = $region16
        $region15: #{variational_encoder_forward.56} parent=11 // pred_region
          %p156 = scmp.lt.s32.totalorder %s19, 0
          %s157 = scalar_select %p156, %s19, 0
          %p158 = scmp.lt.s32.totalorder %s21, 0
          %s159 = scalar_select %p158, %s21, 0
          %s160 = sadd.s32 %s159, %s157
          %s161 = smul.addr %s160, 4
          %s162 = scalar_lea.vmem %s0, %s161
        $region16: #{variational_encoder_forward.56} parent=11 // pred_fallthru
          _
      $region12: #{variational_encoder_forward.56} parent=5 // pred_fallthru
        _
      %p163 = scmp.lt.s32.totalorder %s9, 3
      // Predicated region
      $region17: #{variational_encoder_forward.56} parent=5 // pred_check
        %p164 = pneg %p163
      $region18: #{variational_encoder_forward.56} parent=5 // pred_check_branch
        %166 = sbr.rel (%p164) target = $region20
      $region19: #{variational_encoder_forward.56} parent=5 // pred_region
        // Predicated region
        $region21: #{variational_encoder_forward.56} parent=19 // pred_check
          %p167 = pneg %p78
        $region22: #{variational_encoder_forward.56} parent=19 // pred_check_branch
          %169 = sbr.rel (%p167) target = $region24
        $region23: #{variational_encoder_forward.56} parent=19 // pred_region
          %s170 = sand.u32 %s68, 1
          %s171 = sand.u32 %s68, 1
          %s172 = smul.addr %s171, 128
          %s173 = scalar_lea.vmem [#allocation3], %s172
          %s174 = smul.u32 16, %s18
          %s175 = smul.u32 2, %s17
          %s176 = smul.addr %s174, 6
          %s177 = sadd.s32 %s175, %s176
          %s178 = smul.addr %s177, 4
          %s179 = scalar_lea.vmem %s1, %s178
          // Predicated region
          $region25: #{variational_encoder_forward.56} parent=23 // pred_check
            _
          $region26: #{variational_encoder_forward.56} parent=23 // pred_check_branch
            %181 = sbr.rel (0) target = $region28
          $region27: #{variational_encoder_forward.56} parent=23 // pred_region
            // Predicated region
            $region29: #{variational_encoder_forward.56} parent=27 // pred_check
              _
            $region30: #{variational_encoder_forward.56} parent=27 // pred_check_branch
              %183 = sbr.rel (0) target = $region32
            $region31: #{variational_encoder_forward.56} parent=27 // pred_region
              // Predicated region
              $region44: #{variational_encoder_forward.56} parent=31 // pred_check
                _
              $region45: #{variational_encoder_forward.56} parent=31 // pred_check_branch
                %229 = sbr.rel (0) target = $region47
              $region46: #{variational_encoder_forward.56} parent=31 // pred_region
                loop: start=0, step=1, limit=1
                $region48: #{variational_encoder_forward.56} parent=46 // loop_pre_header
                  _
                $region49: #{variational_encoder_forward.56} parent=46 // loop_header
                  %s231 = sphi 0, %s235
                  %p232 = scmp.ge.s32.totalorder %s231, 1
                  %s236 = sphi %s179, %s179
                  %s237 = sphi %s173, %s173
                $region50: #{variational_encoder_forward.56} parent=46 // loop_header_branch
                  %234 = sbr.rel (%p232) target = $region54
                $region51: #{variational_encoder_forward.56} parent=46 // loop_body
                  %v238 = vld [vmem:[%s236] sm:$0xff]
                  %239 = vst [vmem:[%s237] sm:$0xff] %v238
                  %v240 = vld [vmem:[%s236 + $0x18] sm:$0xff]
                  %241 = vst [vmem:[%s237 + $0x8] sm:$0xff] %v240
                  %v242 = vld [vmem:[%s236 + $0x30] sm:$0xff]
                  %243 = vst [vmem:[%s237 + $0x10] sm:$0xff] %v242
                  %v244 = vld [vmem:[%s236 + $0x48] sm:$0xff]
                  %245 = vst [vmem:[%s237 + $0x18] sm:$0xff] %v244
                  %v246 = vld [vmem:[%s236 + $0x60] sm:$0xff]
                  %247 = vst [vmem:[%s237 + $0x20] sm:$0xff] %v246
                  %v248 = vld [vmem:[%s236 + $0x78] sm:$0xff]
                  %249 = vst [vmem:[%s237 + $0x28] sm:$0xff] %v248
                  %v250 = vld [vmem:[%s236 + $0x90] sm:$0xff]
                  %251 = vst [vmem:[%s237 + $0x30] sm:$0xff] %v250
                  %v252 = vld [vmem:[%s236 + $0xa8] sm:$0xff]
                  %253 = vst [vmem:[%s237 + $0x38] sm:$0xff] %v252
                  %v254 = vld [vmem:[%s236 + $0xc0] sm:$0xff]
                  %255 = vst [vmem:[%s237 + $0x40] sm:$0xff] %v254
                  %v256 = vld [vmem:[%s236 + $0xd8] sm:$0xff]
                  %257 = vst [vmem:[%s237 + $0x48] sm:$0xff] %v256
                  %v258 = vld [vmem:[%s236 + $0xf0] sm:$0xff]
                  %259 = vst [vmem:[%s237 + $0x50] sm:$0xff] %v258
                  %v260 = vld [vmem:[%s236 + $0x108] sm:$0xff]
                  %261 = vst [vmem:[%s237 + $0x58] sm:$0xff] %v260
                  %v262 = vld [vmem:[%s236 + $0x120] sm:$0xff]
                  %263 = vst [vmem:[%s237 + $0x60] sm:$0xff] %v262
                  %v264 = vld [vmem:[%s236 + $0x138] sm:$0xff]
                  %265 = vst [vmem:[%s237 + $0x68] sm:$0xff] %v264
                  %v266 = vld [vmem:[%s236 + $0x150] sm:$0xff]
                  %267 = vst [vmem:[%s237 + $0x70] sm:$0xff] %v266
                  %v268 = vld [vmem:[%s236 + $0x168] sm:$0xff]
                  %269 = vst [vmem:[%s237 + $0x78] sm:$0xff] %v268
                $region52: #{variational_encoder_forward.56} parent=46 // loop_footer
                  %s235 = sadd.s32 1, %s231
                $region53: #{variational_encoder_forward.56} parent=46 // loop_footer_branch
                  %230 = sbr.rel target = $region49
                $region54: #{variational_encoder_forward.56} parent=46 // loop_exit
                  _
              $region47: #{variational_encoder_forward.56} parent=31 // pred_fallthru
                _
              // Predicated region
              $region55: #{variational_encoder_forward.56} parent=31 // pred_check
                _
              $region56: #{variational_encoder_forward.56} parent=31 // pred_check_branch
                %271 = sbr.rel target = $region58
              $region57: #{variational_encoder_forward.56} parent=31 // pred_region
                _
              $region58: #{variational_encoder_forward.56} parent=31 // pred_fallthru
                _
            $region32: #{variational_encoder_forward.56} parent=27 // pred_fallthru
              _
            // Predicated region
            $region33: #{variational_encoder_forward.56} parent=27 // pred_check
              _
            $region34: #{variational_encoder_forward.56} parent=27 // pred_check_branch
              %185 = sbr.rel target = $region36
            $region35: #{variational_encoder_forward.56} parent=27 // pred_region
              %s187 = ssub.s32 256, 1
              loop: start=0, step=1, limit=1
              $region37: #{variational_encoder_forward.56} parent=35 // loop_pre_header
                _
              $region38: #{variational_encoder_forward.56} parent=35 // loop_header
                %s189 = sphi 0, %s193
                %p190 = scmp.ge.s32.totalorder %s189, 1
                %s194 = sphi %s179, %s179
                %s195 = sphi %s173, %s173
              $region39: #{variational_encoder_forward.56} parent=35 // loop_header_branch
                %192 = sbr.rel (%p190) target = $region43
              $region40: #{variational_encoder_forward.56} parent=35 // loop_body
                %v196 = vld [vmem:[%s194] sm:%s187]
                %197 = vst [vmem:[%s195] sm:%s187] %v196
                %v198 = vld [vmem:[%s194 + $0x18] sm:%s187]
                %199 = vst [vmem:[%s195 + $0x8] sm:%s187] %v198
                %v200 = vld [vmem:[%s194 + $0x30] sm:%s187]
                %201 = vst [vmem:[%s195 + $0x10] sm:%s187] %v200
                %v202 = vld [vmem:[%s194 + $0x48] sm:%s187]
                %203 = vst [vmem:[%s195 + $0x18] sm:%s187] %v202
                %v204 = vld [vmem:[%s194 + $0x60] sm:%s187]
                %205 = vst [vmem:[%s195 + $0x20] sm:%s187] %v204
                %v206 = vld [vmem:[%s194 + $0x78] sm:%s187]
                %207 = vst [vmem:[%s195 + $0x28] sm:%s187] %v206
                %v208 = vld [vmem:[%s194 + $0x90] sm:%s187]
                %209 = vst [vmem:[%s195 + $0x30] sm:%s187] %v208
                %v210 = vld [vmem:[%s194 + $0xa8] sm:%s187]
                %211 = vst [vmem:[%s195 + $0x38] sm:%s187] %v210
                %v212 = vld [vmem:[%s194 + $0xc0] sm:%s187]
                %213 = vst [vmem:[%s195 + $0x40] sm:%s187] %v212
                %v214 = vld [vmem:[%s194 + $0xd8] sm:%s187]
                %215 = vst [vmem:[%s195 + $0x48] sm:%s187] %v214
                %v216 = vld [vmem:[%s194 + $0xf0] sm:%s187]
                %217 = vst [vmem:[%s195 + $0x50] sm:%s187] %v216
                %v218 = vld [vmem:[%s194 + $0x108] sm:%s187]
                %219 = vst [vmem:[%s195 + $0x58] sm:%s187] %v218
                %v220 = vld [vmem:[%s194 + $0x120] sm:%s187]
                %221 = vst [vmem:[%s195 + $0x60] sm:%s187] %v220
                %v222 = vld [vmem:[%s194 + $0x138] sm:%s187]
                %223 = vst [vmem:[%s195 + $0x68] sm:%s187] %v222
                %v224 = vld [vmem:[%s194 + $0x150] sm:%s187]
                %225 = vst [vmem:[%s195 + $0x70] sm:%s187] %v224
                %v226 = vld [vmem:[%s194 + $0x168] sm:%s187]
                %227 = vst [vmem:[%s195 + $0x78] sm:%s187] %v226
              $region41: #{variational_encoder_forward.56} parent=35 // loop_footer
                %s193 = sadd.s32 1, %s189
              $region42: #{variational_encoder_forward.56} parent=35 // loop_footer_branch
                %188 = sbr.rel target = $region38
              $region43: #{variational_encoder_forward.56} parent=35 // loop_exit
                _
            $region36: #{variational_encoder_forward.56} parent=27 // pred_fallthru
              _
          $region28: #{variational_encoder_forward.56} parent=23 // pred_fallthru
            _
          %272 = vnop
        $region24: #{variational_encoder_forward.56} parent=19 // pred_fallthru
          _
        // Predicated region
        $region59: #{variational_encoder_forward.56} parent=19 // pred_check
          %p273 = pneg %p104
        $region60: #{variational_encoder_forward.56} parent=19 // pred_check_branch
          %275 = sbr.rel (%p273) target = $region62
        $region61: #{variational_encoder_forward.56} parent=19 // pred_region
          %s276 = smul.u32 2, %s17
          %p277 = scmp.lt.s32.totalorder %s276, 5
          %s278 = scalar_select %p277, %s276, 5
          %s279 = scalar_lea.vmem %s2, %s278
          %s280 = smul.u32 2, %s17
        $region62: #{variational_encoder_forward.56} parent=19 // pred_fallthru
          _
      $region20: #{variational_encoder_forward.56} parent=5 // pred_fallthru
        _
      %p281 = scmp.le.s32.totalorder 1, %s9
      %p282 = scmp.lt.s32.totalorder %s9, 4
      %p283 = pnand %p281, %p282
      %p284 = pneg %p283
      // Predicated region
      $region63: #{variational_encoder_forward.56} parent=5 // pred_check
        _
      $region64: #{variational_encoder_forward.56} parent=5 // pred_check_branch
        %286 = sbr.rel (%p283) target = $region66
      $region65: #{variational_encoder_forward.56} parent=5 // pred_region
        %s287 = ssub.s32 %s9, 1
        %s288 = sand.u32 %s71, 1
        %s289 = sand.u32 %s71, 1
        %s290 = smul.addr %s289, 128
        %s291 = scalar_lea.vmem [#allocation3], %s290
        // Predicated region
        $region67: #{variational_encoder_forward.56} parent=65 // pred_check
          %p292 = pneg %p84
        $region68: #{variational_encoder_forward.56} parent=65 // pred_check_branch
          %294 = sbr.rel (%p292) target = $region70
        $region69: #{variational_encoder_forward.56} parent=65 // pred_region
          _
        $region70: #{variational_encoder_forward.56} parent=65 // pred_fallthru
          _
        %p295 = scmp.lt.s32.totalorder %s19, 0
        %s296 = scalar_select %p295, %s19, 0
        %p297 = scmp.lt.s32.totalorder %s21, 0
        %s298 = scalar_select %p297, %s21, 0
        %s299 = sadd.s32 %s298, %s296
        %s300 = smul.addr %s299, 4
        %s301 = scalar_lea.vmem %s0, %s300
        %p302 = pneg %p56
        %p303 = pneg %p53
        %s304 = sand.u32 %s71, 1
        %s305 = sand.u32 %s71, 1
        %s306 = smul.addr %s305, 128
        %s307 = scalar_lea.vmem [#allocation3], %s306
        %p308 = pneg %p84
        %p309 = pneg %p81
        %s310 = smul.u32 2, %s20
        %p311 = scmp.lt.s32.totalorder %s310, 5
        %s312 = scalar_select %p311, %s310, 5
        %s313 = scalar_lea.vmem %s2, %s312
        %p314 = pneg %p110
        %p315 = pneg %p107
        %p316 = pneg %p138
        %p317 = pneg %p135
        %s318 = smul.u32 2, %s20
        %p319 = scmp.lt.s32.totalorder %s19, 0
        %s320 = scalar_select %p319, %s19, 0
        %p321 = scmp.lt.s32.totalorder %s318, 5
        %s322 = scalar_select %p321, %s318, 5
        %s323 = smul.addr %s320, 6
        %s324 = sadd.s32 %s322, %s323
        %s325 = smul.addr %s324, 8
        %s326 = scalar_lea.vmem %s3, %s325
        %p327 = scmp.lt.s32.totalorder %s19, 0
        %s328 = scalar_select %p327, %s19, 0
        %p329 = scmp.lt.s32.totalorder %s21, 0
        %s330 = scalar_select %p329, %s21, 0
        %s331 = sadd.s32 %s330, %s328
        %s332 = smul.addr %s331, 4
        %s333 = scalar_lea.vmem %s0, %s332
        %s334 = smul.u32 16, %s21
        %s335 = smul.u32 2, %s20
        %s336 = smul.u32 2, %s20
        %p337 = scmp.lt.s32.totalorder %s336, 5
        %s338 = scalar_select %p337, %s336, 5
        %s339 = scalar_lea.vmem %s2, %s338
        %s340 = smul.u32 2, %s20
        %s341 = smul.u32 2, %s20
        %p342 = scmp.lt.s32.totalorder %s19, 0
        %s343 = scalar_select %p342, %s19, 0
        %p344 = scmp.lt.s32.totalorder %s341, 5
        %s345 = scalar_select %p344, %s341, 5
        %s346 = smul.addr %s343, 6
        %s347 = sadd.s32 %s345, %s346
        %s348 = smul.addr %s347, 8
        %s349 = scalar_lea.vmem %s3, %s348
        %s350 = smul.u32 2, %s20
        %p352 = scmp.eq.s32.totalorder %s21, 0
        // Predicated region
        $region71: #{variational_encoder_forward.56} parent=65 // pred_check
          %p353 = pneg %p352
        $region72: #{variational_encoder_forward.56} parent=65 // pred_check_branch
          %355 = sbr.rel (%p353) target = $region74
        $region73: #{variational_encoder_forward.56} parent=65 // pred_region
          %356 = vst [vmem:[#allocation2] sm:$0xff] 0.0
          %357 = vst [vmem:[#allocation2 + $0x8] sm:$0xff] 0.0
        $region74: #{variational_encoder_forward.56} parent=65 // pred_fallthru
          _
        %v358 = vld [vmem:[#allocation2] sm:$0xff]
        %v359 = vld [vmem:[#allocation2 + $0x8] sm:$0xff]
        %v360 = vld [vmem:[%s333] sm:$0xf]
        %v361 = vld [vmem:[%s291] sm:$0xff]
        %v362 = vld [vmem:[%s291 + $0x8] sm:$0xff]
        %v363 = vld [vmem:[%s291 + $0x10] sm:$0xff]
        %v364 = vld [vmem:[%s291 + $0x18] sm:$0xff]
        %v365 = vld [vmem:[%s291 + $0x20] sm:$0xff]
        %v366 = vld [vmem:[%s291 + $0x28] sm:$0xff]
        %v367 = vld [vmem:[%s291 + $0x30] sm:$0xff]
        %v368 = vld [vmem:[%s291 + $0x38] sm:$0xff]
        %v369 = vld [vmem:[%s291 + $0x40] sm:$0xff]
        %v370 = vld [vmem:[%s291 + $0x48] sm:$0xff]
        %v371 = vld [vmem:[%s291 + $0x50] sm:$0xff]
        %v372 = vld [vmem:[%s291 + $0x58] sm:$0xff]
        %v373 = vld [vmem:[%s291 + $0x60] sm:$0xff]
        %v374 = vld [vmem:[%s291 + $0x68] sm:$0xff]
        %v375 = vld [vmem:[%s291 + $0x70] sm:$0xff]
        %v376 = vld [vmem:[%s291 + $0x78] sm:$0xff]
        %v393 = vunpack.c.l.b16 %v361
        %v394 = vunpack.c.h.b16 %v361
        %v395 = vunpack.c.l.b16 %v362
        %v396 = vunpack.c.h.b16 %v362
        %v397 = vunpack.c.l.b16 %v363
        %v398 = vunpack.c.h.b16 %v363
        %v399 = vunpack.c.l.b16 %v364
        %v400 = vunpack.c.h.b16 %v364
        %v401 = vunpack.c.l.b16 %v365
        %v402 = vunpack.c.h.b16 %v365
        %v403 = vunpack.c.l.b16 %v366
        %v404 = vunpack.c.h.b16 %v366
        %v405 = vunpack.c.l.b16 %v367
        %v406 = vunpack.c.h.b16 %v367
        %v407 = vunpack.c.l.b16 %v368
        %v408 = vunpack.c.h.b16 %v368
        %v409 = vunpack.c.l.b16 %v369
        %v410 = vunpack.c.h.b16 %v369
        %v411 = vunpack.c.l.b16 %v370
        %v412 = vunpack.c.h.b16 %v370
        %v413 = vunpack.c.l.b16 %v371
        %v414 = vunpack.c.h.b16 %v371
        %v415 = vunpack.c.l.b16 %v372
        %v416 = vunpack.c.h.b16 %v372
        %v417 = vunpack.c.l.b16 %v373
        %v418 = vunpack.c.h.b16 %v373
        %v419 = vunpack.c.l.b16 %v374
        %v420 = vunpack.c.h.b16 %v374
        %v421 = vunpack.c.l.b16 %v375
        %v422 = vunpack.c.h.b16 %v375
        %v423 = vunpack.c.l.b16 %v376
        %v424 = vunpack.c.h.b16 %v376
        %v425 = vpack.c.b16 %v395, %v393
        %v426 = vpack.c.b16 %v396, %v394
        %v427 = vpack.c.b16 %v399, %v397
        %v428 = vpack.c.b16 %v400, %v398
        %v429 = vpack.c.b16 %v403, %v401
        %v430 = vpack.c.b16 %v404, %v402
        %v431 = vpack.c.b16 %v407, %v405
        %v432 = vpack.c.b16 %v408, %v406
        %v433 = vpack.c.b16 %v411, %v409
        %v434 = vpack.c.b16 %v412, %v410
        %v435 = vpack.c.b16 %v415, %v413
        %v436 = vpack.c.b16 %v416, %v414
        %v437 = vpack.c.b16 %v419, %v417
        %v438 = vpack.c.b16 %v420, %v418
        %v439 = vpack.c.b16 %v423, %v421
        %v440 = vpack.c.b16 %v424, %v422
        %457 = vmatprep.subr.bf16.mxu0 %v440
        %458 = vmatpush1.bf16.msra.mxu0 %v439
        %459 = vmatprep.subr.bf16.mxu0 %v438
        %460 = vmatpush1.bf16.msra.mxu0 %v437
        %461 = vmatprep.subr.bf16.mxu0 %v436
        %462 = vmatpush1.bf16.msra.mxu0 %v435
        %463 = vmatprep.subr.bf16.mxu0 %v434
        %464 = vmatpush1.bf16.msra.mxu0 %v433
        %465 = vmatprep.subr.bf16.mxu0 %v432
        %466 = vmatpush1.bf16.msra.mxu0 %v431
        %467 = vmatprep.subr.bf16.mxu0 %v430
        %468 = vmatpush1.bf16.msra.mxu0 %v429
        %469 = vmatprep.subr.bf16.mxu0 %v428
        %470 = vmatpush1.bf16.msra.mxu0 %v427
        %471 = vmatprep.subr.bf16.mxu0 %v426
        %472 = vmatpush1.bf16.msra.mxu0 %v425
        %473 = vmatprep.subr.bf16.mxu0 0
        %474 = vmatpush2.bf16.msra.mxu0 0
        %475 = vmatprep.subr.bf16.mxu0 0
        %476 = vmatpush2.bf16.msra.mxu0 0
        %477 = vmatprep.subr.bf16.mxu0 0
        %478 = vmatpush2.bf16.msra.mxu0 0
        %479 = vmatprep.subr.bf16.mxu0 0
        %480 = vmatpush2.bf16.msra.mxu0 0
        %481 = vmatprep.subr.bf16.mxu0 0
        %482 = vmatpush2.bf16.msra.mxu0 0
        %483 = vmatprep.subr.bf16.mxu0 0
        %484 = vmatpush2.bf16.msra.mxu0 0
        %485 = vmatprep.subr.bf16.mxu0 0
        %486 = vmatpush2.bf16.msra.mxu0 0
        %487 = vmatprep.subr.bf16.mxu0 0
        %488 = vmatpush2.bf16.msra.mxu0 0
        %489 = vmatprep.mubr.bf16.mxu0 0
        %490 = vmatmul.mubr.bf16.gmra.mxu0 %v360
        %v491 = vpop.f32.mrf.mxu0
        %v492 = vadd.f32 0.0, %v491
        %v493 = vpop.f32.mrf.mxu0
        %v494 = vadd.f32 0.0, %v493
        %v495 = vpop.f32.mrf.mxu0
        %v496 = vpop.f32.mrf.mxu0
        %497 = vdwg.mxu0
        %v498 = vadd.f32 %v358, %v492
        %v499 = vadd.f32 %v359, %v494
        %500 = vst [vmem:[#allocation2] sm:$0xff] %v498
        %501 = vst [vmem:[#allocation2 + $0x8] sm:$0xff] %v499
        // Predicated region
        $region75: #{variational_encoder_forward.56} parent=65 // pred_check
          %p502 = pneg %p352
        $region76: #{variational_encoder_forward.56} parent=65 // pred_check_branch
          %504 = sbr.rel (%p502) target = $region78
        $region77: #{variational_encoder_forward.56} parent=65 // pred_region
          %v505 = vld [vmem:[#allocation2] sm:$0xff]
          %v506 = vld [vmem:[#allocation2 + $0x8] sm:$0xff]
          %v507 = vld [vmem:[%s339] sm:$0x3]
          %v509 = vlaneseq
          %v510 = vshrl.u32 %v509, 7
          %v511 = vsub.s32 0, %v510
          %v512 = vrot.slane %v507, %v511
          %v513 = vlaneseq
          %v514 = vshrl.u32 %v513, 7
          %v515 = vsub.s32 1, %v514
          %v516 = vrot.slane %v507, %v515
          %v519 = vadd.f32 %v505, %v512
          %v520 = vadd.f32 %v506, %v516
          %521 = vst [vmem:[%s349] sm:$0xff] %v519
          %522 = vst [vmem:[%s349 + $0x8] sm:$0xff] %v520
        $region78: #{variational_encoder_forward.56} parent=65 // pred_fallthru
          _
        %s523 = smul.u32 2, %s20
        %p524 = scmp.lt.s32.totalorder %s19, 0
        %s525 = scalar_select %p524, %s19, 0
        %p526 = scmp.lt.s32.totalorder %s523, 5
        %s527 = scalar_select %p526, %s523, 5
        %s528 = smul.addr %s525, 6
        %s529 = sadd.s32 %s527, %s528
        %s530 = smul.addr %s529, 8
        %s531 = scalar_lea.vmem %s3, %s530
        // Predicated region
        $region79: #{variational_encoder_forward.56} parent=65 // pred_check
          %p532 = pneg %p135
        $region80: #{variational_encoder_forward.56} parent=65 // pred_check_branch
          %534 = sbr.rel (%p532) target = $region82
        $region81: #{variational_encoder_forward.56} parent=65 // pred_region
          %s535 = smul.u32 2, %s20
        $region82: #{variational_encoder_forward.56} parent=65 // pred_fallthru
          _
      $region66: #{variational_encoder_forward.56} parent=5 // pred_fallthru
        _
      %p536 = scmp.le.s32.totalorder 2, %s9
      // Predicated region
      $region83: #{variational_encoder_forward.56} parent=5 // pred_check
        %p537 = pneg %p536
      $region84: #{variational_encoder_forward.56} parent=5 // pred_check_branch
        %539 = sbr.rel (%p537) target = $region86
      $region85: #{variational_encoder_forward.56} parent=5 // pred_region
        %s540 = ssub.s32 %s9, 2
        // Predicated region
        $region87: #{variational_encoder_forward.56} parent=85 // pred_check
          %p541 = pneg %p141
        $region88: #{variational_encoder_forward.56} parent=85 // pred_check_branch
          %543 = sbr.rel (%p541) target = $region90
        $region89: #{variational_encoder_forward.56} parent=85 // pred_region
          %s544 = smul.u32 2, %s23
          %p545 = scmp.lt.s32.totalorder %s22, 0
          %s546 = scalar_select %p545, %s22, 0
          %p547 = scmp.lt.s32.totalorder %s544, 5
          %s548 = scalar_select %p547, %s544, 5
          %s549 = smul.addr %s546, 6
          %s550 = sadd.s32 %s548, %s549
          %s551 = smul.addr %s550, 8
          %s552 = scalar_lea.vmem %s3, %s551
        $region90: #{variational_encoder_forward.56} parent=85 // pred_fallthru
          _
      $region86: #{variational_encoder_forward.56} parent=5 // pred_fallthru
        _
    $region6: #{variational_encoder_forward.56} parent=1 // loop_footer
      %s13 = sadd.s32 1, %s9
    $region7: #{variational_encoder_forward.56} parent=1 // loop_footer_branch
      %8 = sbr.rel target = $region3
    $region8: #{variational_encoder_forward.56} parent=1 // loop_exit
      _

// kernel: variational_encoder_forward.57
$region0: #{variational_encoder_forward.57}
  #allocation0 [shape = 'u32[]', space=smem, size = 0x4, offset = 0x4, fixed_abs, tag = 'smem constant byte address 0x4 - core index']
  #allocation1 [shape = 'u32[144,128]{1,0:T(1,128)}', space=vmem, size = 0x12000, scoped, tag = 'internal scratch']
  #allocation2 [shape = 'f32[8,128]{1,0:T(8,128)}', space=vmem, size = 0x1000, scoped, tag = 'scratch operand']
  #allocation3 [shape = 's32[1]{0}', space=sflag, size = 0x4, scoped, tag = 'scoped memory for variational_encoder_forward.57']
  #allocation4 [shape = 'u8[512]{0}', space=smem, size = 0x200, scoped, tag = 'prefetched SMEM operand 0']
  %s0 = inlined_call_operand.vmem [shape: s32[2], index: 0, kind: input, shape index: {}]
  %s1 = inlined_call_operand.vmem [shape: f32[2,4,8,384], index: 1, kind: input, shape index: {}]
  %s2 = inlined_call_operand.vmem [shape: f32[2,128,384], index: 2, kind: input, shape index: {}]
  %s3 = inlined_call_operand.vmem [shape: f32[2,1,384], index: 3, kind: input, shape index: {}]
  %s4 = inlined_call_operand.vmem [shape: f32[2,4,8,128], index: 4, kind: output, shape index: {}]
  %s5 = sld [smem:[#allocation0]]
  $region52: #{variational_encoder_forward.57} parent=0
    _
  %s7 = ssub.s32 1, %s5
  %s8 = scalar_select 0, %s7, %s5
  %s9 = sshll.u32 %s0, 4
  %s10 = int_to_ptr.vmem [resolvable:$true] %s9
  %12 = dma.vmem_to_smem %s10, 16, [#allocation4], [#allocation3]
  %13 = dma.done [#allocation3], 16
  %14 = sfence
  loop: start=0, step=1, limit=4
  $region2: #{variational_encoder_forward.57} parent=0 // loop_pre_header
    _
  $region3: #{variational_encoder_forward.57} parent=0 // loop_header
    %s16 = sphi 0, %s20
    %p17 = scmp.ge.s32.totalorder %s16, 4
    %s26 = sphi 0, %s28
    %s29 = sphi 0, %s26
    %s30 = sphi 0, %s29
    %s46 = sphi 0, %s30
    %s52 = sphi 0, %s54
    %s55 = sphi 0, %s52
    %s56 = sphi 0, %s55
    %s72 = sphi 0, %s56
    %s78 = sphi 0, %s80
    %s81 = sphi 0, %s78
    %s82 = sphi 0, %s81
    %s98 = sphi 0, %s82
    %s104 = sphi 0, %s106
    %s107 = sphi 0, %s104
    %s108 = sphi 0, %s107
    %s124 = sphi 0, %s108
  $region4: #{variational_encoder_forward.57} parent=0 // loop_header_branch
    %19 = sbr.rel (%p17) target = $region8
  $region5: #{variational_encoder_forward.57} parent=0 // loop_body
    %s21 = ssub.s32 %s16, 1
    %s22 = ssub.s32 %s16, 2
    %s23 = sadd.s32 %s16, 1
    %s24 = ssub.s32 %s16, %s23
    %p25 = scmp.eq.s32.totalorder %s24, 0
    %s27 = sadd.s32 %s26, 1
    %s28 = scalar_select %p25, %s26, %s27
    %p31 = pneg %p25
    %p32 = scmp.eq.s32.totalorder %s16, 1
    %p33 = por %p31, %p32
    %p34 = scmp.ne.s32.totalorder %s26, %s29
    %p35 = scmp.eq.s32.totalorder %s16, 0
    %p36 = por %p34, %p35
    %p37 = scmp.ne.s32.totalorder %s26, %s29
    %p38 = scmp.eq.s32.totalorder %s21, 1
    %p39 = por %p37, %p38
    %p40 = scmp.ne.s32.totalorder %s29, %s30
    %p41 = scmp.eq.s32.totalorder %s21, 0
    %p42 = por %p40, %p41
    %p43 = scmp.ne.s32.totalorder %s29, %s30
    %p44 = scmp.eq.s32.totalorder %s22, 1
    %p45 = por %p43, %p44
    %p47 = scmp.ne.s32.totalorder %s30, %s46
    %p48 = scmp.eq.s32.totalorder %s22, 0
    %p49 = por %p47, %p48
    %s50 = ssub.s32 %s16, %s23
    %p51 = scmp.eq.s32.totalorder %s50, 0
    %s53 = sadd.s32 %s52, 1
    %s54 = scalar_select %p51, %s52, %s53
    %p57 = pneg %p51
    %p58 = scmp.eq.s32.totalorder %s16, 1
    %p59 = por %p57, %p58
    %p60 = scmp.ne.s32.totalorder %s52, %s55
    %p61 = scmp.eq.s32.totalorder %s16, 0
    %p62 = por %p60, %p61
    %p63 = scmp.ne.s32.totalorder %s52, %s55
    %p64 = scmp.eq.s32.totalorder %s21, 1
    %p65 = por %p63, %p64
    %p66 = scmp.ne.s32.totalorder %s55, %s56
    %p67 = scmp.eq.s32.totalorder %s21, 0
    %p68 = por %p66, %p67
    %p69 = scmp.ne.s32.totalorder %s55, %s56
    %p70 = scmp.eq.s32.totalorder %s22, 1
    %p71 = por %p69, %p70
    %p73 = scmp.ne.s32.totalorder %s56, %s72
    %p74 = scmp.eq.s32.totalorder %s22, 0
    %p75 = por %p73, %p74
    %s76 = ssub.s32 %s16, %s23
    %p77 = scmp.eq.s32.totalorder %s76, 0
    %s79 = sadd.s32 %s78, 1
    %s80 = scalar_select %p77, %s78, %s79
    %p83 = pneg %p77
    %p84 = scmp.eq.s32.totalorder %s16, 1
    %p85 = por %p83, %p84
    %p86 = scmp.ne.s32.totalorder %s78, %s81
    %p87 = scmp.eq.s32.totalorder %s16, 0
    %p88 = por %p86, %p87
    %p89 = scmp.ne.s32.totalorder %s78, %s81
    %p90 = scmp.eq.s32.totalorder %s21, 1
    %p91 = por %p89, %p90
    %p92 = scmp.ne.s32.totalorder %s81, %s82
    %p93 = scmp.eq.s32.totalorder %s21, 0
    %p94 = por %p92, %p93
    %p95 = scmp.ne.s32.totalorder %s81, %s82
    %p96 = scmp.eq.s32.totalorder %s22, 1
    %p97 = por %p95, %p96
    %p99 = scmp.ne.s32.totalorder %s82, %s98
    %p100 = scmp.eq.s32.totalorder %s22, 0
    %p101 = por %p99, %p100
    %s102 = ssub.s32 %s16, %s23
    %p103 = scmp.eq.s32.totalorder %s102, 0
    %s105 = sadd.s32 %s104, 1
    %s106 = scalar_select %p103, %s104, %s105
    %p109 = pneg %p103
    %p110 = scmp.eq.s32.totalorder %s16, 1
    %p111 = por %p109, %p110
    %p112 = scmp.ne.s32.totalorder %s104, %s107
    %p113 = scmp.eq.s32.totalorder %s16, 0
    %p114 = por %p112, %p113
    %p115 = scmp.ne.s32.totalorder %s104, %s107
    %p116 = scmp.eq.s32.totalorder %s21, 1
    %p117 = por %p115, %p116
    %p118 = scmp.ne.s32.totalorder %s107, %s108
    %p119 = scmp.eq.s32.totalorder %s21, 0
    %p120 = por %p118, %p119
    %p121 = scmp.ne.s32.totalorder %s107, %s108
    %p122 = scmp.eq.s32.totalorder %s22, 1
    %p123 = por %p121, %p122
    %p125 = scmp.ne.s32.totalorder %s108, %s124
    %p126 = scmp.eq.s32.totalorder %s22, 0
    %p127 = por %p125, %p126
    %p128 = scmp.le.s32.totalorder 1, %s16
    %p129 = scmp.lt.s32.totalorder %s16, 3
    %p130 = pnand %p128, %p129
    %p131 = pneg %p130
    // Predicated region
    $region9: #{variational_encoder_forward.57} parent=5 // pred_check
      _
    $region10: #{variational_encoder_forward.57} parent=5 // pred_check_branch
      %133 = sbr.rel (%p130) target = $region12
    $region11: #{variational_encoder_forward.57} parent=5 // pred_region
      %s134 = ssub.s32 %s16, 1
    $region12: #{variational_encoder_forward.57} parent=5 // pred_fallthru
      _
    %p135 = scmp.lt.s32.totalorder %s16, 2
    // Predicated region
    $region13: #{variational_encoder_forward.57} parent=5 // pred_check
      %p136 = pneg %p135
    $region14: #{variational_encoder_forward.57} parent=5 // pred_check_branch
      %138 = sbr.rel (%p136) target = $region16
    $region15: #{variational_encoder_forward.57} parent=5 // pred_region
      // Predicated region
      $region17: #{variational_encoder_forward.57} parent=15 // pred_check
        %p139 = pneg %p36
      $region18: #{variational_encoder_forward.57} parent=15 // pred_check_branch
        %141 = sbr.rel (%p139) target = $region20
      $region19: #{variational_encoder_forward.57} parent=15 // pred_region
        %p142 = scmp.lt.s32.totalorder %s16, 1
        %s143 = scalar_select %p142, %s16, 1
        %s144 = smul.addr %s143, 12
        %s145 = smul.addr %s144, 8
        %s146 = scalar_lea.vmem %s1, %s145
      $region20: #{variational_encoder_forward.57} parent=15 // pred_fallthru
        _
      // Predicated region
      $region21: #{variational_encoder_forward.57} parent=15 // pred_check
        %p147 = pneg %p62
      $region22: #{variational_encoder_forward.57} parent=15 // pred_check_branch
        %149 = sbr.rel (%p147) target = $region24
      $region23: #{variational_encoder_forward.57} parent=15 // pred_region
        %p150 = scmp.lt.s32.totalorder %s16, 1
        %s151 = scalar_select %p150, %s16, 1
        %s152 = smul.addr %s151, 48
        %s153 = smul.addr %s152, 8
        %s154 = scalar_lea.vmem %s2, %s153
      $region24: #{variational_encoder_forward.57} parent=15 // pred_fallthru
        _
      // Predicated region
      $region25: #{variational_encoder_forward.57} parent=15 // pred_check
        %p155 = pneg %p88
      $region26: #{variational_encoder_forward.57} parent=15 // pred_check_branch
        %157 = sbr.rel (%p155) target = $region28
      $region27: #{variational_encoder_forward.57} parent=15 // pred_region
        %p158 = scmp.lt.s32.totalorder %s16, 1
        %s159 = scalar_select %p158, %s16, 1
        %s160 = smul.addr %s159, 3
        %s161 = scalar_lea.vmem %s3, %s160
      $region28: #{variational_encoder_forward.57} parent=15 // pred_fallthru
        _
    $region16: #{variational_encoder_forward.57} parent=5 // pred_fallthru
      _
    %p162 = scmp.le.s32.totalorder 1, %s16
    %p163 = scmp.lt.s32.totalorder %s16, 3
    %p164 = pnand %p162, %p163
    %p165 = pneg %p164
    // Predicated region
    $region29: #{variational_encoder_forward.57} parent=5 // pred_check
      _
    $region30: #{variational_encoder_forward.57} parent=5 // pred_check_branch
      %167 = sbr.rel (%p164) target = $region32
    $region31: #{variational_encoder_forward.57} parent=5 // pred_region
      %s168 = ssub.s32 %s16, 1
      %p169 = scmp.lt.s32.totalorder %s21, 1
      %s170 = scalar_select %p169, %s21, 1
      %s171 = smul.addr %s170, 12
      %s172 = smul.addr %s171, 8
      %s173 = scalar_lea.vmem %s1, %s172
      %p174 = pneg %p42
      %p175 = pneg %p39
      %p176 = scmp.lt.s32.totalorder %s21, 1
      %s177 = scalar_select %p176, %s21, 1
      %s178 = smul.addr %s177, 48
      %s179 = smul.addr %s178, 8
      %s180 = scalar_lea.vmem %s2, %s179
      %p181 = pneg %p68
      %p182 = pneg %p65
      %p183 = scmp.lt.s32.totalorder %s21, 1
      %s184 = scalar_select %p183, %s21, 1
      %s185 = smul.addr %s184, 3
      %s186 = scalar_lea.vmem %s3, %s185
      %p187 = pneg %p94
      %p188 = pneg %p91
      %p189 = pneg %p120
      %p190 = pneg %p117
      %p191 = scmp.lt.s32.totalorder %s21, 1
      %s192 = scalar_select %p191, %s21, 1
      %s193 = smul.addr %s192, 4
      %s194 = smul.addr %s193, 8
      %s195 = scalar_lea.vmem %s4, %s194
      %p196 = scmp.lt.s32.totalorder %s21, 1
      %s197 = scalar_select %p196, %s21, 1
      %s198 = smul.addr %s197, 12
      %s199 = smul.addr %s198, 8
      %s200 = scalar_lea.vmem %s1, %s199
      %p201 = scmp.lt.s32.totalorder %s21, 1
      %s202 = scalar_select %p201, %s21, 1
      %s203 = smul.addr %s202, 48
      %s204 = smul.addr %s203, 8
      %s205 = scalar_lea.vmem %s2, %s204
      %p206 = scmp.lt.s32.totalorder %s21, 1
      %s207 = scalar_select %p206, %s21, 1
      %s208 = smul.addr %s207, 3
      %s209 = scalar_lea.vmem %s3, %s208
      %p210 = scmp.lt.s32.totalorder %s21, 1
      %s211 = scalar_select %p210, %s21, 1
      %s212 = smul.addr %s211, 4
      %s213 = smul.addr %s212, 8
      %s214 = scalar_lea.vmem %s4, %s213
      %s215 = sld [smem:[#allocation4 + %s21]]
      %216 = vst [vmem:[#allocation2] sm:$0xff] 0.0
      %v217 = vld [vmem:[%s205] sm:$0xff]
      %v218 = vld [vmem:[%s205 + $0x8] sm:$0xff]
      %v219 = vld [vmem:[%s205 + $0x10] sm:$0xff]
      %v220 = vld [vmem:[%s205 + $0x18] sm:$0xff]
      %v221 = vld [vmem:[%s205 + $0x20] sm:$0xff]
      %v222 = vld [vmem:[%s205 + $0x28] sm:$0xff]
      %v223 = vld [vmem:[%s205 + $0x30] sm:$0xff]
      %v224 = vld [vmem:[%s205 + $0x38] sm:$0xff]
      %v225 = vld [vmem:[%s205 + $0x40] sm:$0xff]
      %v226 = vld [vmem:[%s205 + $0x48] sm:$0xff]
      %v227 = vld [vmem:[%s205 + $0x50] sm:$0xff]
      %v228 = vld [vmem:[%s205 + $0x58] sm:$0xff]
      %v229 = vld [vmem:[%s205 + $0x60] sm:$0xff]
      %v230 = vld [vmem:[%s205 + $0x68] sm:$0xff]
      %v231 = vld [vmem:[%s205 + $0x70] sm:$0xff]
      %v232 = vld [vmem:[%s205 + $0x78] sm:$0xff]
      %v233 = vld [vmem:[%s205 + $0x80] sm:$0xff]
      %v234 = vld [vmem:[%s205 + $0x88] sm:$0xff]
      %v235 = vld [vmem:[%s205 + $0x90] sm:$0xff]
      %v236 = vld [vmem:[%s205 + $0x98] sm:$0xff]
      %v237 = vld [vmem:[%s205 + $0xa0] sm:$0xff]
      %v238 = vld [vmem:[%s205 + $0xa8] sm:$0xff]
      %v239 = vld [vmem:[%s205 + $0xb0] sm:$0xff]
      %v240 = vld [vmem:[%s205 + $0xb8] sm:$0xff]
      %v241 = vld [vmem:[%s205 + $0xc0] sm:$0xff]
      %v242 = vld [vmem:[%s205 + $0xc8] sm:$0xff]
      %v243 = vld [vmem:[%s205 + $0xd0] sm:$0xff]
      %v244 = vld [vmem:[%s205 + $0xd8] sm:$0xff]
      %v245 = vld [vmem:[%s205 + $0xe0] sm:$0xff]
      %v246 = vld [vmem:[%s205 + $0xe8] sm:$0xff]
      %v247 = vld [vmem:[%s205 + $0xf0] sm:$0xff]
      %v248 = vld [vmem:[%s205 + $0xf8] sm:$0xff]
      %v249 = vld [vmem:[%s205 + $0x100] sm:$0xff]
      %v250 = vld [vmem:[%s205 + $0x108] sm:$0xff]
      %v251 = vld [vmem:[%s205 + $0x110] sm:$0xff]
      %v252 = vld [vmem:[%s205 + $0x118] sm:$0xff]
      %v253 = vld [vmem:[%s205 + $0x120] sm:$0xff]
      %v254 = vld [vmem:[%s205 + $0x128] sm:$0xff]
      %v255 = vld [vmem:[%s205 + $0x130] sm:$0xff]
      %v256 = vld [vmem:[%s205 + $0x138] sm:$0xff]
      %v257 = vld [vmem:[%s205 + $0x140] sm:$0xff]
      %v258 = vld [vmem:[%s205 + $0x148] sm:$0xff]
      %v259 = vld [vmem:[%s205 + $0x150] sm:$0xff]
      %v260 = vld [vmem:[%s205 + $0x158] sm:$0xff]
      %v261 = vld [vmem:[%s205 + $0x160] sm:$0xff]
      %v262 = vld [vmem:[%s205 + $0x168] sm:$0xff]
      %v263 = vld [vmem:[%s205 + $0x170] sm:$0xff]
      %v264 = vld [vmem:[%s205 + $0x178] sm:$0xff]
      %v265 = vld [vmem:[%s209] sm:$0x7]
      loop: start=0, step=1, limit=4
      $region33: #{variational_encoder_forward.57} parent=31 // loop_pre_header
        _
      $region34: #{variational_encoder_forward.57} parent=31 // loop_header
        %s267 = sphi 0, %s271
        %p268 = scmp.ge.s32.totalorder %s267, 4
      $region35: #{variational_encoder_forward.57} parent=31 // loop_header_branch
        %270 = sbr.rel (%p268) target = $region39
      $region36: #{variational_encoder_forward.57} parent=31 // loop_body
        %s272 = smul.u32 %s267, 2
        %s273 = ssub.s32 3, %s272
        %s274 = smul.u32 %s215, %s273
        %s275 = sadd.s32 %s267, %s274
        %s276 = smul.u32 %s275, 3
        %s277 = smul.addr %s276, 8
        %s278 = scalar_lea.vmem %s200, %s277
        %v279 = vld [vmem:[%s278] sm:$0xff]
        %v280 = vld [vmem:[%s278 + $0x8] sm:$0xff]
        %v281 = vld [vmem:[%s278 + $0x10] sm:$0xff]
        %v282 = vld [vmem:[#allocation2] sm:$0xff]
        %v284 = vlaneseq
        %v285 = vshrl.u32 %v284, 7
        %v286 = vsub.s32 0, %v285
        %v287 = vrot.slane %v265, %v286
        %v288 = vlaneseq
        %v289 = vshrl.u32 %v288, 7
        %v290 = vsub.s32 1, %v289
        %v291 = vrot.slane %v265, %v290
        %v292 = vlaneseq
        %v293 = vshrl.u32 %v292, 7
        %v294 = vsub.s32 2, %v293
        %v295 = vrot.slane %v265, %v294
        %299 = vmatprep.subr.mxu0 %v263
        %300 = vmatpush1.msra.mxu0 %v262
        %301 = vmatprep.subr.mxu0 %v260
        %302 = vmatpush1.msra.mxu0 %v259
        %303 = vmatprep.subr.mxu0 %v257
        %304 = vmatpush1.msra.mxu0 %v256
        %305 = vmatprep.subr.mxu0 %v254
        %306 = vmatpush1.msra.mxu0 %v253
        %307 = vmatprep.subr.mxu0 %v251
        %308 = vmatpush1.msra.mxu0 %v250
        %309 = vmatprep.subr.mxu0 %v248
        %310 = vmatpush1.msra.mxu0 %v247
        %311 = vmatprep.subr.mxu0 %v245
        %312 = vmatpush1.msra.mxu0 %v244
        %313 = vmatprep.subr.mxu0 %v242
        %314 = vmatpush1.msra.mxu0 %v241
        %315 = vmatprep.subr.mxu0 %v239
        %316 = vmatpush1.msra.mxu0 %v238
        %317 = vmatprep.subr.mxu0 %v236
        %318 = vmatpush1.msra.mxu0 %v235
        %319 = vmatprep.subr.mxu0 %v233
        %320 = vmatpush1.msra.mxu0 %v232
        %321 = vmatprep.subr.mxu0 %v230
        %322 = vmatpush1.msra.mxu0 %v229
        %323 = vmatprep.subr.mxu0 %v227
        %324 = vmatpush1.msra.mxu0 %v226
        %325 = vmatprep.subr.mxu0 %v224
        %326 = vmatpush1.msra.mxu0 %v223
        %327 = vmatprep.subr.mxu0 %v221
        %328 = vmatpush1.msra.mxu0 %v220
        %329 = vmatprep.subr.mxu0 %v218
        %330 = vmatpush1.msra.mxu0 %v217
        %331 = vmatprep.subr.mxu0 0.0
        %332 = vmatpush2.msra.mxu0 0.0
        %333 = vmatprep.subr.mxu0 0.0
        %334 = vmatpush2.msra.mxu0 0.0
        %335 = vmatprep.subr.mxu0 0.0
        %336 = vmatpush2.msra.mxu0 0.0
        %337 = vmatprep.subr.mxu0 0.0
        %338 = vmatpush2.msra.mxu0 0.0
        %339 = vmatprep.subr.mxu0 0.0
        %340 = vmatpush2.msra.mxu0 0.0
        %341 = vmatprep.subr.mxu0 0.0
        %342 = vmatpush2.msra.mxu0 0.0
        %343 = vmatprep.subr.mxu0 0.0
        %344 = vmatpush2.msra.mxu0 0.0
        %345 = vmatprep.subr.mxu0 0.0
        %346 = vmatpush2.msra.mxu0 0.0
        %347 = vmatprep.subr.mxu0 0.0
        %348 = vmatpush2.msra.mxu0 0.0
        %349 = vmatprep.subr.mxu0 0.0
        %350 = vmatpush2.msra.mxu0 0.0
        %351 = vmatprep.subr.mxu0 0.0
        %352 = vmatpush2.msra.mxu0 0.0
        %353 = vmatprep.subr.mxu0 0.0
        %354 = vmatpush2.msra.mxu0 0.0
        %355 = vmatprep.subr.mxu0 0.0
        %356 = vmatpush2.msra.mxu0 0.0
        %357 = vmatprep.subr.mxu0 0.0
        %358 = vmatpush2.msra.mxu0 0.0
        %359 = vmatprep.subr.mxu0 0.0
        %360 = vmatpush2.msra.mxu0 0.0
        %361 = vmatprep.subr.mxu0 0.0
        %362 = vmatpush2.msra.mxu0 0.0
        %363 = vmatprep.mubr.f32.mxu0 0.0
        %364 = vmatmul.mubr.f32.gmra.mxu0 %v282
        %v365 = vpop.f32.mrf.mxu0
        %v366 = vadd.f32 %v287, %v365
        %v367 = vpop.f32.mrf.mxu0
        %v368 = vadd.f32 %v291, %v367
        %369 = vdwg.mxu0
        %370 = vmatprep.subr.mxu0 0.0
        %371 = vmatpush1.msra.mxu0 %v264
        %372 = vmatprep.subr.mxu0 0.0
        %373 = vmatpush1.msra.mxu0 %v261
        %374 = vmatprep.subr.mxu0 0.0
        %375 = vmatpush1.msra.mxu0 %v258
        %376 = vmatprep.subr.mxu0 0.0
        %377 = vmatpush1.msra.mxu0 %v255
        %378 = vmatprep.subr.mxu0 0.0
        %379 = vmatpush1.msra.mxu0 %v252
        %380 = vmatprep.subr.mxu0 0.0
        %381 = vmatpush1.msra.mxu0 %v249
        %382 = vmatprep.subr.mxu0 0.0
        %383 = vmatpush1.msra.mxu0 %v246
        %384 = vmatprep.subr.mxu0 0.0
        %385 = vmatpush1.msra.mxu0 %v243
        %386 = vmatprep.subr.mxu0 0.0
        %387 = vmatpush1.msra.mxu0 %v240
        %388 = vmatprep.subr.mxu0 0.0
        %389 = vmatpush1.msra.mxu0 %v237
        %390 = vmatprep.subr.mxu0 0.0
        %391 = vmatpush1.msra.mxu0 %v234
        %392 = vmatprep.subr.mxu0 0.0
        %393 = vmatpush1.msra.mxu0 %v231
        %394 = vmatprep.subr.mxu0 0.0
        %395 = vmatpush1.msra.mxu0 %v228
        %396 = vmatprep.subr.mxu0 0.0
        %397 = vmatpush1.msra.mxu0 %v225
        %398 = vmatprep.subr.mxu0 0.0
        %399 = vmatpush1.msra.mxu0 %v222
        %400 = vmatprep.subr.mxu0 0.0
        %401 = vmatpush1.msra.mxu0 %v219
        %402 = vmatprep.subr.mxu0 0.0
        %403 = vmatpush2.msra.mxu0 0.0
        %404 = vmatprep.subr.mxu0 0.0
        %405 = vmatpush2.msra.mxu0 0.0
        %406 = vmatprep.subr.mxu0 0.0
        %407 = vmatpush2.msra.mxu0 0.0
        %408 = vmatprep.subr.mxu0 0.0
        %409 = vmatpush2.msra.mxu0 0.0
        %410 = vmatprep.subr.mxu0 0.0
        %411 = vmatpush2.msra.mxu0 0.0
        %412 = vmatprep.subr.mxu0 0.0
        %413 = vmatpush2.msra.mxu0 0.0
        %414 = vmatprep.subr.mxu0 0.0
        %415 = vmatpush2.msra.mxu0 0.0
        %416 = vmatprep.subr.mxu0 0.0
        %417 = vmatpush2.msra.mxu0 0.0
        %418 = vmatprep.subr.mxu0 0.0
        %419 = vmatpush2.msra.mxu0 0.0
        %420 = vmatprep.subr.mxu0 0.0
        %421 = vmatpush2.msra.mxu0 0.0
        %422 = vmatprep.subr.mxu0 0.0
        %423 = vmatpush2.msra.mxu0 0.0
        %424 = vmatprep.subr.mxu0 0.0
        %425 = vmatpush2.msra.mxu0 0.0
        %426 = vmatprep.subr.mxu0 0.0
        %427 = vmatpush2.msra.mxu0 0.0
        %428 = vmatprep.subr.mxu0 0.0
        %429 = vmatpush2.msra.mxu0 0.0
        %430 = vmatprep.subr.mxu0 0.0
        %431 = vmatpush2.msra.mxu0 0.0
        %432 = vmatprep.subr.mxu0 0.0
        %433 = vmatpush2.msra.mxu0 0.0
        %434 = vmatprep.mubr.f32.mxu0 0.0
        %435 = vmatmul.mubr.f32.gmra.mxu0 %v282
        %v436 = vpop.f32.mrf.mxu0
        %v437 = vadd.f32 %v295, %v436
        %v438 = vpop.f32.mrf.mxu0
        %439 = vdwg.mxu0
        %v440 = vadd.f32 %v279, %v366
        %v441 = vxor.u32 %v440, 2147483648
        %v442 = vmul.f32 %v441, 1.442695
        %v443 = vpow.pop %v442
        %v444 = vadd.f32 %v443, 1.0
        %v445 = vrcp.pop %v444
        %v446 = vmul.f32 1.0, %v445
        %v447 = vadd.f32 %v280, %v368
        %v448 = vxor.u32 %v447, 2147483648
        %v449 = vmul.f32 %v448, 1.442695
        %v450 = vpow.pop %v449
        %v451 = vadd.f32 %v450, 1.0
        %v452 = vrcp.pop %v451
        %v453 = vmul.f32 1.0, %v452
        %v454 = vmul.f32 %v446, %v437
        %v455 = vadd.f32 %v281, %v454
        %v456 = vtanh.pop %v455
        %v457 = vsub.f32 1.0, %v453
        %v458 = vmul.f32 %v457, %v456
        %v459 = vmul.f32 %v453, %v282
        %v460 = vadd.f32 %v458, %v459
        %461 = vst [vmem:[#allocation2] sm:$0xff] %v460
        %s462 = smul.u32 %s275, 8
        %s463 = scalar_lea.vmem %s214, %s462
        %464 = vst [vmem:[%s463] sm:$0xff] %v460
      $region37: #{variational_encoder_forward.57} parent=31 // loop_footer
        %s271 = sadd.s32 1, %s267
      $region38: #{variational_encoder_forward.57} parent=31 // loop_footer_branch
        %266 = sbr.rel target = $region34
      $region39: #{variational_encoder_forward.57} parent=31 // loop_exit
        _
      %p465 = scmp.lt.s32.totalorder %s21, 1
      %s466 = scalar_select %p465, %s21, 1
      %s467 = smul.addr %s466, 4
      %s468 = smul.addr %s467, 8
      %s469 = scalar_lea.vmem %s4, %s468
      // Predicated region
      $region40: #{variational_encoder_forward.57} parent=31 // pred_check
        %p470 = pneg %p117
      $region41: #{variational_encoder_forward.57} parent=31 // pred_check_branch
        %472 = sbr.rel (%p470) target = $region43
      $region42: #{variational_encoder_forward.57} parent=31 // pred_region
        _
      $region43: #{variational_encoder_forward.57} parent=31 // pred_fallthru
        _
    $region32: #{variational_encoder_forward.57} parent=5 // pred_fallthru
      _
    %p473 = scmp.le.s32.totalorder 2, %s16
    // Predicated region
    $region44: #{variational_encoder_forward.57} parent=5 // pred_check
      %p474 = pneg %p473
    $region45: #{variational_encoder_forward.57} parent=5 // pred_check_branch
      %476 = sbr.rel (%p474) target = $region47
    $region46: #{variational_encoder_forward.57} parent=5 // pred_region
      %s477 = ssub.s32 %s16, 2
      // Predicated region
      $region48: #{variational_encoder_forward.57} parent=46 // pred_check
        %p478 = pneg %p123
      $region49: #{variational_encoder_forward.57} parent=46 // pred_check_branch
        %480 = sbr.rel (%p478) target = $region51
      $region50: #{variational_encoder_forward.57} parent=46 // pred_region
        %p481 = scmp.lt.s32.totalorder %s22, 1
        %s482 = scalar_select %p481, %s22, 1
        %s483 = smul.addr %s482, 4
        %s484 = smul.addr %s483, 8
        %s485 = scalar_lea.vmem %s4, %s484
      $region51: #{variational_encoder_forward.57} parent=46 // pred_fallthru
        _
    $region47: #{variational_encoder_forward.57} parent=5 // pred_fallthru
      _
  $region6: #{variational_encoder_forward.57} parent=0 // loop_footer
    %s20 = sadd.s32 1, %s16
  $region7: #{variational_encoder_forward.57} parent=0 // loop_footer_branch
    %15 = sbr.rel target = $region3
  $region8: #{variational_encoder_forward.57} parent=0 // loop_exit
    _

// kernel: variational_encoder_forward.58
$region0: #{variational_encoder_forward.58}
  #allocation0 [shape = 'u32[]', space=smem, size = 0x4, offset = 0x4, fixed_abs, tag = 'smem constant byte address 0x4 - core index']
  #allocation1 [shape = 'u32[144,128]{1,0:T(1,128)}', space=vmem, size = 0x12000, scoped, tag = 'internal scratch']
  #allocation2 [shape = 'f32[8,128]{1,0:T(8,128)}', space=vmem, size = 0x1000, scoped, tag = 'scratch operand']
  %s0 = inlined_call_operand.vmem [shape: bf16[8,128], index: 0, kind: input, shape index: {}]
  %s1 = inlined_call_operand.vmem [shape: bf16[128,128], index: 1, kind: input, shape index: {}]
  %s2 = inlined_call_operand.vmem [shape: f32[1,128], index: 2, kind: input, shape index: {}]
  %s3 = inlined_call_operand.vmem [shape: f32[8,128], index: 3, kind: output, shape index: {}]
  %s4 = sld [smem:[#allocation0]]
  $region30: #{variational_encoder_forward.58} parent=0
    _
  %s6 = ssub.s32 1, %s4
  %s7 = scalar_select 0, %s6, %s4
  // Predicated region
  $region2: #{variational_encoder_forward.58} parent=0 // pred_check
    _
  $region3: #{variational_encoder_forward.58} parent=0 // pred_check_branch
    %9 = sbr.rel (0) target = $region5
  $region4: #{variational_encoder_forward.58} parent=0 // pred_region
    _
  $region5: #{variational_encoder_forward.58} parent=0 // pred_fallthru
    _
  // Predicated region
  $region6: #{variational_encoder_forward.58} parent=0 // pred_check
    _
  $region7: #{variational_encoder_forward.58} parent=0 // pred_check_branch
    %11 = sbr.rel (0) target = $region9
  $region8: #{variational_encoder_forward.58} parent=0 // pred_region
    _
  $region9: #{variational_encoder_forward.58} parent=0 // pred_fallthru
    _
  // Predicated region
  $region10: #{variational_encoder_forward.58} parent=0 // pred_check
    _
  $region11: #{variational_encoder_forward.58} parent=0 // pred_check_branch
    %13 = sbr.rel (0) target = $region13
  $region12: #{variational_encoder_forward.58} parent=0 // pred_region
    _
  $region13: #{variational_encoder_forward.58} parent=0 // pred_fallthru
    _
  %p15 = scmp.eq.s32.totalorder 0, 0
  // Predicated region
  $region14: #{variational_encoder_forward.58} parent=0 // pred_check
    %p16 = pneg %p15
  $region15: #{variational_encoder_forward.58} parent=0 // pred_check_branch
    %18 = sbr.rel (%p16) target = $region17
  $region16: #{variational_encoder_forward.58} parent=0 // pred_region
    %19 = vst [vmem:[#allocation2] sm:$0xff] 0.0
  $region17: #{variational_encoder_forward.58} parent=0 // pred_fallthru
    _
  %v20 = vld [vmem:[#allocation2] sm:$0xff]
  %v21 = vld [vmem:[%s0] sm:$0xf]
  %v22 = vld [vmem:[%s1] sm:$0xf]
  %v23 = vld [vmem:[%s1 + $0x4] sm:$0xf]
  %v24 = vld [vmem:[%s1 + $0x8] sm:$0xf]
  %v25 = vld [vmem:[%s1 + $0xc] sm:$0xf]
  %v26 = vld [vmem:[%s1 + $0x10] sm:$0xf]
  %v27 = vld [vmem:[%s1 + $0x14] sm:$0xf]
  %v28 = vld [vmem:[%s1 + $0x18] sm:$0xf]
  %v29 = vld [vmem:[%s1 + $0x1c] sm:$0xf]
  %v30 = vld [vmem:[%s1 + $0x20] sm:$0xf]
  %v31 = vld [vmem:[%s1 + $0x24] sm:$0xf]
  %v32 = vld [vmem:[%s1 + $0x28] sm:$0xf]
  %v33 = vld [vmem:[%s1 + $0x2c] sm:$0xf]
  %v34 = vld [vmem:[%s1 + $0x30] sm:$0xf]
  %v35 = vld [vmem:[%s1 + $0x34] sm:$0xf]
  %v36 = vld [vmem:[%s1 + $0x38] sm:$0xf]
  %v37 = vld [vmem:[%s1 + $0x3c] sm:$0xf]
  %v54 = vunpack.c.l.b16 %v22
  %v55 = vunpack.c.l.b16 %v23
  %v56 = vunpack.c.l.b16 %v24
  %v57 = vunpack.c.l.b16 %v25
  %v58 = vunpack.c.l.b16 %v26
  %v59 = vunpack.c.l.b16 %v27
  %v60 = vunpack.c.l.b16 %v28
  %v61 = vunpack.c.l.b16 %v29
  %v62 = vunpack.c.l.b16 %v30
  %v63 = vunpack.c.l.b16 %v31
  %v64 = vunpack.c.l.b16 %v32
  %v65 = vunpack.c.l.b16 %v33
  %v66 = vunpack.c.l.b16 %v34
  %v67 = vunpack.c.l.b16 %v35
  %v68 = vunpack.c.l.b16 %v36
  %v69 = vunpack.c.l.b16 %v37
  %v70 = vpack.c.b16 %v55, %v54
  %v71 = vpack.c.b16 %v57, %v56
  %v72 = vpack.c.b16 %v59, %v58
  %v73 = vpack.c.b16 %v61, %v60
  %v74 = vpack.c.b16 %v63, %v62
  %v75 = vpack.c.b16 %v65, %v64
  %v76 = vpack.c.b16 %v67, %v66
  %v77 = vpack.c.b16 %v69, %v68
  %86 = vmatprep.subr.bf16.mxu0 0
  %87 = vmatpush1.bf16.msra.mxu0 %v77
  %88 = vmatprep.subr.bf16.mxu0 0
  %89 = vmatpush1.bf16.msra.mxu0 %v76
  %90 = vmatprep.subr.bf16.mxu0 0
  %91 = vmatpush1.bf16.msra.mxu0 %v75
  %92 = vmatprep.subr.bf16.mxu0 0
  %93 = vmatpush1.bf16.msra.mxu0 %v74
  %94 = vmatprep.subr.bf16.mxu0 0
  %95 = vmatpush1.bf16.msra.mxu0 %v73
  %96 = vmatprep.subr.bf16.mxu0 0
  %97 = vmatpush1.bf16.msra.mxu0 %v72
  %98 = vmatprep.subr.bf16.mxu0 0
  %99 = vmatpush1.bf16.msra.mxu0 %v71
  %100 = vmatprep.subr.bf16.mxu0 0
  %101 = vmatpush1.bf16.msra.mxu0 %v70
  %102 = vmatprep.subr.bf16.mxu0 0
  %103 = vmatpush2.bf16.msra.mxu0 0
  %104 = vmatprep.subr.bf16.mxu0 0
  %105 = vmatpush2.bf16.msra.mxu0 0
  %106 = vmatprep.subr.bf16.mxu0 0
  %107 = vmatpush2.bf16.msra.mxu0 0
  %108 = vmatprep.subr.bf16.mxu0 0
  %109 = vmatpush2.bf16.msra.mxu0 0
  %110 = vmatprep.subr.bf16.mxu0 0
  %111 = vmatpush2.bf16.msra.mxu0 0
  %112 = vmatprep.subr.bf16.mxu0 0
  %113 = vmatpush2.bf16.msra.mxu0 0
  %114 = vmatprep.subr.bf16.mxu0 0
  %115 = vmatpush2.bf16.msra.mxu0 0
  %116 = vmatprep.subr.bf16.mxu0 0
  %117 = vmatpush2.bf16.msra.mxu0 0
  %118 = vmatprep.mubr.bf16.mxu0 0
  %119 = vmatmul.mubr.bf16.gmra.mxu0 %v21
  %v120 = vpop.f32.mrf.mxu0
  %v121 = vadd.f32 0.0, %v120
  %v122 = vpop.f32.mrf.mxu0
  %v123 = vpop.f32.mrf.mxu0
  %v124 = vpop.f32.mrf.mxu0
  %125 = vdwg.mxu0
  %v126 = vadd.f32 %v20, %v121
  %127 = vst [vmem:[#allocation2] sm:$0xff] %v126
  // Predicated region
  $region18: #{variational_encoder_forward.58} parent=0 // pred_check
    %p128 = pneg %p15
  $region19: #{variational_encoder_forward.58} parent=0 // pred_check_branch
    %130 = sbr.rel (%p128) target = $region21
  $region20: #{variational_encoder_forward.58} parent=0 // pred_region
    %v131 = vld [vmem:[#allocation2] sm:$0xff]
    %v132 = vld [vmem:[%s2] sm:$0x1]
    %v134 = vlaneseq
    %v135 = vshrl.u32 %v134, 7
    %v136 = vsub.s32 0, %v135
    %v137 = vrot.slane %v132, %v136
    %v139 = vadd.f32 %v131, %v137
    %140 = vst [vmem:[%s3] sm:$0xff] %v139
  $region21: #{variational_encoder_forward.58} parent=0 // pred_fallthru
    _
  // Predicated region
  $region22: #{variational_encoder_forward.58} parent=0 // pred_check
    _
  $region23: #{variational_encoder_forward.58} parent=0 // pred_check_branch
    %142 = sbr.rel (0) target = $region25
  $region24: #{variational_encoder_forward.58} parent=0 // pred_region
    _
  $region25: #{variational_encoder_forward.58} parent=0 // pred_fallthru
    _
  // Predicated region
  $region26: #{variational_encoder_forward.58} parent=0 // pred_check
    _
  $region27: #{variational_encoder_forward.58} parent=0 // pred_check_branch
    %144 = sbr.rel (0) target = $region29
  $region28: #{variational_encoder_forward.58} parent=0 // pred_region
    _
  $region29: #{variational_encoder_forward.58} parent=0 // pred_fallthru
    _

// kernel: variational_encoder_forward.61
$region0: #{variational_encoder_forward.61}
  #allocation0 [shape = 'u32[]', space=smem, size = 0x4, offset = 0x4, fixed_abs, tag = 'smem constant byte address 0x4 - core index']
  #allocation1 [shape = 'u32[144,128]{1,0:T(1,128)}', space=vmem, size = 0x12000, scoped, tag = 'internal scratch']
  %s0 = inlined_call_operand.vmem [shape: f32[8,32], index: 0, kind: input, shape index: {}]
  %s1 = inlined_call_operand.hbm [shape: f32[8,32], index: 1, kind: output, shape index: {}]
  %s2 = sld [smem:[#allocation0]]
  $region14: #{variational_encoder_forward.61} parent=0
    _
  %s4 = ssub.s32 1, %s2
  %s5 = scalar_select 0, %s4, %s2
  $region1: #{variational_encoder_forward.61} parent=0
    #allocation2 [shape = 'u8[4096]{0}', space=vmem, size = 0x1000, scoped, tag = 'output window, operand 0, single buffered']
    #allocation3 [shape = 's32[1]{0}', space=sflag, size = 0x4, scoped, tag = 'scoped memory for variational_encoder_forward.61']
    %6 = vsyncpa [#allocation3], 0
    // Predicated region
    $region2: #{variational_encoder_forward.61} parent=1 // pred_check
      _
    $region3: #{variational_encoder_forward.61} parent=1 // pred_check_branch
      %8 = sbr.rel (0) target = $region5
    $region4: #{variational_encoder_forward.61} parent=1 // pred_region
      _
    $region5: #{variational_encoder_forward.61} parent=1 // pred_fallthru
      _
    %v9 = vld [vmem:[%s0] sm:$0xff]
    %vm10 = vcmp.ge.f32.partialorder %v9, 0.0
    %v11 = vmul.f32 %v9, 0.2
    %v12 = vsel %vm10, %v9, %v11
    %vm13 = vcmask 261120
    %14 = vst.msk [vmem:[#allocation2] sm:$0xff] %vm13, %v12
    // Predicated region
    $region6: #{variational_encoder_forward.61} parent=1 // pred_check
      _
    $region7: #{variational_encoder_forward.61} parent=1 // pred_check_branch
      %16 = sbr.rel (0) target = $region9
    $region8: #{variational_encoder_forward.61} parent=1 // pred_region
      %s18 = ssub.s32 128, 128
      %19 = vsyncadd [#allocation3], %s18
      %s21 = sshll.u32 [#allocation2], 4
      %s22 = int_to_ptr.vmem [resolvable:$true] %s21
      %24 = dma.vmem_to_hbm [thread:$0]  %s22, 128, %s1, [#allocation3]
    $region9: #{variational_encoder_forward.61} parent=1 // pred_fallthru
      _
    // Predicated region
    $region10: #{variational_encoder_forward.61} parent=1 // pred_check
      _
    $region11: #{variational_encoder_forward.61} parent=1 // pred_check_branch
      %26 = sbr.rel (0) target = $region13
    $region12: #{variational_encoder_forward.61} parent=1 // pred_region
      %27 = dma.done [#allocation3], 128
    $region13: #{variational_encoder_forward.61} parent=1 // pred_fallthru
      _
    %28 = vsyncpa [#allocation3], 1

</llo_original>
